<compile_context>
chip_gen: v7x
topology: tpu7x:2x2x1
jax: 0.10.0
libtpu: 0.0.40
codegen_flags: <defaults>
</compile_context>

<pallas_src>
import functools

import jax
import jax.numpy as jnp
from jax import lax
from jax.experimental import pallas as pl
from jax.experimental.pallas import tpu as pltpu


# ----------------------------------------------------------------------------
# Pallas kernel: whole bi-GRU + linear head in one VMEM-resident kernel.
# ----------------------------------------------------------------------------
def _bigru_kernel(
    x_ref,                      # (S*B, E)  time-major, row = t*B + b
    wxf_ref, bxf_ref,           # (E, 3H), (1, 3H)   forward  input proj [r|z|n]
    wxb_ref, bxb_ref,           # (E, 3H), (1, 3H)   backward input proj [r|z|n]
    whf_ref, whb_ref,           # (H, 3H)            recurrent weights  [r|z|n]
    bhnf_ref, bhnb_ref,         # (1, H)             b_hh_n (stays inside r*(.))
    lwf_ref, lwb_ref, lb_ref,   # (H, 1), (H, 1), (1, 1)  linear head
    prob_ref, rnn_ref,          # outputs: (S*B, 1), (S*B, 2H)
    gxf_s, gxb_s, hf_s, hb_s,   # scratch: (S*B,3H) x2, (S*B,H) x2
    *, B, S, H,
):
    # ---- fused input projections (one wide matmul per direction, once) ----
    x = x_ref[...]                                           # (S*B, E)
    gxf_s[...] = (jnp.dot(x, wxf_ref[...],
                          preferred_element_type=jnp.float32) + bxf_ref[...])
    gxb_s[...] = (jnp.dot(x, wxb_ref[...],
                          preferred_element_type=jnp.float32) + bxb_ref[...])

    # hoisted recurrent weights / biases
    whf = whf_ref[...]
    whb = whb_ref[...]
    bhnf = bhnf_ref[...]
    bhnb = bhnb_ref[...]

    def gru_update(gi, gh, bhn, h):
        # PyTorch gate order (r, z, n); b_hh_n kept inside the r*(...) term.
        r = jax.nn.sigmoid(gi[:, :H] + gh[:, :H])
        z = jax.nn.sigmoid(gi[:, H:2 * H] + gh[:, H:2 * H])
        n = jnp.tanh(gi[:, 2 * H:] + r * (gh[:, 2 * H:] + bhn))
        return (1.0 - z) * n + z * h

    # ---- interleaved fwd/bwd recurrence, fully unrolled (S is small) ----
    def step(i, carry):
        hf, hb = carry
        tf = i * B
        tb = (S - 1 - i) * B
        gi_f = gxf_s[pl.ds(tf, B), :]                        # (B, 3H)
        gi_b = gxb_s[pl.ds(tb, B), :]
        # two independent fused (B,H)@(H,3H) matmuls -> MXU latency overlapped
        gh_f = jnp.dot(hf, whf, preferred_element_type=jnp.float32)
        gh_b = jnp.dot(hb, whb, preferred_element_type=jnp.float32)
        hf_new = gru_update(gi_f, gh_f, bhnf, hf)
        hb_new = gru_update(gi_b, gh_b, bhnb, hb)
        hf_s[pl.ds(tf, B), :] = hf_new
        hb_s[pl.ds(tb, B), :] = hb_new
        return hf_new, hb_new

    h0 = jnp.zeros((B, H), jnp.float32)
    lax.fori_loop(0, S, step, (h0, h0), unroll=True)

    # ---- outputs: rnn = [fwd ; bwd], prob = sigmoid(Linear(rnn)) ----
    hf = hf_s[...]                                           # (S*B, H)
    hb = hb_s[...]
    rnn_ref[...] = jnp.concatenate([hf, hb], axis=-1)        # (S*B, 2H), 1 store
    logit = (jnp.dot(hf, lwf_ref[...], preferred_element_type=jnp.float32)
             + jnp.dot(hb, lwb_ref[...], preferred_element_type=jnp.float32)
             + lb_ref[...])                                  # (S*B, 1)
    prob_ref[...] = jax.nn.sigmoid(logit)


# ----------------------------------------------------------------------------
# Host-side glue: param init (deterministic), weight packing, wrapper.
# ----------------------------------------------------------------------------
def init_params(key, input_size, hidden_size):
    """PyTorch-style uniform init: GRU ~ U(-1/sqrt(H), 1/sqrt(H))."""
    E, H = input_size, hidden_size
    ks = jax.random.split(key, 10)

    def u(k_, shape, bound):
        return jax.random.uniform(k_, shape, jnp.float32, -bound, bound)

    gb = 1.0 / (H ** 0.5)
    raw = {
        "w_ih_f": u(ks[0], (3 * H, E), gb),
        "w_hh_f": u(ks[1], (3 * H, H), gb),
        "b_ih_f": u(ks[2], (3 * H,), gb),
        "b_hh_f": u(ks[3], (3 * H,), gb),
        "w_ih_b": u(ks[4], (3 * H, E), gb),
        "w_hh_b": u(ks[5], (3 * H, H), gb),
        "b_ih_b": u(ks[6], (3 * H,), gb),
        "b_hh_b": u(ks[7], (3 * H,), gb),
    }
    lb = 1.0 / ((2 * H) ** 0.5)
    raw["lin_w"] = u(ks[8], (1, 2 * H), lb)   # nn.Linear weight (out, in)
    raw["lin_b"] = u(ks[9], (1,), lb)
    return raw


def _pack_params(raw, H):
    """Pre-transpose / fuse weights on the host so the kernel only does wide
    x @ W and h @ [Wr|Wz|Wn] matmuls. PyTorch gate order is (r, z, n)."""
    def fold_bias(b_ih, b_hh):
        # r/z gates: b_ih + b_hh folded; n gate keeps only b_ih (b_hh_n stays
        # inside the r*(...) term).
        return jnp.concatenate([b_ih[:2 * H] + b_hh[:2 * H],
                                b_ih[2 * H:]]).reshape(1, 3 * H)

    return dict(
        wxf=raw["w_ih_f"].T,                          # (E, 3H) cols [r|z|n]
        wxb=raw["w_ih_b"].T,
        whf=raw["w_hh_f"].T,                          # (H, 3H)
        whb=raw["w_hh_b"].T,
        bxf=fold_bias(raw["b_ih_f"], raw["b_hh_f"]),  # (1, 3H)
        bxb=fold_bias(raw["b_ih_b"], raw["b_hh_b"]),
        bhnf=raw["b_hh_f"][2 * H:].reshape(1, H),
        bhnb=raw["b_hh_b"][2 * H:].reshape(1, H),
        lwf=raw["lin_w"][0, :H].reshape(H, 1),
        lwb=raw["lin_w"][0, H:].reshape(H, 1),
        lb=raw["lin_b"].reshape(1, 1),
    )


def bigru_detector(x, raw, hidden_size):
    B, S, E = x.shape
    H = hidden_size
    p = _pack_params(raw, H)

    # Host-side layout plumbing (free relative to in-kernel copies):
    # time-major flat rows: row = t*B + b.
    x_tm = x.transpose(1, 0, 2).reshape(S * B, E)

    vmem = pl.BlockSpec(memory_space=pltpu.MemorySpace.VMEM)
    args = (x_tm, p["wxf"], p["bxf"], p["wxb"], p["bxb"],
            p["whf"], p["whb"], p["bhnf"], p["bhnb"],
            p["lwf"], p["lwb"], p["lb"])

    kernel = functools.partial(_bigru_kernel, B=B, S=S, H=H)
    prob_tm, rnn_tm = pl.pallas_call(
        kernel,
        out_shape=(
            jax.ShapeDtypeStruct((S * B, 1), jnp.float32),       # sigmoid(lin)
            jax.ShapeDtypeStruct((S * B, 2 * H), jnp.float32),   # rnn_output
        ),
        in_specs=[vmem] * len(args),
        out_specs=(vmem, vmem),
        scratch_shapes=[
            pltpu.VMEM((S * B, 3 * H), jnp.float32),   # fwd input projections
            pltpu.VMEM((S * B, 3 * H), jnp.float32),   # bwd input projections
            pltpu.VMEM((S * B, H), jnp.float32),       # fwd hidden states
            pltpu.VMEM((S * B, H), jnp.float32),       # bwd hidden states
        ],
    )(*args)

    # Back to batch-major PyTorch layout on the host.
    rnn = rnn_tm.reshape(S, B, 2 * H).transpose(1, 0, 2)        # (B, S, 2H)
    prob = prob_tm.reshape(S, B).transpose(1, 0)[..., None]     # (B, S, 1)
    return prob, rnn


# ----------------------------------------------------------------------------
# Pure-JAX reference (mirrors torch.nn.GRU math exactly) for verification.
# ----------------------------------------------------------------------------
def ref_bigru_detector(x, raw, H):
    B, S, E = x.shape

    def cell(x_t, h, w_ih, w_hh, b_ih, b_hh):
        gi = x_t @ w_ih.T + b_ih
        gh = h @ w_hh.T + b_hh
        r = jax.nn.sigmoid(gi[:, :H] + gh[:, :H])
        z = jax.nn.sigmoid(gi[:, H:2 * H] + gh[:, H:2 * H])
        n = jnp.tanh(gi[:, 2 * H:] + r * gh[:, 2 * H:])
        return (1.0 - z) * n + z * h

    hf = jnp.zeros((B, H), jnp.float32)
    hb = jnp.zeros((B, H), jnp.float32)
    fwd, bwd = [], [None] * S
    for t in range(S):
        hf = cell(x[:, t], hf, raw["w_ih_f"], raw["w_hh_f"],
                  raw["b_ih_f"], raw["b_hh_f"])
        fwd.append(hf)
    for t in range(S - 1, -1, -1):
        hb = cell(x[:, t], hb, raw["w_ih_b"], raw["w_hh_b"],
                  raw["b_ih_b"], raw["b_hh_b"])
        bwd[t] = hb
    rnn = jnp.concatenate([jnp.stack(fwd, axis=1), jnp.stack(bwd, axis=1)],
                          axis=-1)
    prob = jax.nn.sigmoid(rnn @ raw["lin_w"].T + raw["lin_b"])
    return prob, rnn


if __name__ == "__main__":
    B, S, E, H = 2, 8, 16, 32   # batch, seq, embedding (input_size), hidden

    key = jax.random.PRNGKey(0)
    k_x, k_p = jax.random.split(key)
    x = jax.random.normal(k_x, (B, S, E), jnp.float32)
    params = init_params(k_p, E, H)

    prob, rnn_out = bigru_detector(x, params, H)
    jax.block_until_ready((prob, rnn_out))

    prob_ref, rnn_ref = ref_bigru_detector(x, params, H)
    assert prob.shape == (B, S, 1) and rnn_out.shape == (B, S, 2 * H)
    assert jnp.allclose(rnn_out, rnn_ref, atol=2e-5, rtol=2e-5)
    assert jnp.allclose(prob, prob_ref, atol=2e-5, rtol=2e-5)

    print("KERNEL_OK")
</pallas_src>

<mosaic_0001>
module attributes {stable_mosaic.version = 11 : i64} {
  func.func @_bigru_kernel(%arg0: memref<16x16xf32, #tpu.memory_space<vmem>>, %arg1: memref<16x96xf32, #tpu.memory_space<vmem>>, %arg2: memref<1x96xf32, #tpu.memory_space<vmem>>, %arg3: memref<16x96xf32, #tpu.memory_space<vmem>>, %arg4: memref<1x96xf32, #tpu.memory_space<vmem>>, %arg5: memref<32x96xf32, #tpu.memory_space<vmem>>, %arg6: memref<32x96xf32, #tpu.memory_space<vmem>>, %arg7: memref<1x32xf32, #tpu.memory_space<vmem>>, %arg8: memref<1x32xf32, #tpu.memory_space<vmem>>, %arg9: memref<32x1xf32, #tpu.memory_space<vmem>>, %arg10: memref<32x1xf32, #tpu.memory_space<vmem>>, %arg11: memref<1x1xf32, #tpu.memory_space<vmem>>, %arg12: memref<16x1xf32, #tpu.memory_space<vmem>>, %arg13: memref<16x64xf32, #tpu.memory_space<vmem>>, %arg14: memref<16x96xf32, #tpu.memory_space<vmem>>, %arg15: memref<16x96xf32, #tpu.memory_space<vmem>>, %arg16: memref<16x32xf32, #tpu.memory_space<vmem>>, %arg17: memref<16x32xf32, #tpu.memory_space<vmem>>) attributes {dimension_semantics = [], scalar_prefetch = 0 : i64, scratch_operands = 4 : i64, tpu.core_type = #tpu.core_type<tc>} {
    %c0 = arith.constant 0 : index
    %c0_0 = arith.constant 0 : index
    %0 = vector.load %arg0[%c0, %c0_0] : memref<16x16xf32, #tpu.memory_space<vmem>>, vector<16x16xf32>
    %c0_1 = arith.constant 0 : index
    %c0_2 = arith.constant 0 : index
    %1 = vector.load %arg1[%c0_1, %c0_2] : memref<16x96xf32, #tpu.memory_space<vmem>>, vector<16x96xf32>
    %cst = arith.constant dense<0.000000e+00> : vector<16x96xf32>
    %2 = tpu.matmul %0, %1, %cst {dimension_numbers = #tpu.dot_dimension_numbers<[1], [0], [0], [1], [0, 0, 1, 1], [], []>} : vector<16x16xf32>, vector<16x96xf32>, vector<16x96xf32> -> vector<16x96xf32>
    %c0_3 = arith.constant 0 : index
    %c0_4 = arith.constant 0 : index
    %3 = vector.load %arg2[%c0_3, %c0_4] : memref<1x96xf32, #tpu.memory_space<vmem>>, vector<1x96xf32>
    %4 = vector.broadcast %3 : vector<1x96xf32> to vector<16x96xf32>
    %5 = arith.addf %2, %4 : vector<16x96xf32>
    %c0_5 = arith.constant 0 : index
    %c0_6 = arith.constant 0 : index
    %6 = vector.load %arg14[%c0_5, %c0_6] : memref<16x96xf32, #tpu.memory_space<vmem>>, vector<16x96xf32>
    tpu.vector_store %arg14[%c0_5, %c0_6], %5 {strides = array<i32>} : memref<16x96xf32, #tpu.memory_space<vmem>>, vector<16x96xf32>,
    %c0_7 = arith.constant 0 : index
    %c0_8 = arith.constant 0 : index
    %7 = vector.load %arg3[%c0_7, %c0_8] : memref<16x96xf32, #tpu.memory_space<vmem>>, vector<16x96xf32>
    %cst_9 = arith.constant dense<0.000000e+00> : vector<16x96xf32>
    %8 = tpu.matmul %0, %7, %cst_9 {dimension_numbers = #tpu.dot_dimension_numbers<[1], [0], [0], [1], [0, 0, 1, 1], [], []>} : vector<16x16xf32>, vector<16x96xf32>, vector<16x96xf32> -> vector<16x96xf32>
    %c0_10 = arith.constant 0 : index
    %c0_11 = arith.constant 0 : index
    %9 = vector.load %arg4[%c0_10, %c0_11] : memref<1x96xf32, #tpu.memory_space<vmem>>, vector<1x96xf32>
    %10 = vector.broadcast %9 : vector<1x96xf32> to vector<16x96xf32>
    %11 = arith.addf %8, %10 : vector<16x96xf32>
    %c0_12 = arith.constant 0 : index
    %c0_13 = arith.constant 0 : index
    %12 = vector.load %arg15[%c0_12, %c0_13] : memref<16x96xf32, #tpu.memory_space<vmem>>, vector<16x96xf32>
    tpu.vector_store %arg15[%c0_12, %c0_13], %11 {strides = array<i32>} : memref<16x96xf32, #tpu.memory_space<vmem>>, vector<16x96xf32>,
    %c0_14 = arith.constant 0 : index
    %c0_15 = arith.constant 0 : index
    %13 = vector.load %arg5[%c0_14, %c0_15] : memref<32x96xf32, #tpu.memory_space<vmem>>, vector<32x96xf32>
    %c0_16 = arith.constant 0 : index
    %c0_17 = arith.constant 0 : index
    %14 = vector.load %arg6[%c0_16, %c0_17] : memref<32x96xf32, #tpu.memory_space<vmem>>, vector<32x96xf32>
    %c0_18 = arith.constant 0 : index
    %c0_19 = arith.constant 0 : index
    %15 = vector.load %arg7[%c0_18, %c0_19] : memref<1x32xf32, #tpu.memory_space<vmem>>, vector<1x32xf32>
    %c0_20 = arith.constant 0 : index
    %c0_21 = arith.constant 0 : index
    %16 = vector.load %arg8[%c0_20, %c0_21] : memref<1x32xf32, #tpu.memory_space<vmem>>, vector<1x32xf32>
    %cst_22 = arith.constant 0.000000e+00 : f32
    %17 = vector.broadcast %cst_22 : f32 to vector<2x32xf32>
    %c0_i32 = arith.constant 0 : i32
    %c2_i32 = arith.constant 2 : i32
    %18 = arith.muli %c0_i32, %c2_i32 : i32
    %c7_i32 = arith.constant 7 : i32
    %19 = arith.subi %c7_i32, %c0_i32 : i32
    %c2_i32_23 = arith.constant 2 : i32
    %20 = arith.muli %19, %c2_i32_23 : i32
    %21 = arith.index_cast %18 : i32 to index
    %c0_24 = arith.constant 0 : index
    %22 = vector.load %arg14[%21, %c0_24] : memref<16x96xf32, #tpu.memory_space<vmem>>, vector<2x96xf32>
    %23 = arith.index_cast %20 : i32 to index
    %c0_25 = arith.constant 0 : index
    %24 = vector.load %arg15[%23, %c0_25] : memref<16x96xf32, #tpu.memory_space<vmem>>, vector<2x96xf32>
    %cst_26 = arith.constant dense<0.000000e+00> : vector<2x96xf32>
    %25 = tpu.matmul %17, %13, %cst_26 {dimension_numbers = #tpu.dot_dimension_numbers<[1], [0], [0], [1], [0, 0, 1, 1], [], []>} : vector<2x32xf32>, vector<32x96xf32>, vector<2x96xf32> -> vector<2x96xf32>
    %cst_27 = arith.constant dense<0.000000e+00> : vector<2x96xf32>
    %26 = tpu.matmul %17, %14, %cst_27 {dimension_numbers = #tpu.dot_dimension_numbers<[1], [0], [0], [1], [0, 0, 1, 1], [], []>} : vector<2x32xf32>, vector<32x96xf32>, vector<2x96xf32> -> vector<2x96xf32>
    %27 = vector.extract_strided_slice %22 {offsets = [0, 0], sizes = [2, 32], strides = [1, 1]} : vector<2x96xf32> to vector<2x32xf32>
    %28 = vector.extract_strided_slice %25 {offsets = [0, 0], sizes = [2, 32], strides = [1, 1]} : vector<2x96xf32> to vector<2x32xf32>
    %29 = arith.addf %27, %28 : vector<2x32xf32>
    %30 = arith.negf %29 : vector<2x32xf32>
    %31 = math.exp %30 : vector<2x32xf32>
    %cst_28 = arith.constant 1.000000e+00 : f32
    %32 = vector.broadcast %cst_28 : f32 to vector<2x32xf32>
    %33 = arith.addf %32, %31 : vector<2x32xf32>
    %34 = arith.divf %32, %33 : vector<2x32xf32>
    %35 = vector.extract_strided_slice %22 {offsets = [0, 32], sizes = [2, 32], strides = [1, 1]} : vector<2x96xf32> to vector<2x32xf32>
    %36 = vector.extract_strided_slice %25 {offsets = [0, 32], sizes = [2, 32], strides = [1, 1]} : vector<2x96xf32> to vector<2x32xf32>
    %37 = arith.addf %35, %36 : vector<2x32xf32>
    %38 = arith.negf %37 : vector<2x32xf32>
    %39 = math.exp %38 : vector<2x32xf32>
    %cst_29 = arith.constant 1.000000e+00 : f32
    %40 = vector.broadcast %cst_29 : f32 to vector<2x32xf32>
    %41 = arith.addf %40, %39 : vector<2x32xf32>
    %42 = arith.divf %40, %41 : vector<2x32xf32>
    %43 = vector.extract_strided_slice %22 {offsets = [0, 64], sizes = [2, 32], strides = [1, 1]} : vector<2x96xf32> to vector<2x32xf32>
    %44 = vector.extract_strided_slice %25 {offsets = [0, 64], sizes = [2, 32], strides = [1, 1]} : vector<2x96xf32> to vector<2x32xf32>
    %45 = vector.broadcast %15 : vector<1x32xf32> to vector<2x32xf32>
    %46 = arith.addf %44, %45 : vector<2x32xf32>
    %47 = arith.mulf %34, %46 : vector<2x32xf32>
    %48 = arith.addf %43, %47 : vector<2x32xf32>
    %49 = math.tanh %48 : vector<2x32xf32>
    %cst_30 = arith.constant 1.000000e+00 : f32
    %50 = vector.broadcast %cst_30 : f32 to vector<2x32xf32>
    %51 = arith.subf %50, %42 : vector<2x32xf32>
    %52 = arith.mulf %51, %49 : vector<2x32xf32>
    %53 = arith.mulf %42, %17 : vector<2x32xf32>
    %54 = arith.addf %52, %53 : vector<2x32xf32>
    %55 = vector.extract_strided_slice %24 {offsets = [0, 0], sizes = [2, 32], strides = [1, 1]} : vector<2x96xf32> to vector<2x32xf32>
    %56 = vector.extract_strided_slice %26 {offsets = [0, 0], sizes = [2, 32], strides = [1, 1]} : vector<2x96xf32> to vector<2x32xf32>
    %57 = arith.addf %55, %56 : vector<2x32xf32>
    %58 = arith.negf %57 : vector<2x32xf32>
    %59 = math.exp %58 : vector<2x32xf32>
    %cst_31 = arith.constant 1.000000e+00 : f32
    %60 = vector.broadcast %cst_31 : f32 to vector<2x32xf32>
    %61 = arith.addf %60, %59 : vector<2x32xf32>
    %62 = arith.divf %60, %61 : vector<2x32xf32>
    %63 = vector.extract_strided_slice %24 {offsets = [0, 32], sizes = [2, 32], strides = [1, 1]} : vector<2x96xf32> to vector<2x32xf32>
    %64 = vector.extract_strided_slice %26 {offsets = [0, 32], sizes = [2, 32], strides = [1, 1]} : vector<2x96xf32> to vector<2x32xf32>
    %65 = arith.addf %63, %64 : vector<2x32xf32>
    %66 = arith.negf %65 : vector<2x32xf32>
    %67 = math.exp %66 : vector<2x32xf32>
    %cst_32 = arith.constant 1.000000e+00 : f32
    %68 = vector.broadcast %cst_32 : f32 to vector<2x32xf32>
    %69 = arith.addf %68, %67 : vector<2x32xf32>
    %70 = arith.divf %68, %69 : vector<2x32xf32>
    %71 = vector.extract_strided_slice %24 {offsets = [0, 64], sizes = [2, 32], strides = [1, 1]} : vector<2x96xf32> to vector<2x32xf32>
    %72 = vector.extract_strided_slice %26 {offsets = [0, 64], sizes = [2, 32], strides = [1, 1]} : vector<2x96xf32> to vector<2x32xf32>
    %73 = vector.broadcast %16 : vector<1x32xf32> to vector<2x32xf32>
    %74 = arith.addf %72, %73 : vector<2x32xf32>
    %75 = arith.mulf %62, %74 : vector<2x32xf32>
    %76 = arith.addf %71, %75 : vector<2x32xf32>
    %77 = math.tanh %76 : vector<2x32xf32>
    %cst_33 = arith.constant 1.000000e+00 : f32
    %78 = vector.broadcast %cst_33 : f32 to vector<2x32xf32>
    %79 = arith.subf %78, %70 : vector<2x32xf32>
    %80 = arith.mulf %79, %77 : vector<2x32xf32>
    %81 = arith.mulf %70, %17 : vector<2x32xf32>
    %82 = arith.addf %80, %81 : vector<2x32xf32>
    %83 = arith.index_cast %18 : i32 to index
    %c0_34 = arith.constant 0 : index
    %84 = vector.load %arg16[%83, %c0_34] : memref<16x32xf32, #tpu.memory_space<vmem>>, vector<2x32xf32>
    tpu.vector_store %arg16[%83, %c0_34], %54 {strides = array<i32>} : memref<16x32xf32, #tpu.memory_space<vmem>>, vector<2x32xf32>,
    %85 = arith.index_cast %20 : i32 to index
    %c0_35 = arith.constant 0 : index
    %86 = vector.load %arg17[%85, %c0_35] : memref<16x32xf32, #tpu.memory_space<vmem>>, vector<2x32xf32>
    tpu.vector_store %arg17[%85, %c0_35], %82 {strides = array<i32>} : memref<16x32xf32, #tpu.memory_space<vmem>>, vector<2x32xf32>,
    %c1_i32 = arith.constant 1 : i32
    %c2_i32_36 = arith.constant 2 : i32
    %87 = arith.muli %c1_i32, %c2_i32_36 : i32
    %c7_i32_37 = arith.constant 7 : i32
    %88 = arith.subi %c7_i32_37, %c1_i32 : i32
    %c2_i32_38 = arith.constant 2 : i32
    %89 = arith.muli %88, %c2_i32_38 : i32
    %90 = arith.index_cast %87 : i32 to index
    %c0_39 = arith.constant 0 : index
    %91 = vector.load %arg14[%90, %c0_39] : memref<16x96xf32, #tpu.memory_space<vmem>>, vector<2x96xf32>
    %92 = arith.index_cast %89 : i32 to index
    %c0_40 = arith.constant 0 : index
    %93 = vector.load %arg15[%92, %c0_40] : memref<16x96xf32, #tpu.memory_space<vmem>>, vector<2x96xf32>
    %cst_41 = arith.constant dense<0.000000e+00> : vector<2x96xf32>
    %94 = tpu.matmul %54, %13, %cst_41 {dimension_numbers = #tpu.dot_dimension_numbers<[1], [0], [0], [1], [0, 0, 1, 1], [], []>} : vector<2x32xf32>, vector<32x96xf32>, vector<2x96xf32> -> vector<2x96xf32>
    %cst_42 = arith.constant dense<0.000000e+00> : vector<2x96xf32>
    %95 = tpu.matmul %82, %14, %cst_42 {dimension_numbers = #tpu.dot_dimension_numbers<[1], [0], [0], [1], [0, 0, 1, 1], [], []>} : vector<2x32xf32>, vector<32x96xf32>, vector<2x96xf32> -> vector<2x96xf32>
    %96 = vector.extract_strided_slice %91 {offsets = [0, 0], sizes = [2, 32], strides = [1, 1]} : vector<2x96xf32> to vector<2x32xf32>
    %97 = vector.extract_strided_slice %94 {offsets = [0, 0], sizes = [2, 32], strides = [1, 1]} : vector<2x96xf32> to vector<2x32xf32>
    %98 = arith.addf %96, %97 : vector<2x32xf32>
    %99 = arith.negf %98 : vector<2x32xf32>
    %100 = math.exp %99 : vector<2x32xf32>
    %cst_43 = arith.constant 1.000000e+00 : f32
    %101 = vector.broadcast %cst_43 : f32 to vector<2x32xf32>
    %102 = arith.addf %101, %100 : vector<2x32xf32>
    %103 = arith.divf %101, %102 : vector<2x32xf32>
    %104 = vector.extract_strided_slice %91 {offsets = [0, 32], sizes = [2, 32], strides = [1, 1]} : vector<2x96xf32> to vector<2x32xf32>
    %105 = vector.extract_strided_slice %94 {offsets = [0, 32], sizes = [2, 32], strides = [1, 1]} : vector<2x96xf32> to vector<2x32xf32>
    %106 = arith.addf %104, %105 : vector<2x32xf32>
    %107 = arith.negf %106 : vector<2x32xf32>
    %108 = math.exp %107 : vector<2x32xf32>
    %cst_44 = arith.constant 1.000000e+00 : f32
    %109 = vector.broadcast %cst_44 : f32 to vector<2x32xf32>
    %110 = arith.addf %109, %108 : vector<2x32xf32>
    %111 = arith.divf %109, %110 : vector<2x32xf32>
    %112 = vector.extract_strided_slice %91 {offsets = [0, 64], sizes = [2, 32], strides = [1, 1]} : vector<2x96xf32> to vector<2x32xf32>
    %113 = vector.extract_strided_slice %94 {offsets = [0, 64], sizes = [2, 32], strides = [1, 1]} : vector<2x96xf32> to vector<2x32xf32>
    %114 = vector.broadcast %15 : vector<1x32xf32> to vector<2x32xf32>
    %115 = arith.addf %113, %114 : vector<2x32xf32>
    %116 = arith.mulf %103, %115 : vector<2x32xf32>
    %117 = arith.addf %112, %116 : vector<2x32xf32>
    %118 = math.tanh %117 : vector<2x32xf32>
    %cst_45 = arith.constant 1.000000e+00 : f32
    %119 = vector.broadcast %cst_45 : f32 to vector<2x32xf32>
    %120 = arith.subf %119, %111 : vector<2x32xf32>
    %121 = arith.mulf %120, %118 : vector<2x32xf32>
    %122 = arith.mulf %111, %54 : vector<2x32xf32>
    %123 = arith.addf %121, %122 : vector<2x32xf32>
    %124 = vector.extract_strided_slice %93 {offsets = [0, 0], sizes = [2, 32], strides = [1, 1]} : vector<2x96xf32> to vector<2x32xf32>
    %125 = vector.extract_strided_slice %95 {offsets = [0, 0], sizes = [2, 32], strides = [1, 1]} : vector<2x96xf32> to vector<2x32xf32>
    %126 = arith.addf %124, %125 : vector<2x32xf32>
    %127 = arith.negf %126 : vector<2x32xf32>
    %128 = math.exp %127 : vector<2x32xf32>
    %cst_46 = arith.constant 1.000000e+00 : f32
    %129 = vector.broadcast %cst_46 : f32 to vector<2x32xf32>
    %130 = arith.addf %129, %128 : vector<2x32xf32>
    %131 = arith.divf %129, %130 : vector<2x32xf32>
    %132 = vector.extract_strided_slice %93 {offsets = [0, 32], sizes = [2, 32], strides = [1, 1]} : vector<2x96xf32> to vector<2x32xf32>
    %133 = vector.extract_strided_slice %95 {offsets = [0, 32], sizes = [2, 32], strides = [1, 1]} : vector<2x96xf32> to vector<2x32xf32>
    %134 = arith.addf %132, %133 : vector<2x32xf32>
    %135 = arith.negf %134 : vector<2x32xf32>
    %136 = math.exp %135 : vector<2x32xf32>
    %cst_47 = arith.constant 1.000000e+00 : f32
    %137 = vector.broadcast %cst_47 : f32 to vector<2x32xf32>
    %138 = arith.addf %137, %136 : vector<2x32xf32>
    %139 = arith.divf %137, %138 : vector<2x32xf32>
    %140 = vector.extract_strided_slice %93 {offsets = [0, 64], sizes = [2, 32], strides = [1, 1]} : vector<2x96xf32> to vector<2x32xf32>
    %141 = vector.extract_strided_slice %95 {offsets = [0, 64], sizes = [2, 32], strides = [1, 1]} : vector<2x96xf32> to vector<2x32xf32>
    %142 = vector.broadcast %16 : vector<1x32xf32> to vector<2x32xf32>
    %143 = arith.addf %141, %142 : vector<2x32xf32>
    %144 = arith.mulf %131, %143 : vector<2x32xf32>
    %145 = arith.addf %140, %144 : vector<2x32xf32>
    %146 = math.tanh %145 : vector<2x32xf32>
    %cst_48 = arith.constant 1.000000e+00 : f32
    %147 = vector.broadcast %cst_48 : f32 to vector<2x32xf32>
    %148 = arith.subf %147, %139 : vector<2x32xf32>
    %149 = arith.mulf %148, %146 : vector<2x32xf32>
    %150 = arith.mulf %139, %82 : vector<2x32xf32>
    %151 = arith.addf %149, %150 : vector<2x32xf32>
    %152 = arith.index_cast %87 : i32 to index
    %c0_49 = arith.constant 0 : index
    %153 = vector.load %arg16[%152, %c0_49] : memref<16x32xf32, #tpu.memory_space<vmem>>, vector<2x32xf32>
    tpu.vector_store %arg16[%152, %c0_49], %123 {strides = array<i32>} : memref<16x32xf32, #tpu.memory_space<vmem>>, vector<2x32xf32>,
    %154 = arith.index_cast %89 : i32 to index
    %c0_50 = arith.constant 0 : index
    %155 = vector.load %arg17[%154, %c0_50] : memref<16x32xf32, #tpu.memory_space<vmem>>, vector<2x32xf32>
    tpu.vector_store %arg17[%154, %c0_50], %151 {strides = array<i32>} : memref<16x32xf32, #tpu.memory_space<vmem>>, vector<2x32xf32>,
    %c2_i32_51 = arith.constant 2 : i32
    %c2_i32_52 = arith.constant 2 : i32
    %156 = arith.muli %c2_i32_51, %c2_i32_52 : i32
    %c7_i32_53 = arith.constant 7 : i32
    %157 = arith.subi %c7_i32_53, %c2_i32_51 : i32
    %c2_i32_54 = arith.constant 2 : i32
    %158 = arith.muli %157, %c2_i32_54 : i32
    %159 = arith.index_cast %156 : i32 to index
    %c0_55 = arith.constant 0 : index
    %160 = vector.load %arg14[%159, %c0_55] : memref<16x96xf32, #tpu.memory_space<vmem>>, vector<2x96xf32>
    %161 = arith.index_cast %158 : i32 to index
    %c0_56 = arith.constant 0 : index
    %162 = vector.load %arg15[%161, %c0_56] : memref<16x96xf32, #tpu.memory_space<vmem>>, vector<2x96xf32>
    %cst_57 = arith.constant dense<0.000000e+00> : vector<2x96xf32>
    %163 = tpu.matmul %123, %13, %cst_57 {dimension_numbers = #tpu.dot_dimension_numbers<[1], [0], [0], [1], [0, 0, 1, 1], [], []>} : vector<2x32xf32>, vector<32x96xf32>, vector<2x96xf32> -> vector<2x96xf32>
    %cst_58 = arith.constant dense<0.000000e+00> : vector<2x96xf32>
    %164 = tpu.matmul %151, %14, %cst_58 {dimension_numbers = #tpu.dot_dimension_numbers<[1], [0], [0], [1], [0, 0, 1, 1], [], []>} : vector<2x32xf32>, vector<32x96xf32>, vector<2x96xf32> -> vector<2x96xf32>
    %165 = vector.extract_strided_slice %160 {offsets = [0, 0], sizes = [2, 32], strides = [1, 1]} : vector<2x96xf32> to vector<2x32xf32>
    %166 = vector.extract_strided_slice %163 {offsets = [0, 0], sizes = [2, 32], strides = [1, 1]} : vector<2x96xf32> to vector<2x32xf32>
    %167 = arith.addf %165, %166 : vector<2x32xf32>
    %168 = arith.negf %167 : vector<2x32xf32>
    %169 = math.exp %168 : vector<2x32xf32>
    %cst_59 = arith.constant 1.000000e+00 : f32
    %170 = vector.broadcast %cst_59 : f32 to vector<2x32xf32>
    %171 = arith.addf %170, %169 : vector<2x32xf32>
    %172 = arith.divf %170, %171 : vector<2x32xf32>
    %173 = vector.extract_strided_slice %160 {offsets = [0, 32], sizes = [2, 32], strides = [1, 1]} : vector<2x96xf32> to vector<2x32xf32>
    %174 = vector.extract_strided_slice %163 {offsets = [0, 32], sizes = [2, 32], strides = [1, 1]} : vector<2x96xf32> to vector<2x32xf32>
    %175 = arith.addf %173, %174 : vector<2x32xf32>
    %176 = arith.negf %175 : vector<2x32xf32>
    %177 = math.exp %176 : vector<2x32xf32>
    %cst_60 = arith.constant 1.000000e+00 : f32
    %178 = vector.broadcast %cst_60 : f32 to vector<2x32xf32>
    %179 = arith.addf %178, %177 : vector<2x32xf32>
    %180 = arith.divf %178, %179 : vector<2x32xf32>
    %181 = vector.extract_strided_slice %160 {offsets = [0, 64], sizes = [2, 32], strides = [1, 1]} : vector<2x96xf32> to vector<2x32xf32>
    %182 = vector.extract_strided_slice %163 {offsets = [0, 64], sizes = [2, 32], strides = [1, 1]} : vector<2x96xf32> to vector<2x32xf32>
    %183 = vector.broadcast %15 : vector<1x32xf32> to vector<2x32xf32>
    %184 = arith.addf %182, %183 : vector<2x32xf32>
    %185 = arith.mulf %172, %184 : vector<2x32xf32>
    %186 = arith.addf %181, %185 : vector<2x32xf32>
    %187 = math.tanh %186 : vector<2x32xf32>
    %cst_61 = arith.constant 1.000000e+00 : f32
    %188 = vector.broadcast %cst_61 : f32 to vector<2x32xf32>
    %189 = arith.subf %188, %180 : vector<2x32xf32>
    %190 = arith.mulf %189, %187 : vector<2x32xf32>
    %191 = arith.mulf %180, %123 : vector<2x32xf32>
    %192 = arith.addf %190, %191 : vector<2x32xf32>
    %193 = vector.extract_strided_slice %162 {offsets = [0, 0], sizes = [2, 32], strides = [1, 1]} : vector<2x96xf32> to vector<2x32xf32>
    %194 = vector.extract_strided_slice %164 {offsets = [0, 0], sizes = [2, 32], strides = [1, 1]} : vector<2x96xf32> to vector<2x32xf32>
    %195 = arith.addf %193, %194 : vector<2x32xf32>
    %196 = arith.negf %195 : vector<2x32xf32>
    %197 = math.exp %196 : vector<2x32xf32>
    %cst_62 = arith.constant 1.000000e+00 : f32
    %198 = vector.broadcast %cst_62 : f32 to vector<2x32xf32>
    %199 = arith.addf %198, %197 : vector<2x32xf32>
    %200 = arith.divf %198, %199 : vector<2x32xf32>
    %201 = vector.extract_strided_slice %162 {offsets = [0, 32], sizes = [2, 32], strides = [1, 1]} : vector<2x96xf32> to vector<2x32xf32>
    %202 = vector.extract_strided_slice %164 {offsets = [0, 32], sizes = [2, 32], strides = [1, 1]} : vector<2x96xf32> to vector<2x32xf32>
    %203 = arith.addf %201, %202 : vector<2x32xf32>
    %204 = arith.negf %203 : vector<2x32xf32>
    %205 = math.exp %204 : vector<2x32xf32>
    %cst_63 = arith.constant 1.000000e+00 : f32
    %206 = vector.broadcast %cst_63 : f32 to vector<2x32xf32>
    %207 = arith.addf %206, %205 : vector<2x32xf32>
    %208 = arith.divf %206, %207 : vector<2x32xf32>
    %209 = vector.extract_strided_slice %162 {offsets = [0, 64], sizes = [2, 32], strides = [1, 1]} : vector<2x96xf32> to vector<2x32xf32>
    %210 = vector.extract_strided_slice %164 {offsets = [0, 64], sizes = [2, 32], strides = [1, 1]} : vector<2x96xf32> to vector<2x32xf32>
    %211 = vector.broadcast %16 : vector<1x32xf32> to vector<2x32xf32>
    %212 = arith.addf %210, %211 : vector<2x32xf32>
    %213 = arith.mulf %200, %212 : vector<2x32xf32>
    %214 = arith.addf %209, %213 : vector<2x32xf32>
    %215 = math.tanh %214 : vector<2x32xf32>
    %cst_64 = arith.constant 1.000000e+00 : f32
    %216 = vector.broadcast %cst_64 : f32 to vector<2x32xf32>
    %217 = arith.subf %216, %208 : vector<2x32xf32>
    %218 = arith.mulf %217, %215 : vector<2x32xf32>
    %219 = arith.mulf %208, %151 : vector<2x32xf32>
    %220 = arith.addf %218, %219 : vector<2x32xf32>
    %221 = arith.index_cast %156 : i32 to index
    %c0_65 = arith.constant 0 : index
    %222 = vector.load %arg16[%221, %c0_65] : memref<16x32xf32, #tpu.memory_space<vmem>>, vector<2x32xf32>
    tpu.vector_store %arg16[%221, %c0_65], %192 {strides = array<i32>} : memref<16x32xf32, #tpu.memory_space<vmem>>, vector<2x32xf32>,
    %223 = arith.index_cast %158 : i32 to index
    %c0_66 = arith.constant 0 : index
    %224 = vector.load %arg17[%223, %c0_66] : memref<16x32xf32, #tpu.memory_space<vmem>>, vector<2x32xf32>
    tpu.vector_store %arg17[%223, %c0_66], %220 {strides = array<i32>} : memref<16x32xf32, #tpu.memory_space<vmem>>, vector<2x32xf32>,
    %c3_i32 = arith.constant 3 : i32
    %c2_i32_67 = arith.constant 2 : i32
    %225 = arith.muli %c3_i32, %c2_i32_67 : i32
    %c7_i32_68 = arith.constant 7 : i32
    %226 = arith.subi %c7_i32_68, %c3_i32 : i32
    %c2_i32_69 = arith.constant 2 : i32
    %227 = arith.muli %226, %c2_i32_69 : i32
    %228 = arith.index_cast %225 : i32 to index
    %c0_70 = arith.constant 0 : index
    %229 = vector.load %arg14[%228, %c0_70] : memref<16x96xf32, #tpu.memory_space<vmem>>, vector<2x96xf32>
    %230 = arith.index_cast %227 : i32 to index
    %c0_71 = arith.constant 0 : index
    %231 = vector.load %arg15[%230, %c0_71] : memref<16x96xf32, #tpu.memory_space<vmem>>, vector<2x96xf32>
    %cst_72 = arith.constant dense<0.000000e+00> : vector<2x96xf32>
    %232 = tpu.matmul %192, %13, %cst_72 {dimension_numbers = #tpu.dot_dimension_numbers<[1], [0], [0], [1], [0, 0, 1, 1], [], []>} : vector<2x32xf32>, vector<32x96xf32>, vector<2x96xf32> -> vector<2x96xf32>
    %cst_73 = arith.constant dense<0.000000e+00> : vector<2x96xf32>
    %233 = tpu.matmul %220, %14, %cst_73 {dimension_numbers = #tpu.dot_dimension_numbers<[1], [0], [0], [1], [0, 0, 1, 1], [], []>} : vector<2x32xf32>, vector<32x96xf32>, vector<2x96xf32> -> vector<2x96xf32>
    %234 = vector.extract_strided_slice %229 {offsets = [0, 0], sizes = [2, 32], strides = [1, 1]} : vector<2x96xf32> to vector<2x32xf32>
    %235 = vector.extract_strided_slice %232 {offsets = [0, 0], sizes = [2, 32], strides = [1, 1]} : vector<2x96xf32> to vector<2x32xf32>
    %236 = arith.addf %234, %235 : vector<2x32xf32>
    %237 = arith.negf %236 : vector<2x32xf32>
    %238 = math.exp %237 : vector<2x32xf32>
    %cst_74 = arith.constant 1.000000e+00 : f32
    %239 = vector.broadcast %cst_74 : f32 to vector<2x32xf32>
    %240 = arith.addf %239, %238 : vector<2x32xf32>
    %241 = arith.divf %239, %240 : vector<2x32xf32>
    %242 = vector.extract_strided_slice %229 {offsets = [0, 32], sizes = [2, 32], strides = [1, 1]} : vector<2x96xf32> to vector<2x32xf32>
    %243 = vector.extract_strided_slice %232 {offsets = [0, 32], sizes = [2, 32], strides = [1, 1]} : vector<2x96xf32> to vector<2x32xf32>
    %244 = arith.addf %242, %243 : vector<2x32xf32>
    %245 = arith.negf %244 : vector<2x32xf32>
    %246 = math.exp %245 : vector<2x32xf32>
    %cst_75 = arith.constant 1.000000e+00 : f32
    %247 = vector.broadcast %cst_75 : f32 to vector<2x32xf32>
    %248 = arith.addf %247, %246 : vector<2x32xf32>
    %249 = arith.divf %247, %248 : vector<2x32xf32>
    %250 = vector.extract_strided_slice %229 {offsets = [0, 64], sizes = [2, 32], strides = [1, 1]} : vector<2x96xf32> to vector<2x32xf32>
    %251 = vector.extract_strided_slice %232 {offsets = [0, 64], sizes = [2, 32], strides = [1, 1]} : vector<2x96xf32> to vector<2x32xf32>
    %252 = vector.broadcast %15 : vector<1x32xf32> to vector<2x32xf32>
    %253 = arith.addf %251, %252 : vector<2x32xf32>
    %254 = arith.mulf %241, %253 : vector<2x32xf32>
    %255 = arith.addf %250, %254 : vector<2x32xf32>
    %256 = math.tanh %255 : vector<2x32xf32>
    %cst_76 = arith.constant 1.000000e+00 : f32
    %257 = vector.broadcast %cst_76 : f32 to vector<2x32xf32>
    %258 = arith.subf %257, %249 : vector<2x32xf32>
    %259 = arith.mulf %258, %256 : vector<2x32xf32>
    %260 = arith.mulf %249, %192 : vector<2x32xf32>
    %261 = arith.addf %259, %260 : vector<2x32xf32>
    %262 = vector.extract_strided_slice %231 {offsets = [0, 0], sizes = [2, 32], strides = [1, 1]} : vector<2x96xf32> to vector<2x32xf32>
    %263 = vector.extract_strided_slice %233 {offsets = [0, 0], sizes = [2, 32], strides = [1, 1]} : vector<2x96xf32> to vector<2x32xf32>
    %264 = arith.addf %262, %263 : vector<2x32xf32>
    %265 = arith.negf %264 : vector<2x32xf32>
    %266 = math.exp %265 : vector<2x32xf32>
    %cst_77 = arith.constant 1.000000e+00 : f32
    %267 = vector.broadcast %cst_77 : f32 to vector<2x32xf32>
    %268 = arith.addf %267, %266 : vector<2x32xf32>
    %269 = arith.divf %267, %268 : vector<2x32xf32>
    %270 = vector.extract_strided_slice %231 {offsets = [0, 32], sizes = [2, 32], strides = [1, 1]} : vector<2x96xf32> to vector<2x32xf32>
    %271 = vector.extract_strided_slice %233 {offsets = [0, 32], sizes = [2, 32], strides = [1, 1]} : vector<2x96xf32> to vector<2x32xf32>
    %272 = arith.addf %270, %271 : vector<2x32xf32>
    %273 = arith.negf %272 : vector<2x32xf32>
    %274 = math.exp %273 : vector<2x32xf32>
    %cst_78 = arith.constant 1.000000e+00 : f32
    %275 = vector.broadcast %cst_78 : f32 to vector<2x32xf32>
    %276 = arith.addf %275, %274 : vector<2x32xf32>
    %277 = arith.divf %275, %276 : vector<2x32xf32>
    %278 = vector.extract_strided_slice %231 {offsets = [0, 64], sizes = [2, 32], strides = [1, 1]} : vector<2x96xf32> to vector<2x32xf32>
    %279 = vector.extract_strided_slice %233 {offsets = [0, 64], sizes = [2, 32], strides = [1, 1]} : vector<2x96xf32> to vector<2x32xf32>
    %280 = vector.broadcast %16 : vector<1x32xf32> to vector<2x32xf32>
    %281 = arith.addf %279, %280 : vector<2x32xf32>
    %282 = arith.mulf %269, %281 : vector<2x32xf32>
    %283 = arith.addf %278, %282 : vector<2x32xf32>
    %284 = math.tanh %283 : vector<2x32xf32>
    %cst_79 = arith.constant 1.000000e+00 : f32
    %285 = vector.broadcast %cst_79 : f32 to vector<2x32xf32>
    %286 = arith.subf %285, %277 : vector<2x32xf32>
    %287 = arith.mulf %286, %284 : vector<2x32xf32>
    %288 = arith.mulf %277, %220 : vector<2x32xf32>
    %289 = arith.addf %287, %288 : vector<2x32xf32>
    %290 = arith.index_cast %225 : i32 to index
    %c0_80 = arith.constant 0 : index
    %291 = vector.load %arg16[%290, %c0_80] : memref<16x32xf32, #tpu.memory_space<vmem>>, vector<2x32xf32>
    tpu.vector_store %arg16[%290, %c0_80], %261 {strides = array<i32>} : memref<16x32xf32, #tpu.memory_space<vmem>>, vector<2x32xf32>,
    %292 = arith.index_cast %227 : i32 to index
    %c0_81 = arith.constant 0 : index
    %293 = vector.load %arg17[%292, %c0_81] : memref<16x32xf32, #tpu.memory_space<vmem>>, vector<2x32xf32>
    tpu.vector_store %arg17[%292, %c0_81], %289 {strides = array<i32>} : memref<16x32xf32, #tpu.memory_space<vmem>>, vector<2x32xf32>,
    %c4_i32 = arith.constant 4 : i32
    %c2_i32_82 = arith.constant 2 : i32
    %294 = arith.muli %c4_i32, %c2_i32_82 : i32
    %c7_i32_83 = arith.constant 7 : i32
    %295 = arith.subi %c7_i32_83, %c4_i32 : i32
    %c2_i32_84 = arith.constant 2 : i32
    %296 = arith.muli %295, %c2_i32_84 : i32
    %297 = arith.index_cast %294 : i32 to index
    %c0_85 = arith.constant 0 : index
    %298 = vector.load %arg14[%297, %c0_85] : memref<16x96xf32, #tpu.memory_space<vmem>>, vector<2x96xf32>
    %299 = arith.index_cast %296 : i32 to index
    %c0_86 = arith.constant 0 : index
    %300 = vector.load %arg15[%299, %c0_86] : memref<16x96xf32, #tpu.memory_space<vmem>>, vector<2x96xf32>
    %cst_87 = arith.constant dense<0.000000e+00> : vector<2x96xf32>
    %301 = tpu.matmul %261, %13, %cst_87 {dimension_numbers = #tpu.dot_dimension_numbers<[1], [0], [0], [1], [0, 0, 1, 1], [], []>} : vector<2x32xf32>, vector<32x96xf32>, vector<2x96xf32> -> vector<2x96xf32>
    %cst_88 = arith.constant dense<0.000000e+00> : vector<2x96xf32>
    %302 = tpu.matmul %289, %14, %cst_88 {dimension_numbers = #tpu.dot_dimension_numbers<[1], [0], [0], [1], [0, 0, 1, 1], [], []>} : vector<2x32xf32>, vector<32x96xf32>, vector<2x96xf32> -> vector<2x96xf32>
    %303 = vector.extract_strided_slice %298 {offsets = [0, 0], sizes = [2, 32], strides = [1, 1]} : vector<2x96xf32> to vector<2x32xf32>
    %304 = vector.extract_strided_slice %301 {offsets = [0, 0], sizes = [2, 32], strides = [1, 1]} : vector<2x96xf32> to vector<2x32xf32>
    %305 = arith.addf %303, %304 : vector<2x32xf32>
    %306 = arith.negf %305 : vector<2x32xf32>
    %307 = math.exp %306 : vector<2x32xf32>
    %cst_89 = arith.constant 1.000000e+00 : f32
    %308 = vector.broadcast %cst_89 : f32 to vector<2x32xf32>
    %309 = arith.addf %308, %307 : vector<2x32xf32>
    %310 = arith.divf %308, %309 : vector<2x32xf32>
    %311 = vector.extract_strided_slice %298 {offsets = [0, 32], sizes = [2, 32], strides = [1, 1]} : vector<2x96xf32> to vector<2x32xf32>
    %312 = vector.extract_strided_slice %301 {offsets = [0, 32], sizes = [2, 32], strides = [1, 1]} : vector<2x96xf32> to vector<2x32xf32>
    %313 = arith.addf %311, %312 : vector<2x32xf32>
    %314 = arith.negf %313 : vector<2x32xf32>
    %315 = math.exp %314 : vector<2x32xf32>
    %cst_90 = arith.constant 1.000000e+00 : f32
    %316 = vector.broadcast %cst_90 : f32 to vector<2x32xf32>
    %317 = arith.addf %316, %315 : vector<2x32xf32>
    %318 = arith.divf %316, %317 : vector<2x32xf32>
    %319 = vector.extract_strided_slice %298 {offsets = [0, 64], sizes = [2, 32], strides = [1, 1]} : vector<2x96xf32> to vector<2x32xf32>
    %320 = vector.extract_strided_slice %301 {offsets = [0, 64], sizes = [2, 32], strides = [1, 1]} : vector<2x96xf32> to vector<2x32xf32>
    %321 = vector.broadcast %15 : vector<1x32xf32> to vector<2x32xf32>
    %322 = arith.addf %320, %321 : vector<2x32xf32>
    %323 = arith.mulf %310, %322 : vector<2x32xf32>
    %324 = arith.addf %319, %323 : vector<2x32xf32>
    %325 = math.tanh %324 : vector<2x32xf32>
    %cst_91 = arith.constant 1.000000e+00 : f32
    %326 = vector.broadcast %cst_91 : f32 to vector<2x32xf32>
    %327 = arith.subf %326, %318 : vector<2x32xf32>
    %328 = arith.mulf %327, %325 : vector<2x32xf32>
    %329 = arith.mulf %318, %261 : vector<2x32xf32>
    %330 = arith.addf %328, %329 : vector<2x32xf32>
    %331 = vector.extract_strided_slice %300 {offsets = [0, 0], sizes = [2, 32], strides = [1, 1]} : vector<2x96xf32> to vector<2x32xf32>
    %332 = vector.extract_strided_slice %302 {offsets = [0, 0], sizes = [2, 32], strides = [1, 1]} : vector<2x96xf32> to vector<2x32xf32>
    %333 = arith.addf %331, %332 : vector<2x32xf32>
    %334 = arith.negf %333 : vector<2x32xf32>
    %335 = math.exp %334 : vector<2x32xf32>
    %cst_92 = arith.constant 1.000000e+00 : f32
    %336 = vector.broadcast %cst_92 : f32 to vector<2x32xf32>
    %337 = arith.addf %336, %335 : vector<2x32xf32>
    %338 = arith.divf %336, %337 : vector<2x32xf32>
    %339 = vector.extract_strided_slice %300 {offsets = [0, 32], sizes = [2, 32], strides = [1, 1]} : vector<2x96xf32> to vector<2x32xf32>
    %340 = vector.extract_strided_slice %302 {offsets = [0, 32], sizes = [2, 32], strides = [1, 1]} : vector<2x96xf32> to vector<2x32xf32>
    %341 = arith.addf %339, %340 : vector<2x32xf32>
    %342 = arith.negf %341 : vector<2x32xf32>
    %343 = math.exp %342 : vector<2x32xf32>
    %cst_93 = arith.constant 1.000000e+00 : f32
    %344 = vector.broadcast %cst_93 : f32 to vector<2x32xf32>
    %345 = arith.addf %344, %343 : vector<2x32xf32>
    %346 = arith.divf %344, %345 : vector<2x32xf32>
    %347 = vector.extract_strided_slice %300 {offsets = [0, 64], sizes = [2, 32], strides = [1, 1]} : vector<2x96xf32> to vector<2x32xf32>
    %348 = vector.extract_strided_slice %302 {offsets = [0, 64], sizes = [2, 32], strides = [1, 1]} : vector<2x96xf32> to vector<2x32xf32>
    %349 = vector.broadcast %16 : vector<1x32xf32> to vector<2x32xf32>
    %350 = arith.addf %348, %349 : vector<2x32xf32>
    %351 = arith.mulf %338, %350 : vector<2x32xf32>
    %352 = arith.addf %347, %351 : vector<2x32xf32>
    %353 = math.tanh %352 : vector<2x32xf32>
    %cst_94 = arith.constant 1.000000e+00 : f32
    %354 = vector.broadcast %cst_94 : f32 to vector<2x32xf32>
    %355 = arith.subf %354, %346 : vector<2x32xf32>
    %356 = arith.mulf %355, %353 : vector<2x32xf32>
    %357 = arith.mulf %346, %289 : vector<2x32xf32>
    %358 = arith.addf %356, %357 : vector<2x32xf32>
    %359 = arith.index_cast %294 : i32 to index
    %c0_95 = arith.constant 0 : index
    %360 = vector.load %arg16[%359, %c0_95] : memref<16x32xf32, #tpu.memory_space<vmem>>, vector<2x32xf32>
    tpu.vector_store %arg16[%359, %c0_95], %330 {strides = array<i32>} : memref<16x32xf32, #tpu.memory_space<vmem>>, vector<2x32xf32>,
    %361 = arith.index_cast %296 : i32 to index
    %c0_96 = arith.constant 0 : index
    %362 = vector.load %arg17[%361, %c0_96] : memref<16x32xf32, #tpu.memory_space<vmem>>, vector<2x32xf32>
    tpu.vector_store %arg17[%361, %c0_96], %358 {strides = array<i32>} : memref<16x32xf32, #tpu.memory_space<vmem>>, vector<2x32xf32>,
    %c5_i32 = arith.constant 5 : i32
    %c2_i32_97 = arith.constant 2 : i32
    %363 = arith.muli %c5_i32, %c2_i32_97 : i32
    %c7_i32_98 = arith.constant 7 : i32
    %364 = arith.subi %c7_i32_98, %c5_i32 : i32
    %c2_i32_99 = arith.constant 2 : i32
    %365 = arith.muli %364, %c2_i32_99 : i32
    %366 = arith.index_cast %363 : i32 to index
    %c0_100 = arith.constant 0 : index
    %367 = vector.load %arg14[%366, %c0_100] : memref<16x96xf32, #tpu.memory_space<vmem>>, vector<2x96xf32>
    %368 = arith.index_cast %365 : i32 to index
    %c0_101 = arith.constant 0 : index
    %369 = vector.load %arg15[%368, %c0_101] : memref<16x96xf32, #tpu.memory_space<vmem>>, vector<2x96xf32>
    %cst_102 = arith.constant dense<0.000000e+00> : vector<2x96xf32>
    %370 = tpu.matmul %330, %13, %cst_102 {dimension_numbers = #tpu.dot_dimension_numbers<[1], [0], [0], [1], [0, 0, 1, 1], [], []>} : vector<2x32xf32>, vector<32x96xf32>, vector<2x96xf32> -> vector<2x96xf32>
    %cst_103 = arith.constant dense<0.000000e+00> : vector<2x96xf32>
    %371 = tpu.matmul %358, %14, %cst_103 {dimension_numbers = #tpu.dot_dimension_numbers<[1], [0], [0], [1], [0, 0, 1, 1], [], []>} : vector<2x32xf32>, vector<32x96xf32>, vector<2x96xf32> -> vector<2x96xf32>
    %372 = vector.extract_strided_slice %367 {offsets = [0, 0], sizes = [2, 32], strides = [1, 1]} : vector<2x96xf32> to vector<2x32xf32>
    %373 = vector.extract_strided_slice %370 {offsets = [0, 0], sizes = [2, 32], strides = [1, 1]} : vector<2x96xf32> to vector<2x32xf32>
    %374 = arith.addf %372, %373 : vector<2x32xf32>
    %375 = arith.negf %374 : vector<2x32xf32>
    %376 = math.exp %375 : vector<2x32xf32>
    %cst_104 = arith.constant 1.000000e+00 : f32
    %377 = vector.broadcast %cst_104 : f32 to vector<2x32xf32>
    %378 = arith.addf %377, %376 : vector<2x32xf32>
    %379 = arith.divf %377, %378 : vector<2x32xf32>
    %380 = vector.extract_strided_slice %367 {offsets = [0, 32], sizes = [2, 32], strides = [1, 1]} : vector<2x96xf32> to vector<2x32xf32>
    %381 = vector.extract_strided_slice %370 {offsets = [0, 32], sizes = [2, 32], strides = [1, 1]} : vector<2x96xf32> to vector<2x32xf32>
    %382 = arith.addf %380, %381 : vector<2x32xf32>
    %383 = arith.negf %382 : vector<2x32xf32>
    %384 = math.exp %383 : vector<2x32xf32>
    %cst_105 = arith.constant 1.000000e+00 : f32
    %385 = vector.broadcast %cst_105 : f32 to vector<2x32xf32>
    %386 = arith.addf %385, %384 : vector<2x32xf32>
    %387 = arith.divf %385, %386 : vector<2x32xf32>
    %388 = vector.extract_strided_slice %367 {offsets = [0, 64], sizes = [2, 32], strides = [1, 1]} : vector<2x96xf32> to vector<2x32xf32>
    %389 = vector.extract_strided_slice %370 {offsets = [0, 64], sizes = [2, 32], strides = [1, 1]} : vector<2x96xf32> to vector<2x32xf32>
    %390 = vector.broadcast %15 : vector<1x32xf32> to vector<2x32xf32>
    %391 = arith.addf %389, %390 : vector<2x32xf32>
    %392 = arith.mulf %379, %391 : vector<2x32xf32>
    %393 = arith.addf %388, %392 : vector<2x32xf32>
    %394 = math.tanh %393 : vector<2x32xf32>
    %cst_106 = arith.constant 1.000000e+00 : f32
    %395 = vector.broadcast %cst_106 : f32 to vector<2x32xf32>
    %396 = arith.subf %395, %387 : vector<2x32xf32>
    %397 = arith.mulf %396, %394 : vector<2x32xf32>
    %398 = arith.mulf %387, %330 : vector<2x32xf32>
    %399 = arith.addf %397, %398 : vector<2x32xf32>
    %400 = vector.extract_strided_slice %369 {offsets = [0, 0], sizes = [2, 32], strides = [1, 1]} : vector<2x96xf32> to vector<2x32xf32>
    %401 = vector.extract_strided_slice %371 {offsets = [0, 0], sizes = [2, 32], strides = [1, 1]} : vector<2x96xf32> to vector<2x32xf32>
    %402 = arith.addf %400, %401 : vector<2x32xf32>
    %403 = arith.negf %402 : vector<2x32xf32>
    %404 = math.exp %403 : vector<2x32xf32>
    %cst_107 = arith.constant 1.000000e+00 : f32
    %405 = vector.broadcast %cst_107 : f32 to vector<2x32xf32>
    %406 = arith.addf %405, %404 : vector<2x32xf32>
    %407 = arith.divf %405, %406 : vector<2x32xf32>
    %408 = vector.extract_strided_slice %369 {offsets = [0, 32], sizes = [2, 32], strides = [1, 1]} : vector<2x96xf32> to vector<2x32xf32>
    %409 = vector.extract_strided_slice %371 {offsets = [0, 32], sizes = [2, 32], strides = [1, 1]} : vector<2x96xf32> to vector<2x32xf32>
    %410 = arith.addf %408, %409 : vector<2x32xf32>
    %411 = arith.negf %410 : vector<2x32xf32>
    %412 = math.exp %411 : vector<2x32xf32>
    %cst_108 = arith.constant 1.000000e+00 : f32
    %413 = vector.broadcast %cst_108 : f32 to vector<2x32xf32>
    %414 = arith.addf %413, %412 : vector<2x32xf32>
    %415 = arith.divf %413, %414 : vector<2x32xf32>
    %416 = vector.extract_strided_slice %369 {offsets = [0, 64], sizes = [2, 32], strides = [1, 1]} : vector<2x96xf32> to vector<2x32xf32>
    %417 = vector.extract_strided_slice %371 {offsets = [0, 64], sizes = [2, 32], strides = [1, 1]} : vector<2x96xf32> to vector<2x32xf32>
    %418 = vector.broadcast %16 : vector<1x32xf32> to vector<2x32xf32>
    %419 = arith.addf %417, %418 : vector<2x32xf32>
    %420 = arith.mulf %407, %419 : vector<2x32xf32>
    %421 = arith.addf %416, %420 : vector<2x32xf32>
    %422 = math.tanh %421 : vector<2x32xf32>
    %cst_109 = arith.constant 1.000000e+00 : f32
    %423 = vector.broadcast %cst_109 : f32 to vector<2x32xf32>
    %424 = arith.subf %423, %415 : vector<2x32xf32>
    %425 = arith.mulf %424, %422 : vector<2x32xf32>
    %426 = arith.mulf %415, %358 : vector<2x32xf32>
    %427 = arith.addf %425, %426 : vector<2x32xf32>
    %428 = arith.index_cast %363 : i32 to index
    %c0_110 = arith.constant 0 : index
    %429 = vector.load %arg16[%428, %c0_110] : memref<16x32xf32, #tpu.memory_space<vmem>>, vector<2x32xf32>
    tpu.vector_store %arg16[%428, %c0_110], %399 {strides = array<i32>} : memref<16x32xf32, #tpu.memory_space<vmem>>, vector<2x32xf32>,
    %430 = arith.index_cast %365 : i32 to index
    %c0_111 = arith.constant 0 : index
    %431 = vector.load %arg17[%430, %c0_111] : memref<16x32xf32, #tpu.memory_space<vmem>>, vector<2x32xf32>
    tpu.vector_store %arg17[%430, %c0_111], %427 {strides = array<i32>} : memref<16x32xf32, #tpu.memory_space<vmem>>, vector<2x32xf32>,
    %c6_i32 = arith.constant 6 : i32
    %c2_i32_112 = arith.constant 2 : i32
    %432 = arith.muli %c6_i32, %c2_i32_112 : i32
    %c7_i32_113 = arith.constant 7 : i32
    %433 = arith.subi %c7_i32_113, %c6_i32 : i32
    %c2_i32_114 = arith.constant 2 : i32
    %434 = arith.muli %433, %c2_i32_114 : i32
    %435 = arith.index_cast %432 : i32 to index
    %c0_115 = arith.constant 0 : index
    %436 = vector.load %arg14[%435, %c0_115] : memref<16x96xf32, #tpu.memory_space<vmem>>, vector<2x96xf32>
    %437 = arith.index_cast %434 : i32 to index
    %c0_116 = arith.constant 0 : index
    %438 = vector.load %arg15[%437, %c0_116] : memref<16x96xf32, #tpu.memory_space<vmem>>, vector<2x96xf32>
    %cst_117 = arith.constant dense<0.000000e+00> : vector<2x96xf32>
    %439 = tpu.matmul %399, %13, %cst_117 {dimension_numbers = #tpu.dot_dimension_numbers<[1], [0], [0], [1], [0, 0, 1, 1], [], []>} : vector<2x32xf32>, vector<32x96xf32>, vector<2x96xf32> -> vector<2x96xf32>
    %cst_118 = arith.constant dense<0.000000e+00> : vector<2x96xf32>
    %440 = tpu.matmul %427, %14, %cst_118 {dimension_numbers = #tpu.dot_dimension_numbers<[1], [0], [0], [1], [0, 0, 1, 1], [], []>} : vector<2x32xf32>, vector<32x96xf32>, vector<2x96xf32> -> vector<2x96xf32>
    %441 = vector.extract_strided_slice %436 {offsets = [0, 0], sizes = [2, 32], strides = [1, 1]} : vector<2x96xf32> to vector<2x32xf32>
    %442 = vector.extract_strided_slice %439 {offsets = [0, 0], sizes = [2, 32], strides = [1, 1]} : vector<2x96xf32> to vector<2x32xf32>
    %443 = arith.addf %441, %442 : vector<2x32xf32>
    %444 = arith.negf %443 : vector<2x32xf32>
    %445 = math.exp %444 : vector<2x32xf32>
    %cst_119 = arith.constant 1.000000e+00 : f32
    %446 = vector.broadcast %cst_119 : f32 to vector<2x32xf32>
    %447 = arith.addf %446, %445 : vector<2x32xf32>
    %448 = arith.divf %446, %447 : vector<2x32xf32>
    %449 = vector.extract_strided_slice %436 {offsets = [0, 32], sizes = [2, 32], strides = [1, 1]} : vector<2x96xf32> to vector<2x32xf32>
    %450 = vector.extract_strided_slice %439 {offsets = [0, 32], sizes = [2, 32], strides = [1, 1]} : vector<2x96xf32> to vector<2x32xf32>
    %451 = arith.addf %449, %450 : vector<2x32xf32>
    %452 = arith.negf %451 : vector<2x32xf32>
    %453 = math.exp %452 : vector<2x32xf32>
    %cst_120 = arith.constant 1.000000e+00 : f32
    %454 = vector.broadcast %cst_120 : f32 to vector<2x32xf32>
    %455 = arith.addf %454, %453 : vector<2x32xf32>
    %456 = arith.divf %454, %455 : vector<2x32xf32>
    %457 = vector.extract_strided_slice %436 {offsets = [0, 64], sizes = [2, 32], strides = [1, 1]} : vector<2x96xf32> to vector<2x32xf32>
    %458 = vector.extract_strided_slice %439 {offsets = [0, 64], sizes = [2, 32], strides = [1, 1]} : vector<2x96xf32> to vector<2x32xf32>
    %459 = vector.broadcast %15 : vector<1x32xf32> to vector<2x32xf32>
    %460 = arith.addf %458, %459 : vector<2x32xf32>
    %461 = arith.mulf %448, %460 : vector<2x32xf32>
    %462 = arith.addf %457, %461 : vector<2x32xf32>
    %463 = math.tanh %462 : vector<2x32xf32>
    %cst_121 = arith.constant 1.000000e+00 : f32
    %464 = vector.broadcast %cst_121 : f32 to vector<2x32xf32>
    %465 = arith.subf %464, %456 : vector<2x32xf32>
    %466 = arith.mulf %465, %463 : vector<2x32xf32>
    %467 = arith.mulf %456, %399 : vector<2x32xf32>
    %468 = arith.addf %466, %467 : vector<2x32xf32>
    %469 = vector.extract_strided_slice %438 {offsets = [0, 0], sizes = [2, 32], strides = [1, 1]} : vector<2x96xf32> to vector<2x32xf32>
    %470 = vector.extract_strided_slice %440 {offsets = [0, 0], sizes = [2, 32], strides = [1, 1]} : vector<2x96xf32> to vector<2x32xf32>
    %471 = arith.addf %469, %470 : vector<2x32xf32>
    %472 = arith.negf %471 : vector<2x32xf32>
    %473 = math.exp %472 : vector<2x32xf32>
    %cst_122 = arith.constant 1.000000e+00 : f32
    %474 = vector.broadcast %cst_122 : f32 to vector<2x32xf32>
    %475 = arith.addf %474, %473 : vector<2x32xf32>
    %476 = arith.divf %474, %475 : vector<2x32xf32>
    %477 = vector.extract_strided_slice %438 {offsets = [0, 32], sizes = [2, 32], strides = [1, 1]} : vector<2x96xf32> to vector<2x32xf32>
    %478 = vector.extract_strided_slice %440 {offsets = [0, 32], sizes = [2, 32], strides = [1, 1]} : vector<2x96xf32> to vector<2x32xf32>
    %479 = arith.addf %477, %478 : vector<2x32xf32>
    %480 = arith.negf %479 : vector<2x32xf32>
    %481 = math.exp %480 : vector<2x32xf32>
    %cst_123 = arith.constant 1.000000e+00 : f32
    %482 = vector.broadcast %cst_123 : f32 to vector<2x32xf32>
    %483 = arith.addf %482, %481 : vector<2x32xf32>
    %484 = arith.divf %482, %483 : vector<2x32xf32>
    %485 = vector.extract_strided_slice %438 {offsets = [0, 64], sizes = [2, 32], strides = [1, 1]} : vector<2x96xf32> to vector<2x32xf32>
    %486 = vector.extract_strided_slice %440 {offsets = [0, 64], sizes = [2, 32], strides = [1, 1]} : vector<2x96xf32> to vector<2x32xf32>
    %487 = vector.broadcast %16 : vector<1x32xf32> to vector<2x32xf32>
    %488 = arith.addf %486, %487 : vector<2x32xf32>
    %489 = arith.mulf %476, %488 : vector<2x32xf32>
    %490 = arith.addf %485, %489 : vector<2x32xf32>
    %491 = math.tanh %490 : vector<2x32xf32>
    %cst_124 = arith.constant 1.000000e+00 : f32
    %492 = vector.broadcast %cst_124 : f32 to vector<2x32xf32>
    %493 = arith.subf %492, %484 : vector<2x32xf32>
    %494 = arith.mulf %493, %491 : vector<2x32xf32>
    %495 = arith.mulf %484, %427 : vector<2x32xf32>
    %496 = arith.addf %494, %495 : vector<2x32xf32>
    %497 = arith.index_cast %432 : i32 to index
    %c0_125 = arith.constant 0 : index
    %498 = vector.load %arg16[%497, %c0_125] : memref<16x32xf32, #tpu.memory_space<vmem>>, vector<2x32xf32>
    tpu.vector_store %arg16[%497, %c0_125], %468 {strides = array<i32>} : memref<16x32xf32, #tpu.memory_space<vmem>>, vector<2x32xf32>,
    %499 = arith.index_cast %434 : i32 to index
    %c0_126 = arith.constant 0 : index
    %500 = vector.load %arg17[%499, %c0_126] : memref<16x32xf32, #tpu.memory_space<vmem>>, vector<2x32xf32>
    tpu.vector_store %arg17[%499, %c0_126], %496 {strides = array<i32>} : memref<16x32xf32, #tpu.memory_space<vmem>>, vector<2x32xf32>,
    %c7_i32_127 = arith.constant 7 : i32
    %c2_i32_128 = arith.constant 2 : i32
    %501 = arith.muli %c7_i32_127, %c2_i32_128 : i32
    %c7_i32_129 = arith.constant 7 : i32
    %502 = arith.subi %c7_i32_129, %c7_i32_127 : i32
    %c2_i32_130 = arith.constant 2 : i32
    %503 = arith.muli %502, %c2_i32_130 : i32
    %504 = arith.index_cast %501 : i32 to index
    %c0_131 = arith.constant 0 : index
    %505 = vector.load %arg14[%504, %c0_131] : memref<16x96xf32, #tpu.memory_space<vmem>>, vector<2x96xf32>
    %506 = arith.index_cast %503 : i32 to index
    %c0_132 = arith.constant 0 : index
    %507 = vector.load %arg15[%506, %c0_132] : memref<16x96xf32, #tpu.memory_space<vmem>>, vector<2x96xf32>
    %cst_133 = arith.constant dense<0.000000e+00> : vector<2x96xf32>
    %508 = tpu.matmul %468, %13, %cst_133 {dimension_numbers = #tpu.dot_dimension_numbers<[1], [0], [0], [1], [0, 0, 1, 1], [], []>} : vector<2x32xf32>, vector<32x96xf32>, vector<2x96xf32> -> vector<2x96xf32>
    %cst_134 = arith.constant dense<0.000000e+00> : vector<2x96xf32>
    %509 = tpu.matmul %496, %14, %cst_134 {dimension_numbers = #tpu.dot_dimension_numbers<[1], [0], [0], [1], [0, 0, 1, 1], [], []>} : vector<2x32xf32>, vector<32x96xf32>, vector<2x96xf32> -> vector<2x96xf32>
    %510 = vector.extract_strided_slice %505 {offsets = [0, 0], sizes = [2, 32], strides = [1, 1]} : vector<2x96xf32> to vector<2x32xf32>
    %511 = vector.extract_strided_slice %508 {offsets = [0, 0], sizes = [2, 32], strides = [1, 1]} : vector<2x96xf32> to vector<2x32xf32>
    %512 = arith.addf %510, %511 : vector<2x32xf32>
    %513 = arith.negf %512 : vector<2x32xf32>
    %514 = math.exp %513 : vector<2x32xf32>
    %cst_135 = arith.constant 1.000000e+00 : f32
    %515 = vector.broadcast %cst_135 : f32 to vector<2x32xf32>
    %516 = arith.addf %515, %514 : vector<2x32xf32>
    %517 = arith.divf %515, %516 : vector<2x32xf32>
    %518 = vector.extract_strided_slice %505 {offsets = [0, 32], sizes = [2, 32], strides = [1, 1]} : vector<2x96xf32> to vector<2x32xf32>
    %519 = vector.extract_strided_slice %508 {offsets = [0, 32], sizes = [2, 32], strides = [1, 1]} : vector<2x96xf32> to vector<2x32xf32>
    %520 = arith.addf %518, %519 : vector<2x32xf32>
    %521 = arith.negf %520 : vector<2x32xf32>
    %522 = math.exp %521 : vector<2x32xf32>
    %cst_136 = arith.constant 1.000000e+00 : f32
    %523 = vector.broadcast %cst_136 : f32 to vector<2x32xf32>
    %524 = arith.addf %523, %522 : vector<2x32xf32>
    %525 = arith.divf %523, %524 : vector<2x32xf32>
    %526 = vector.extract_strided_slice %505 {offsets = [0, 64], sizes = [2, 32], strides = [1, 1]} : vector<2x96xf32> to vector<2x32xf32>
    %527 = vector.extract_strided_slice %508 {offsets = [0, 64], sizes = [2, 32], strides = [1, 1]} : vector<2x96xf32> to vector<2x32xf32>
    %528 = vector.broadcast %15 : vector<1x32xf32> to vector<2x32xf32>
    %529 = arith.addf %527, %528 : vector<2x32xf32>
    %530 = arith.mulf %517, %529 : vector<2x32xf32>
    %531 = arith.addf %526, %530 : vector<2x32xf32>
    %532 = math.tanh %531 : vector<2x32xf32>
    %cst_137 = arith.constant 1.000000e+00 : f32
    %533 = vector.broadcast %cst_137 : f32 to vector<2x32xf32>
    %534 = arith.subf %533, %525 : vector<2x32xf32>
    %535 = arith.mulf %534, %532 : vector<2x32xf32>
    %536 = arith.mulf %525, %468 : vector<2x32xf32>
    %537 = arith.addf %535, %536 : vector<2x32xf32>
    %538 = vector.extract_strided_slice %507 {offsets = [0, 0], sizes = [2, 32], strides = [1, 1]} : vector<2x96xf32> to vector<2x32xf32>
    %539 = vector.extract_strided_slice %509 {offsets = [0, 0], sizes = [2, 32], strides = [1, 1]} : vector<2x96xf32> to vector<2x32xf32>
    %540 = arith.addf %538, %539 : vector<2x32xf32>
    %541 = arith.negf %540 : vector<2x32xf32>
    %542 = math.exp %541 : vector<2x32xf32>
    %cst_138 = arith.constant 1.000000e+00 : f32
    %543 = vector.broadcast %cst_138 : f32 to vector<2x32xf32>
    %544 = arith.addf %543, %542 : vector<2x32xf32>
    %545 = arith.divf %543, %544 : vector<2x32xf32>
    %546 = vector.extract_strided_slice %507 {offsets = [0, 32], sizes = [2, 32], strides = [1, 1]} : vector<2x96xf32> to vector<2x32xf32>
    %547 = vector.extract_strided_slice %509 {offsets = [0, 32], sizes = [2, 32], strides = [1, 1]} : vector<2x96xf32> to vector<2x32xf32>
    %548 = arith.addf %546, %547 : vector<2x32xf32>
    %549 = arith.negf %548 : vector<2x32xf32>
    %550 = math.exp %549 : vector<2x32xf32>
    %cst_139 = arith.constant 1.000000e+00 : f32
    %551 = vector.broadcast %cst_139 : f32 to vector<2x32xf32>
    %552 = arith.addf %551, %550 : vector<2x32xf32>
    %553 = arith.divf %551, %552 : vector<2x32xf32>
    %554 = vector.extract_strided_slice %507 {offsets = [0, 64], sizes = [2, 32], strides = [1, 1]} : vector<2x96xf32> to vector<2x32xf32>
    %555 = vector.extract_strided_slice %509 {offsets = [0, 64], sizes = [2, 32], strides = [1, 1]} : vector<2x96xf32> to vector<2x32xf32>
    %556 = vector.broadcast %16 : vector<1x32xf32> to vector<2x32xf32>
    %557 = arith.addf %555, %556 : vector<2x32xf32>
    %558 = arith.mulf %545, %557 : vector<2x32xf32>
    %559 = arith.addf %554, %558 : vector<2x32xf32>
    %560 = math.tanh %559 : vector<2x32xf32>
    %cst_140 = arith.constant 1.000000e+00 : f32
    %561 = vector.broadcast %cst_140 : f32 to vector<2x32xf32>
    %562 = arith.subf %561, %553 : vector<2x32xf32>
    %563 = arith.mulf %562, %560 : vector<2x32xf32>
    %564 = arith.mulf %553, %496 : vector<2x32xf32>
    %565 = arith.addf %563, %564 : vector<2x32xf32>
    %566 = arith.index_cast %501 : i32 to index
    %c0_141 = arith.constant 0 : index
    %567 = vector.load %arg16[%566, %c0_141] : memref<16x32xf32, #tpu.memory_space<vmem>>, vector<2x32xf32>
    tpu.vector_store %arg16[%566, %c0_141], %537 {strides = array<i32>} : memref<16x32xf32, #tpu.memory_space<vmem>>, vector<2x32xf32>,
    %568 = arith.index_cast %503 : i32 to index
    %c0_142 = arith.constant 0 : index
    %569 = vector.load %arg17[%568, %c0_142] : memref<16x32xf32, #tpu.memory_space<vmem>>, vector<2x32xf32>
    tpu.vector_store %arg17[%568, %c0_142], %565 {strides = array<i32>} : memref<16x32xf32, #tpu.memory_space<vmem>>, vector<2x32xf32>,
    %c8_i32 = arith.constant 8 : i32
    %c0_143 = arith.constant 0 : index
    %c0_144 = arith.constant 0 : index
    %570 = vector.load %arg16[%c0_143, %c0_144] : memref<16x32xf32, #tpu.memory_space<vmem>>, vector<16x32xf32>
    %c0_145 = arith.constant 0 : index
    %c0_146 = arith.constant 0 : index
    %571 = vector.load %arg17[%c0_145, %c0_146] : memref<16x32xf32, #tpu.memory_space<vmem>>, vector<16x32xf32>
    %572 = tpu.concatenate %570, %571 in 1 : vector<16x32xf32>, vector<16x32xf32> -> vector<16x64xf32>
    %c0_147 = arith.constant 0 : index
    %c0_148 = arith.constant 0 : index
    %573 = vector.load %arg13[%c0_147, %c0_148] : memref<16x64xf32, #tpu.memory_space<vmem>>, vector<16x64xf32>
    tpu.vector_store %arg13[%c0_147, %c0_148], %572 {strides = array<i32>} : memref<16x64xf32, #tpu.memory_space<vmem>>, vector<16x64xf32>,
    %c0_149 = arith.constant 0 : index
    %c0_150 = arith.constant 0 : index
    %574 = vector.load %arg9[%c0_149, %c0_150] : memref<32x1xf32, #tpu.memory_space<vmem>>, vector<32x1xf32>
    %cst_151 = arith.constant dense<0.000000e+00> : vector<16x1xf32>
    %575 = tpu.matmul %570, %574, %cst_151 {dimension_numbers = #tpu.dot_dimension_numbers<[1], [0], [0], [1], [0, 0, 1, 1], [], []>} : vector<16x32xf32>, vector<32x1xf32>, vector<16x1xf32> -> vector<16x1xf32>
    %c0_152 = arith.constant 0 : index
    %c0_153 = arith.constant 0 : index
    %576 = vector.load %arg10[%c0_152, %c0_153] : memref<32x1xf32, #tpu.memory_space<vmem>>, vector<32x1xf32>
    %cst_154 = arith.constant dense<0.000000e+00> : vector<16x1xf32>
    %577 = tpu.matmul %571, %576, %cst_154 {dimension_numbers = #tpu.dot_dimension_numbers<[1], [0], [0], [1], [0, 0, 1, 1], [], []>} : vector<16x32xf32>, vector<32x1xf32>, vector<16x1xf32> -> vector<16x1xf32>
    %578 = arith.addf %575, %577 : vector<16x1xf32>
    %c0_155 = arith.constant 0 : index
    %c0_156 = arith.constant 0 : index
    %579 = vector.load %arg11[%c0_155, %c0_156] : memref<1x1xf32, #tpu.memory_space<vmem>>, vector<1x1xf32>
    %580 = vector.broadcast %579 : vector<1x1xf32> to vector<16x1xf32>
    %581 = arith.addf %578, %580 : vector<16x1xf32>
    %582 = arith.negf %581 : vector<16x1xf32>
    %583 = math.exp %582 : vector<16x1xf32>
    %cst_157 = arith.constant 1.000000e+00 : f32
    %584 = vector.broadcast %cst_157 : f32 to vector<16x1xf32>
    %585 = arith.addf %584, %583 : vector<16x1xf32>
    %586 = arith.divf %584, %585 : vector<16x1xf32>
    %c0_158 = arith.constant 0 : index
    %c0_159 = arith.constant 0 : index
    %587 = vector.load %arg12[%c0_158, %c0_159] : memref<16x1xf32, #tpu.memory_space<vmem>>, vector<16x1xf32>
    tpu.vector_store %arg12[%c0_158, %c0_159], %586 {strides = array<i32>} : memref<16x1xf32, #tpu.memory_space<vmem>>, vector<16x1xf32>,
    return
  }
}

</mosaic_0001>

<llo_original>
// kernel: tpu_custom_call.1
$region0: #{tpu_custom_call.1}
  #allocation0 [shape = 'u32[]', space=smem, size = 0x4, offset = 0x4, fixed_abs, tag = 'smem constant byte address 0x4 - core index']
  #allocation1 [shape = 'u32[144,128]{1,0:T(1,128)}', space=vmem, size = 0x12000, scoped, tag = 'internal scratch']
  #allocation2 [shape = 'f32[16,96]{1,0:T(8,128)}', space=vmem, size = 0x2000, scoped, tag = 'scratch operand']
  #allocation3 [shape = 'f32[16,96]{1,0:T(8,128)}', space=vmem, size = 0x2000, scoped, tag = 'scratch operand']
  #allocation4 [shape = 'f32[16,32]{1,0:T(8,128)}', space=vmem, size = 0x2000, scoped, tag = 'scratch operand']
  #allocation5 [shape = 'f32[16,32]{1,0:T(8,128)}', space=vmem, size = 0x2000, scoped, tag = 'scratch operand']
  #allocation6 [shape = 'f32[1,1]{1,0:T(1,128)S(1)}', space=vmem, size = 0x200, scoped, tag = 'scoped memory for tpu_custom_call.1']
  %s0 = inlined_call_operand.hbm [shape: f32[16,16], index: 0, kind: input, shape index: {}]
  %s1 = inlined_call_operand.hbm [shape: f32[16,96], index: 1, kind: input, shape index: {}]
  %s2 = inlined_call_operand.vmem [shape: f32[1,96], index: 2, kind: input, shape index: {}]
  %s3 = inlined_call_operand.vmem [shape: f32[16,96], index: 3, kind: input, shape index: {}]
  %s4 = inlined_call_operand.vmem [shape: f32[1,96], index: 4, kind: input, shape index: {}]
  %s5 = inlined_call_operand.vmem [shape: f32[32,96], index: 5, kind: input, shape index: {}]
  %s6 = inlined_call_operand.vmem [shape: f32[32,96], index: 6, kind: input, shape index: {}]
  %s7 = inlined_call_operand.vmem [shape: f32[1,32], index: 7, kind: input, shape index: {}]
  %s8 = inlined_call_operand.vmem [shape: f32[1,32], index: 8, kind: input, shape index: {}]
  %s9 = inlined_call_operand.vmem [shape: f32[32,1], index: 9, kind: input, shape index: {}]
  %s10 = inlined_call_operand.vmem [shape: f32[32,1], index: 10, kind: input, shape index: {}]
  %s11 = inlined_call_operand.<no memory space> [shape: f32[1,1], index: 11, kind: input, shape index: {}]
  %s12 = inlined_call_operand.vmem [shape: f32[16,1], index: 12, kind: output, shape index: {0}]
  %s13 = inlined_call_operand.hbm [shape: f32[16,64], index: 13, kind: output, shape index: {1}]
  %14 = xla_tuple %s12, %s13
  %s15 = sld [smem:[#allocation0]]
  $region74: #{tpu_custom_call.1} parent=0
    _
  %s17 = ssub.s32 1, %s15
  %s18 = scalar_select 0, %s17, %s15
  %v19 = vstv %s11
  %20 = vst [vmem:[#allocation6] sm:$0x1] %v19
  $region1: #{tpu_custom_call.1} parent=0
    #allocation7 [shape = 'u8[8192]{0}', space=vmem, size = 0x2000, scoped, tag = 'input window, operand 0, single buffered']
    #allocation8 [shape = 's32[1]{0}', space=sflag, size = 0x4, scoped, tag = 'scoped memory for tpu_custom_call.1']
    #allocation9 [shape = 's32[1]{0}', space=sflag, size = 0x4, scoped, tag = 'scoped memory for tpu_custom_call.1']
    #allocation10 [shape = 'u8[8192]{0}', space=vmem, size = 0x2000, scoped, tag = 'input window, operand 1, single buffered']
    #allocation11 [shape = 's32[1]{0}', space=sflag, size = 0x4, scoped, tag = 'scoped memory for tpu_custom_call.1']
    #allocation12 [shape = 'u8[8192]{0}', space=vmem, size = 0x2000, scoped, tag = 'output window, operand 1, single buffered']
    %21 = vsyncpa [#allocation8], 0
    %22 = vsyncpa [#allocation11], 0
    %23 = vsyncpa [#allocation9], 0
    // Predicated region
    $region2: #{tpu_custom_call.1} parent=1 // pred_check
      _
    $region3: #{tpu_custom_call.1} parent=1 // pred_check_branch
      %25 = sbr.rel (0) target = $region5
    $region4: #{tpu_custom_call.1} parent=1 // pred_region
      %s27 = ssub.s32 256, 256
      %28 = vsyncadd [#allocation8], %s27
      %s29 = sshll.u32 [#allocation7], 4
      %s30 = int_to_ptr.vmem [resolvable:$true] %s29
      %35 = dma.hbm_to_vmem [thread:$0]  %s0, 256, %s30, [#allocation8], 128, 128, 8
    $region5: #{tpu_custom_call.1} parent=1 // pred_fallthru
      _
    // Predicated region
    $region6: #{tpu_custom_call.1} parent=1 // pred_check
      _
    $region7: #{tpu_custom_call.1} parent=1 // pred_check_branch
      %37 = sbr.rel (0) target = $region9
    $region8: #{tpu_custom_call.1} parent=1 // pred_region
      %s39 = ssub.s32 256, 256
      %40 = vsyncadd [#allocation11], %s39
      %s41 = sshll.u32 [#allocation10], 4
      %s42 = int_to_ptr.vmem [resolvable:$true] %s41
      %47 = dma.hbm_to_vmem [thread:$0]  %s1, 256, %s42, [#allocation11], 128, 128, 8
    $region9: #{tpu_custom_call.1} parent=1 // pred_fallthru
      _
    // Predicated region
    $region10: #{tpu_custom_call.1} parent=1 // pred_check
      _
    $region11: #{tpu_custom_call.1} parent=1 // pred_check_branch
      %49 = sbr.rel (0) target = $region13
    $region12: #{tpu_custom_call.1} parent=1 // pred_region
      _
    $region13: #{tpu_custom_call.1} parent=1 // pred_fallthru
      _
    // Predicated region
    $region14: #{tpu_custom_call.1} parent=1 // pred_check
      _
    $region15: #{tpu_custom_call.1} parent=1 // pred_check_branch
      %51 = sbr.rel (0) target = $region17
    $region16: #{tpu_custom_call.1} parent=1 // pred_region
      _
    $region17: #{tpu_custom_call.1} parent=1 // pred_fallthru
      _
    // Predicated region
    $region18: #{tpu_custom_call.1} parent=1 // pred_check
      _
    $region19: #{tpu_custom_call.1} parent=1 // pred_check_branch
      %53 = sbr.rel (0) target = $region21
    $region20: #{tpu_custom_call.1} parent=1 // pred_region
      _
    $region21: #{tpu_custom_call.1} parent=1 // pred_fallthru
      _
    // Predicated region
    $region22: #{tpu_custom_call.1} parent=1 // pred_check
      _
    $region23: #{tpu_custom_call.1} parent=1 // pred_check_branch
      %55 = sbr.rel (0) target = $region25
    $region24: #{tpu_custom_call.1} parent=1 // pred_region
      _
    $region25: #{tpu_custom_call.1} parent=1 // pred_fallthru
      _
    // Predicated region
    $region26: #{tpu_custom_call.1} parent=1 // pred_check
      _
    $region27: #{tpu_custom_call.1} parent=1 // pred_check_branch
      %57 = sbr.rel (0) target = $region29
    $region28: #{tpu_custom_call.1} parent=1 // pred_region
      _
    $region29: #{tpu_custom_call.1} parent=1 // pred_fallthru
      _
    // Predicated region
    $region30: #{tpu_custom_call.1} parent=1 // pred_check
      _
    $region31: #{tpu_custom_call.1} parent=1 // pred_check_branch
      %59 = sbr.rel (0) target = $region33
    $region32: #{tpu_custom_call.1} parent=1 // pred_region
      _
    $region33: #{tpu_custom_call.1} parent=1 // pred_fallthru
      _
    // Predicated region
    $region34: #{tpu_custom_call.1} parent=1 // pred_check
      _
    $region35: #{tpu_custom_call.1} parent=1 // pred_check_branch
      %61 = sbr.rel (0) target = $region37
    $region36: #{tpu_custom_call.1} parent=1 // pred_region
      _
    $region37: #{tpu_custom_call.1} parent=1 // pred_fallthru
      _
    // Predicated region
    $region38: #{tpu_custom_call.1} parent=1 // pred_check
      _
    $region39: #{tpu_custom_call.1} parent=1 // pred_check_branch
      %63 = sbr.rel (0) target = $region41
    $region40: #{tpu_custom_call.1} parent=1 // pred_region
      _
    $region41: #{tpu_custom_call.1} parent=1 // pred_fallthru
      _
    // Predicated region
    $region42: #{tpu_custom_call.1} parent=1 // pred_check
      _
    $region43: #{tpu_custom_call.1} parent=1 // pred_check_branch
      %65 = sbr.rel (0) target = $region45
    $region44: #{tpu_custom_call.1} parent=1 // pred_region
      _
    $region45: #{tpu_custom_call.1} parent=1 // pred_fallthru
      _
    // Predicated region
    $region46: #{tpu_custom_call.1} parent=1 // pred_check
      _
    $region47: #{tpu_custom_call.1} parent=1 // pred_check_branch
      %67 = sbr.rel (0) target = $region49
    $region48: #{tpu_custom_call.1} parent=1 // pred_region
      _
    $region49: #{tpu_custom_call.1} parent=1 // pred_fallthru
      _
    // Predicated region
    $region50: #{tpu_custom_call.1} parent=1 // pred_check
      _
    $region51: #{tpu_custom_call.1} parent=1 // pred_check_branch
      %69 = sbr.rel (0) target = $region53
    $region52: #{tpu_custom_call.1} parent=1 // pred_region
      %70 = dma.done [#allocation8], 256
    $region53: #{tpu_custom_call.1} parent=1 // pred_fallthru
      _
    // Predicated region
    $region54: #{tpu_custom_call.1} parent=1 // pred_check
      _
    $region55: #{tpu_custom_call.1} parent=1 // pred_check_branch
      %72 = sbr.rel (0) target = $region57
    $region56: #{tpu_custom_call.1} parent=1 // pred_region
      %73 = dma.done [#allocation11], 256
    $region57: #{tpu_custom_call.1} parent=1 // pred_fallthru
      _
    %v74 = vld [vmem:[#allocation7] sm:$0xff]
    %v75 = vld [vmem:[#allocation7 + $0x8] sm:$0xff]
    %v76 = vld [vmem:[#allocation10] sm:$0xff]
    %v77 = vld [vmem:[#allocation10 + $0x8] sm:$0xff]
    %v78 = vld [vmem:[%s2] sm:$0x1]
    %v80 = vlaneseq
    %v81 = vshrl.u32 %v80, 7
    %v82 = vsub.s32 0, %v81
    %v83 = vrot.slane %v78, %v82
    %vm85 = vcmask 130048
    %v87 = vsel %vm85, %v74, 0
    %v90 = vsel %vm85, %v75, 0
    %92 = vmatprep.subr.mxu0 0.0
    %93 = vmatpush1.msra.mxu0 %v76
    %94 = vmatprep.subr.mxu0 0.0
    %95 = vmatpush1.msra.mxu0 %v77
    %96 = vmatprep.subr.mxu0 0.0
    %97 = vmatpush1.msra.mxu0 0.0
    %98 = vmatprep.subr.mxu0 0.0
    %99 = vmatpush1.msra.mxu0 0.0
    %100 = vmatprep.subr.mxu0 0.0
    %101 = vmatpush1.msra.mxu0 0.0
    %102 = vmatprep.subr.mxu0 0.0
    %103 = vmatpush1.msra.mxu0 0.0
    %104 = vmatprep.subr.mxu0 0.0
    %105 = vmatpush1.msra.mxu0 0.0
    %106 = vmatprep.subr.mxu0 0.0
    %107 = vmatpush1.msra.mxu0 0.0
    %108 = vmatprep.subr.mxu0 0.0
    %109 = vmatpush1.msra.mxu0 0.0
    %110 = vmatprep.subr.mxu0 0.0
    %111 = vmatpush1.msra.mxu0 0.0
    %112 = vmatprep.subr.mxu0 0.0
    %113 = vmatpush1.msra.mxu0 0.0
    %114 = vmatprep.subr.mxu0 0.0
    %115 = vmatpush1.msra.mxu0 0.0
    %116 = vmatprep.subr.mxu0 0.0
    %117 = vmatpush1.msra.mxu0 0.0
    %118 = vmatprep.subr.mxu0 0.0
    %119 = vmatpush1.msra.mxu0 0.0
    %120 = vmatprep.subr.mxu0 0.0
    %121 = vmatpush1.msra.mxu0 0.0
    %122 = vmatprep.subr.mxu0 0.0
    %123 = vmatpush1.msra.mxu0 0.0
    %124 = vmatprep.subr.mxu0 0.0
    %125 = vmatpush1.msra.mxu0 0.0
    %126 = vmatprep.subr.mxu0 0.0
    %127 = vmatpush1.msra.mxu0 0.0
    %128 = vmatprep.subr.mxu0 0.0
    %129 = vmatpush1.msra.mxu0 0.0
    %130 = vmatprep.subr.mxu0 0.0
    %131 = vmatpush1.msra.mxu0 0.0
    %132 = vmatprep.subr.mxu0 0.0
    %133 = vmatpush1.msra.mxu0 0.0
    %134 = vmatprep.subr.mxu0 0.0
    %135 = vmatpush1.msra.mxu0 0.0
    %136 = vmatprep.subr.mxu0 0.0
    %137 = vmatpush1.msra.mxu0 0.0
    %138 = vmatprep.subr.mxu0 0.0
    %139 = vmatpush1.msra.mxu0 0.0
    %140 = vmatprep.subr.mxu0 0.0
    %141 = vmatpush1.msra.mxu0 0.0
    %142 = vmatprep.subr.mxu0 0.0
    %143 = vmatpush1.msra.mxu0 0.0
    %144 = vmatprep.subr.mxu0 0.0
    %145 = vmatpush1.msra.mxu0 0.0
    %146 = vmatprep.subr.mxu0 0.0
    %147 = vmatpush1.msra.mxu0 0.0
    %148 = vmatprep.subr.mxu0 0.0
    %149 = vmatpush1.msra.mxu0 0.0
    %150 = vmatprep.subr.mxu0 0.0
    %151 = vmatpush1.msra.mxu0 0.0
    %152 = vmatprep.subr.mxu0 0.0
    %153 = vmatpush1.msra.mxu0 0.0
    %154 = vmatprep.subr.mxu0 0.0
    %155 = vmatpush1.msra.mxu0 0.0
    %156 = vmatprep.mubr.f32.mxu0 0.0
    %157 = vmatmul.mubr.f32.gmra.mrb[0].mxu0 %v87
    %v158 = vpop.f32.mrb[0].mxu0
    %v159 = vadd.f32 %v83, %v158
    %v160 = vpop.f32.mrb[0].mxu0
    %161 = vmatprep.mubr.f32.mxu0 0.0
    %162 = vmatmul.mubr.f32.gmra.mrb[0].mxu0 %v90
    %v163 = vpop.f32.mrb[0].mxu0
    %v164 = vadd.f32 %v83, %v163
    %v165 = vpop.f32.mrb[0].mxu0
    %166 = vdwg.mxu0
    %vm167 = vcmask 785408
    %168 = vst.msk [vmem:[#allocation2] sm:$0xff] %vm167, %v159
    %169 = vst.msk [vmem:[#allocation2 + $0x8] sm:$0xff] %vm167, %v164
    %v170 = vld [vmem:[%s3] sm:$0xff]
    %v171 = vld [vmem:[%s3 + $0x8] sm:$0xff]
    %v172 = vld [vmem:[%s4] sm:$0x1]
    %v174 = vlaneseq
    %v175 = vshrl.u32 %v174, 7
    %v176 = vsub.s32 0, %v175
    %v177 = vrot.slane %v172, %v176
    %179 = vmatprep.subr.mxu0 0.0
    %180 = vmatpush1.msra.mxu0 %v170
    %181 = vmatprep.subr.mxu0 0.0
    %182 = vmatpush1.msra.mxu0 %v171
    %183 = vmatprep.subr.mxu0 0.0
    %184 = vmatpush1.msra.mxu0 0.0
    %185 = vmatprep.subr.mxu0 0.0
    %186 = vmatpush1.msra.mxu0 0.0
    %187 = vmatprep.subr.mxu0 0.0
    %188 = vmatpush1.msra.mxu0 0.0
    %189 = vmatprep.subr.mxu0 0.0
    %190 = vmatpush1.msra.mxu0 0.0
    %191 = vmatprep.subr.mxu0 0.0
    %192 = vmatpush1.msra.mxu0 0.0
    %193 = vmatprep.subr.mxu0 0.0
    %194 = vmatpush1.msra.mxu0 0.0
    %195 = vmatprep.subr.mxu0 0.0
    %196 = vmatpush1.msra.mxu0 0.0
    %197 = vmatprep.subr.mxu0 0.0
    %198 = vmatpush1.msra.mxu0 0.0
    %199 = vmatprep.subr.mxu0 0.0
    %200 = vmatpush1.msra.mxu0 0.0
    %201 = vmatprep.subr.mxu0 0.0
    %202 = vmatpush1.msra.mxu0 0.0
    %203 = vmatprep.subr.mxu0 0.0
    %204 = vmatpush1.msra.mxu0 0.0
    %205 = vmatprep.subr.mxu0 0.0
    %206 = vmatpush1.msra.mxu0 0.0
    %207 = vmatprep.subr.mxu0 0.0
    %208 = vmatpush1.msra.mxu0 0.0
    %209 = vmatprep.subr.mxu0 0.0
    %210 = vmatpush1.msra.mxu0 0.0
    %211 = vmatprep.subr.mxu0 0.0
    %212 = vmatpush1.msra.mxu0 0.0
    %213 = vmatprep.subr.mxu0 0.0
    %214 = vmatpush1.msra.mxu0 0.0
    %215 = vmatprep.subr.mxu0 0.0
    %216 = vmatpush1.msra.mxu0 0.0
    %217 = vmatprep.subr.mxu0 0.0
    %218 = vmatpush1.msra.mxu0 0.0
    %219 = vmatprep.subr.mxu0 0.0
    %220 = vmatpush1.msra.mxu0 0.0
    %221 = vmatprep.subr.mxu0 0.0
    %222 = vmatpush1.msra.mxu0 0.0
    %223 = vmatprep.subr.mxu0 0.0
    %224 = vmatpush1.msra.mxu0 0.0
    %225 = vmatprep.subr.mxu0 0.0
    %226 = vmatpush1.msra.mxu0 0.0
    %227 = vmatprep.subr.mxu0 0.0
    %228 = vmatpush1.msra.mxu0 0.0
    %229 = vmatprep.subr.mxu0 0.0
    %230 = vmatpush1.msra.mxu0 0.0
    %231 = vmatprep.subr.mxu0 0.0
    %232 = vmatpush1.msra.mxu0 0.0
    %233 = vmatprep.subr.mxu0 0.0
    %234 = vmatpush1.msra.mxu0 0.0
    %235 = vmatprep.subr.mxu0 0.0
    %236 = vmatpush1.msra.mxu0 0.0
    %237 = vmatprep.subr.mxu0 0.0
    %238 = vmatpush1.msra.mxu0 0.0
    %239 = vmatprep.subr.mxu0 0.0
    %240 = vmatpush1.msra.mxu0 0.0
    %241 = vmatprep.subr.mxu0 0.0
    %242 = vmatpush1.msra.mxu0 0.0
    %243 = vmatprep.mubr.f32.mxu0 0.0
    %244 = vmatmul.mubr.f32.gmra.mrb[0].mxu0 %v87
    %v245 = vpop.f32.mrb[0].mxu0
    %v246 = vadd.f32 %v177, %v245
    %v247 = vpop.f32.mrb[0].mxu0
    %248 = vmatprep.mubr.f32.mxu0 0.0
    %249 = vmatmul.mubr.f32.gmra.mrb[0].mxu0 %v90
    %v250 = vpop.f32.mrb[0].mxu0
    %v251 = vadd.f32 %v177, %v250
    %v252 = vpop.f32.mrb[0].mxu0
    %253 = vdwg.mxu0
    %254 = vst.msk [vmem:[#allocation3] sm:$0xff] %vm167, %v246
    %255 = vst.msk [vmem:[#allocation3 + $0x8] sm:$0xff] %vm167, %v251
    %v256 = vld [vmem:[%s5] sm:$0xff]
    %v257 = vld [vmem:[%s5 + $0x8] sm:$0xff]
    %v258 = vld [vmem:[%s5 + $0x10] sm:$0xff]
    %v259 = vld [vmem:[%s5 + $0x18] sm:$0xff]
    %v260 = vld [vmem:[%s6] sm:$0xff]
    %v261 = vld [vmem:[%s6 + $0x8] sm:$0xff]
    %v262 = vld [vmem:[%s6 + $0x10] sm:$0xff]
    %v263 = vld [vmem:[%s6 + $0x18] sm:$0xff]
    %v264 = vld [vmem:[%s7] sm:$0x1]
    %v265 = vld [vmem:[%s8] sm:$0x1]
    %v266 = vld [vmem:[#allocation2] sm:$0x3]
    %v267 = vld [vmem:[#allocation3 + $0xe] sm:$0x3]
    %vm268 = vcmask 261120
    %v270 = vsel %vm268, 0.0, 0
    %272 = vmatprep.subr.mxu0 0.0
    %273 = vmatpush1.msra.mxu0 %v256
    %274 = vmatprep.subr.mxu0 0.0
    %275 = vmatpush1.msra.mxu0 %v257
    %276 = vmatprep.subr.mxu0 0.0
    %277 = vmatpush1.msra.mxu0 %v258
    %278 = vmatprep.subr.mxu0 0.0
    %279 = vmatpush1.msra.mxu0 %v259
    %280 = vmatprep.subr.mxu0 0.0
    %281 = vmatpush1.msra.mxu0 0.0
    %282 = vmatprep.subr.mxu0 0.0
    %283 = vmatpush1.msra.mxu0 0.0
    %284 = vmatprep.subr.mxu0 0.0
    %285 = vmatpush1.msra.mxu0 0.0
    %286 = vmatprep.subr.mxu0 0.0
    %287 = vmatpush1.msra.mxu0 0.0
    %288 = vmatprep.subr.mxu0 0.0
    %289 = vmatpush1.msra.mxu0 0.0
    %290 = vmatprep.subr.mxu0 0.0
    %291 = vmatpush1.msra.mxu0 0.0
    %292 = vmatprep.subr.mxu0 0.0
    %293 = vmatpush1.msra.mxu0 0.0
    %294 = vmatprep.subr.mxu0 0.0
    %295 = vmatpush1.msra.mxu0 0.0
    %296 = vmatprep.subr.mxu0 0.0
    %297 = vmatpush1.msra.mxu0 0.0
    %298 = vmatprep.subr.mxu0 0.0
    %299 = vmatpush1.msra.mxu0 0.0
    %300 = vmatprep.subr.mxu0 0.0
    %301 = vmatpush1.msra.mxu0 0.0
    %302 = vmatprep.subr.mxu0 0.0
    %303 = vmatpush1.msra.mxu0 0.0
    %304 = vmatprep.subr.mxu0 0.0
    %305 = vmatpush1.msra.mxu0 0.0
    %306 = vmatprep.subr.mxu0 0.0
    %307 = vmatpush1.msra.mxu0 0.0
    %308 = vmatprep.subr.mxu0 0.0
    %309 = vmatpush1.msra.mxu0 0.0
    %310 = vmatprep.subr.mxu0 0.0
    %311 = vmatpush1.msra.mxu0 0.0
    %312 = vmatprep.subr.mxu0 0.0
    %313 = vmatpush1.msra.mxu0 0.0
    %314 = vmatprep.subr.mxu0 0.0
    %315 = vmatpush1.msra.mxu0 0.0
    %316 = vmatprep.subr.mxu0 0.0
    %317 = vmatpush1.msra.mxu0 0.0
    %318 = vmatprep.subr.mxu0 0.0
    %319 = vmatpush1.msra.mxu0 0.0
    %320 = vmatprep.subr.mxu0 0.0
    %321 = vmatpush1.msra.mxu0 0.0
    %322 = vmatprep.subr.mxu0 0.0
    %323 = vmatpush1.msra.mxu0 0.0
    %324 = vmatprep.subr.mxu0 0.0
    %325 = vmatpush1.msra.mxu0 0.0
    %326 = vmatprep.subr.mxu0 0.0
    %327 = vmatpush1.msra.mxu0 0.0
    %328 = vmatprep.subr.mxu0 0.0
    %329 = vmatpush1.msra.mxu0 0.0
    %330 = vmatprep.subr.mxu0 0.0
    %331 = vmatpush1.msra.mxu0 0.0
    %332 = vmatprep.subr.mxu0 0.0
    %333 = vmatpush1.msra.mxu0 0.0
    %334 = vmatprep.subr.mxu0 0.0
    %335 = vmatpush1.msra.mxu0 0.0
    %336 = vmatprep.mubr.f32.mxu0 0.0
    %337 = vmatmul.mubr.f32.gmra.mrb[0].mxu0 %v270
    %v338 = vpop.f32.mrb[0].mxu0
    %v339 = vadd.f32 0.0, %v338
    %v340 = vpop.f32.mrb[0].mxu0
    %341 = vdwg.mxu0
    %342 = vmatprep.subr.mxu0 0.0
    %343 = vmatpush1.msra.mxu0 %v260
    %344 = vmatprep.subr.mxu0 0.0
    %345 = vmatpush1.msra.mxu0 %v261
    %346 = vmatprep.subr.mxu0 0.0
    %347 = vmatpush1.msra.mxu0 %v262
    %348 = vmatprep.subr.mxu0 0.0
    %349 = vmatpush1.msra.mxu0 %v263
    %350 = vmatprep.subr.mxu0 0.0
    %351 = vmatpush1.msra.mxu0 0.0
    %352 = vmatprep.subr.mxu0 0.0
    %353 = vmatpush1.msra.mxu0 0.0
    %354 = vmatprep.subr.mxu0 0.0
    %355 = vmatpush1.msra.mxu0 0.0
    %356 = vmatprep.subr.mxu0 0.0
    %357 = vmatpush1.msra.mxu0 0.0
    %358 = vmatprep.subr.mxu0 0.0
    %359 = vmatpush1.msra.mxu0 0.0
    %360 = vmatprep.subr.mxu0 0.0
    %361 = vmatpush1.msra.mxu0 0.0
    %362 = vmatprep.subr.mxu0 0.0
    %363 = vmatpush1.msra.mxu0 0.0
    %364 = vmatprep.subr.mxu0 0.0
    %365 = vmatpush1.msra.mxu0 0.0
    %366 = vmatprep.subr.mxu0 0.0
    %367 = vmatpush1.msra.mxu0 0.0
    %368 = vmatprep.subr.mxu0 0.0
    %369 = vmatpush1.msra.mxu0 0.0
    %370 = vmatprep.subr.mxu0 0.0
    %371 = vmatpush1.msra.mxu0 0.0
    %372 = vmatprep.subr.mxu0 0.0
    %373 = vmatpush1.msra.mxu0 0.0
    %374 = vmatprep.subr.mxu0 0.0
    %375 = vmatpush1.msra.mxu0 0.0
    %376 = vmatprep.subr.mxu0 0.0
    %377 = vmatpush1.msra.mxu0 0.0
    %378 = vmatprep.subr.mxu0 0.0
    %379 = vmatpush1.msra.mxu0 0.0
    %380 = vmatprep.subr.mxu0 0.0
    %381 = vmatpush1.msra.mxu0 0.0
    %382 = vmatprep.subr.mxu0 0.0
    %383 = vmatpush1.msra.mxu0 0.0
    %384 = vmatprep.subr.mxu0 0.0
    %385 = vmatpush1.msra.mxu0 0.0
    %386 = vmatprep.subr.mxu0 0.0
    %387 = vmatpush1.msra.mxu0 0.0
    %388 = vmatprep.subr.mxu0 0.0
    %389 = vmatpush1.msra.mxu0 0.0
    %390 = vmatprep.subr.mxu0 0.0
    %391 = vmatpush1.msra.mxu0 0.0
    %392 = vmatprep.subr.mxu0 0.0
    %393 = vmatpush1.msra.mxu0 0.0
    %394 = vmatprep.subr.mxu0 0.0
    %395 = vmatpush1.msra.mxu0 0.0
    %396 = vmatprep.subr.mxu0 0.0
    %397 = vmatpush1.msra.mxu0 0.0
    %398 = vmatprep.subr.mxu0 0.0
    %399 = vmatpush1.msra.mxu0 0.0
    %400 = vmatprep.subr.mxu0 0.0
    %401 = vmatpush1.msra.mxu0 0.0
    %402 = vmatprep.subr.mxu0 0.0
    %403 = vmatpush1.msra.mxu0 0.0
    %404 = vmatprep.subr.mxu0 0.0
    %405 = vmatpush1.msra.mxu0 0.0
    %406 = vmatprep.mubr.f32.mxu0 0.0
    %407 = vmatmul.mubr.f32.gmra.mrb[0].mxu0 %v270
    %v408 = vpop.f32.mrb[0].mxu0
    %v409 = vadd.f32 0.0, %v408
    %v410 = vpop.f32.mrb[0].mxu0
    %411 = vdwg.mxu0
    %v412 = vadd.f32 %v266, %v339
    %v413 = vxor.u32 %v412, 2147483648
    %v414 = vmul.f32 %v413, 1.442695
    %v415 = vpow.pop %v414
    %v416 = vadd.f32 %v415, 1.0
    %v417 = vrcp.pop %v416
    %v418 = vmul.f32 1.0, %v417
    %v420 = vlaneseq
    %v421 = vshrl.u32 %v420, 7
    %v422 = vsub.s32 0, %v421
    %v423 = vrot.slane %v264, %v422
    %424 = vrot.lane.b32.xlu0 %v423, 64
    %v425 = vpop.permute.xlu0 %424
    %v427 = vadd.f32 %v339, %v425
    %429 = vrot.lane.b32.xlu0 %v427, 64
    %v430 = vpop.permute.xlu0 %429
    %v432 = vmul.f32 %v418, %v430
    %434 = vrot.lane.b32.xlu0 %v432, 64
    %v435 = vpop.permute.xlu0 %434
    %v437 = vadd.f32 %v266, %v435
    %v438 = vtanh.pop %v437
    %v439 = vsub.f32 1.0, %v418
    %441 = vrot.lane.b32.xlu0 %v438, 96
    %v442 = vpop.permute.xlu0 %441
    %v444 = vmul.f32 %v439, %v442
    %v445 = vmul.f32 %v418, 0.0
    %v446 = vadd.f32 %v444, %v445
    %v447 = vadd.f32 %v267, %v409
    %v448 = vxor.u32 %v447, 2147483648
    %v449 = vmul.f32 %v448, 1.442695
    %v450 = vpow.pop %v449
    %v451 = vadd.f32 %v450, 1.0
    %v452 = vrcp.pop %v451
    %v453 = vmul.f32 1.0, %v452
    %v455 = vlaneseq
    %v456 = vshrl.u32 %v455, 7
    %v457 = vsub.s32 0, %v456
    %v458 = vrot.slane %v265, %v457
    %459 = vrot.lane.b32.xlu0 %v458, 64
    %v460 = vpop.permute.xlu0 %459
    %v462 = vadd.f32 %v409, %v460
    %464 = vrot.lane.b32.xlu0 %v462, 64
    %v465 = vpop.permute.xlu0 %464
    %v467 = vmul.f32 %v453, %v465
    %469 = vrot.lane.b32.xlu0 %v467, 64
    %v470 = vpop.permute.xlu0 %469
    %v472 = vadd.f32 %v267, %v470
    %v473 = vtanh.pop %v472
    %v474 = vsub.f32 1.0, %v453
    %476 = vrot.lane.b32.xlu0 %v473, 96
    %v477 = vpop.permute.xlu0 %476
    %v479 = vmul.f32 %v474, %v477
    %v480 = vmul.f32 %v453, 0.0
    %v481 = vadd.f32 %v479, %v480
    %483 = vrot.lane.b32.xlu0 %v446, 96
    %v484 = vpop.permute.xlu0 %483
    %vm486 = vcmask 254976
    %487 = vst.msk [vmem:[#allocation4] sm:$0x3] %vm486, %v484
    %489 = vrot.lane.b32.xlu0 %v481, 96
    %v490 = vpop.permute.xlu0 %489
    %492 = vst.msk [vmem:[#allocation5 + $0xe] sm:$0x3] %vm486, %v490
    %v493 = vld [vmem:[#allocation2 + $0x2] sm:$0x3]
    %v494 = vld [vmem:[#allocation3 + $0xc] sm:$0x3]
    %v495 = vsel %vm268, %v484, 0
    %497 = vmatprep.subr.mxu0 0.0
    %498 = vmatpush1.msra.mxu0 %v256
    %499 = vmatprep.subr.mxu0 0.0
    %500 = vmatpush1.msra.mxu0 %v257
    %501 = vmatprep.subr.mxu0 0.0
    %502 = vmatpush1.msra.mxu0 %v258
    %503 = vmatprep.subr.mxu0 0.0
    %504 = vmatpush1.msra.mxu0 %v259
    %505 = vmatprep.subr.mxu0 0.0
    %506 = vmatpush1.msra.mxu0 0.0
    %507 = vmatprep.subr.mxu0 0.0
    %508 = vmatpush1.msra.mxu0 0.0
    %509 = vmatprep.subr.mxu0 0.0
    %510 = vmatpush1.msra.mxu0 0.0
    %511 = vmatprep.subr.mxu0 0.0
    %512 = vmatpush1.msra.mxu0 0.0
    %513 = vmatprep.subr.mxu0 0.0
    %514 = vmatpush1.msra.mxu0 0.0
    %515 = vmatprep.subr.mxu0 0.0
    %516 = vmatpush1.msra.mxu0 0.0
    %517 = vmatprep.subr.mxu0 0.0
    %518 = vmatpush1.msra.mxu0 0.0
    %519 = vmatprep.subr.mxu0 0.0
    %520 = vmatpush1.msra.mxu0 0.0
    %521 = vmatprep.subr.mxu0 0.0
    %522 = vmatpush1.msra.mxu0 0.0
    %523 = vmatprep.subr.mxu0 0.0
    %524 = vmatpush1.msra.mxu0 0.0
    %525 = vmatprep.subr.mxu0 0.0
    %526 = vmatpush1.msra.mxu0 0.0
    %527 = vmatprep.subr.mxu0 0.0
    %528 = vmatpush1.msra.mxu0 0.0
    %529 = vmatprep.subr.mxu0 0.0
    %530 = vmatpush1.msra.mxu0 0.0
    %531 = vmatprep.subr.mxu0 0.0
    %532 = vmatpush1.msra.mxu0 0.0
    %533 = vmatprep.subr.mxu0 0.0
    %534 = vmatpush1.msra.mxu0 0.0
    %535 = vmatprep.subr.mxu0 0.0
    %536 = vmatpush1.msra.mxu0 0.0
    %537 = vmatprep.subr.mxu0 0.0
    %538 = vmatpush1.msra.mxu0 0.0
    %539 = vmatprep.subr.mxu0 0.0
    %540 = vmatpush1.msra.mxu0 0.0
    %541 = vmatprep.subr.mxu0 0.0
    %542 = vmatpush1.msra.mxu0 0.0
    %543 = vmatprep.subr.mxu0 0.0
    %544 = vmatpush1.msra.mxu0 0.0
    %545 = vmatprep.subr.mxu0 0.0
    %546 = vmatpush1.msra.mxu0 0.0
    %547 = vmatprep.subr.mxu0 0.0
    %548 = vmatpush1.msra.mxu0 0.0
    %549 = vmatprep.subr.mxu0 0.0
    %550 = vmatpush1.msra.mxu0 0.0
    %551 = vmatprep.subr.mxu0 0.0
    %552 = vmatpush1.msra.mxu0 0.0
    %553 = vmatprep.subr.mxu0 0.0
    %554 = vmatpush1.msra.mxu0 0.0
    %555 = vmatprep.subr.mxu0 0.0
    %556 = vmatpush1.msra.mxu0 0.0
    %557 = vmatprep.subr.mxu0 0.0
    %558 = vmatpush1.msra.mxu0 0.0
    %559 = vmatprep.subr.mxu0 0.0
    %560 = vmatpush1.msra.mxu0 0.0
    %561 = vmatprep.mubr.f32.mxu0 0.0
    %562 = vmatmul.mubr.f32.gmra.mrb[0].mxu0 %v495
    %v563 = vpop.f32.mrb[0].mxu0
    %v564 = vadd.f32 0.0, %v563
    %v565 = vpop.f32.mrb[0].mxu0
    %566 = vdwg.mxu0
    %v567 = vsel %vm268, %v490, 0
    %569 = vmatprep.subr.mxu0 0.0
    %570 = vmatpush1.msra.mxu0 %v260
    %571 = vmatprep.subr.mxu0 0.0
    %572 = vmatpush1.msra.mxu0 %v261
    %573 = vmatprep.subr.mxu0 0.0
    %574 = vmatpush1.msra.mxu0 %v262
    %575 = vmatprep.subr.mxu0 0.0
    %576 = vmatpush1.msra.mxu0 %v263
    %577 = vmatprep.subr.mxu0 0.0
    %578 = vmatpush1.msra.mxu0 0.0
    %579 = vmatprep.subr.mxu0 0.0
    %580 = vmatpush1.msra.mxu0 0.0
    %581 = vmatprep.subr.mxu0 0.0
    %582 = vmatpush1.msra.mxu0 0.0
    %583 = vmatprep.subr.mxu0 0.0
    %584 = vmatpush1.msra.mxu0 0.0
    %585 = vmatprep.subr.mxu0 0.0
    %586 = vmatpush1.msra.mxu0 0.0
    %587 = vmatprep.subr.mxu0 0.0
    %588 = vmatpush1.msra.mxu0 0.0
    %589 = vmatprep.subr.mxu0 0.0
    %590 = vmatpush1.msra.mxu0 0.0
    %591 = vmatprep.subr.mxu0 0.0
    %592 = vmatpush1.msra.mxu0 0.0
    %593 = vmatprep.subr.mxu0 0.0
    %594 = vmatpush1.msra.mxu0 0.0
    %595 = vmatprep.subr.mxu0 0.0
    %596 = vmatpush1.msra.mxu0 0.0
    %597 = vmatprep.subr.mxu0 0.0
    %598 = vmatpush1.msra.mxu0 0.0
    %599 = vmatprep.subr.mxu0 0.0
    %600 = vmatpush1.msra.mxu0 0.0
    %601 = vmatprep.subr.mxu0 0.0
    %602 = vmatpush1.msra.mxu0 0.0
    %603 = vmatprep.subr.mxu0 0.0
    %604 = vmatpush1.msra.mxu0 0.0
    %605 = vmatprep.subr.mxu0 0.0
    %606 = vmatpush1.msra.mxu0 0.0
    %607 = vmatprep.subr.mxu0 0.0
    %608 = vmatpush1.msra.mxu0 0.0
    %609 = vmatprep.subr.mxu0 0.0
    %610 = vmatpush1.msra.mxu0 0.0
    %611 = vmatprep.subr.mxu0 0.0
    %612 = vmatpush1.msra.mxu0 0.0
    %613 = vmatprep.subr.mxu0 0.0
    %614 = vmatpush1.msra.mxu0 0.0
    %615 = vmatprep.subr.mxu0 0.0
    %616 = vmatpush1.msra.mxu0 0.0
    %617 = vmatprep.subr.mxu0 0.0
    %618 = vmatpush1.msra.mxu0 0.0
    %619 = vmatprep.subr.mxu0 0.0
    %620 = vmatpush1.msra.mxu0 0.0
    %621 = vmatprep.subr.mxu0 0.0
    %622 = vmatpush1.msra.mxu0 0.0
    %623 = vmatprep.subr.mxu0 0.0
    %624 = vmatpush1.msra.mxu0 0.0
    %625 = vmatprep.subr.mxu0 0.0
    %626 = vmatpush1.msra.mxu0 0.0
    %627 = vmatprep.subr.mxu0 0.0
    %628 = vmatpush1.msra.mxu0 0.0
    %629 = vmatprep.subr.mxu0 0.0
    %630 = vmatpush1.msra.mxu0 0.0
    %631 = vmatprep.subr.mxu0 0.0
    %632 = vmatpush1.msra.mxu0 0.0
    %633 = vmatprep.mubr.f32.mxu0 0.0
    %634 = vmatmul.mubr.f32.gmra.mrb[0].mxu0 %v567
    %v635 = vpop.f32.mrb[0].mxu0
    %v636 = vadd.f32 0.0, %v635
    %v637 = vpop.f32.mrb[0].mxu0
    %638 = vdwg.mxu0
    %v639 = vadd.f32 %v493, %v564
    %v640 = vxor.u32 %v639, 2147483648
    %v641 = vmul.f32 %v640, 1.442695
    %v642 = vpow.pop %v641
    %v643 = vadd.f32 %v642, 1.0
    %v644 = vrcp.pop %v643
    %v645 = vmul.f32 1.0, %v644
    %v646 = vadd.f32 %v564, %v425
    %648 = vrot.lane.b32.xlu0 %v646, 64
    %v649 = vpop.permute.xlu0 %648
    %v651 = vmul.f32 %v645, %v649
    %653 = vrot.lane.b32.xlu0 %v651, 64
    %v654 = vpop.permute.xlu0 %653
    %v656 = vadd.f32 %v493, %v654
    %v657 = vtanh.pop %v656
    %v658 = vsub.f32 1.0, %v645
    %660 = vrot.lane.b32.xlu0 %v657, 96
    %v661 = vpop.permute.xlu0 %660
    %v663 = vmul.f32 %v658, %v661
    %v664 = vmul.f32 %v645, %v446
    %v665 = vadd.f32 %v663, %v664
    %v666 = vadd.f32 %v494, %v636
    %v667 = vxor.u32 %v666, 2147483648
    %v668 = vmul.f32 %v667, 1.442695
    %v669 = vpow.pop %v668
    %v670 = vadd.f32 %v669, 1.0
    %v671 = vrcp.pop %v670
    %v672 = vmul.f32 1.0, %v671
    %v673 = vadd.f32 %v636, %v460
    %675 = vrot.lane.b32.xlu0 %v673, 64
    %v676 = vpop.permute.xlu0 %675
    %v678 = vmul.f32 %v672, %v676
    %680 = vrot.lane.b32.xlu0 %v678, 64
    %v681 = vpop.permute.xlu0 %680
    %v683 = vadd.f32 %v494, %v681
    %v684 = vtanh.pop %v683
    %v685 = vsub.f32 1.0, %v672
    %687 = vrot.lane.b32.xlu0 %v684, 96
    %v688 = vpop.permute.xlu0 %687
    %v690 = vmul.f32 %v685, %v688
    %v691 = vmul.f32 %v672, %v481
    %v692 = vadd.f32 %v690, %v691
    %694 = vrot.lane.b32.xlu0 %v665, 96
    %v695 = vpop.permute.xlu0 %694
    %697 = vst.msk [vmem:[#allocation4 + $0x2] sm:$0x3] %vm486, %v695
    %699 = vrot.lane.b32.xlu0 %v692, 96
    %v700 = vpop.permute.xlu0 %699
    %702 = vst.msk [vmem:[#allocation5 + $0xc] sm:$0x3] %vm486, %v700
    %v703 = vld [vmem:[#allocation2 + $0x4] sm:$0x3]
    %v704 = vld [vmem:[#allocation3 + $0xa] sm:$0x3]
    %v705 = vsel %vm268, %v695, 0
    %707 = vmatprep.subr.mxu0 0.0
    %708 = vmatpush1.msra.mxu0 %v256
    %709 = vmatprep.subr.mxu0 0.0
    %710 = vmatpush1.msra.mxu0 %v257
    %711 = vmatprep.subr.mxu0 0.0
    %712 = vmatpush1.msra.mxu0 %v258
    %713 = vmatprep.subr.mxu0 0.0
    %714 = vmatpush1.msra.mxu0 %v259
    %715 = vmatprep.subr.mxu0 0.0
    %716 = vmatpush1.msra.mxu0 0.0
    %717 = vmatprep.subr.mxu0 0.0
    %718 = vmatpush1.msra.mxu0 0.0
    %719 = vmatprep.subr.mxu0 0.0
    %720 = vmatpush1.msra.mxu0 0.0
    %721 = vmatprep.subr.mxu0 0.0
    %722 = vmatpush1.msra.mxu0 0.0
    %723 = vmatprep.subr.mxu0 0.0
    %724 = vmatpush1.msra.mxu0 0.0
    %725 = vmatprep.subr.mxu0 0.0
    %726 = vmatpush1.msra.mxu0 0.0
    %727 = vmatprep.subr.mxu0 0.0
    %728 = vmatpush1.msra.mxu0 0.0
    %729 = vmatprep.subr.mxu0 0.0
    %730 = vmatpush1.msra.mxu0 0.0
    %731 = vmatprep.subr.mxu0 0.0
    %732 = vmatpush1.msra.mxu0 0.0
    %733 = vmatprep.subr.mxu0 0.0
    %734 = vmatpush1.msra.mxu0 0.0
    %735 = vmatprep.subr.mxu0 0.0
    %736 = vmatpush1.msra.mxu0 0.0
    %737 = vmatprep.subr.mxu0 0.0
    %738 = vmatpush1.msra.mxu0 0.0
    %739 = vmatprep.subr.mxu0 0.0
    %740 = vmatpush1.msra.mxu0 0.0
    %741 = vmatprep.subr.mxu0 0.0
    %742 = vmatpush1.msra.mxu0 0.0
    %743 = vmatprep.subr.mxu0 0.0
    %744 = vmatpush1.msra.mxu0 0.0
    %745 = vmatprep.subr.mxu0 0.0
    %746 = vmatpush1.msra.mxu0 0.0
    %747 = vmatprep.subr.mxu0 0.0
    %748 = vmatpush1.msra.mxu0 0.0
    %749 = vmatprep.subr.mxu0 0.0
    %750 = vmatpush1.msra.mxu0 0.0
    %751 = vmatprep.subr.mxu0 0.0
    %752 = vmatpush1.msra.mxu0 0.0
    %753 = vmatprep.subr.mxu0 0.0
    %754 = vmatpush1.msra.mxu0 0.0
    %755 = vmatprep.subr.mxu0 0.0
    %756 = vmatpush1.msra.mxu0 0.0
    %757 = vmatprep.subr.mxu0 0.0
    %758 = vmatpush1.msra.mxu0 0.0
    %759 = vmatprep.subr.mxu0 0.0
    %760 = vmatpush1.msra.mxu0 0.0
    %761 = vmatprep.subr.mxu0 0.0
    %762 = vmatpush1.msra.mxu0 0.0
    %763 = vmatprep.subr.mxu0 0.0
    %764 = vmatpush1.msra.mxu0 0.0
    %765 = vmatprep.subr.mxu0 0.0
    %766 = vmatpush1.msra.mxu0 0.0
    %767 = vmatprep.subr.mxu0 0.0
    %768 = vmatpush1.msra.mxu0 0.0
    %769 = vmatprep.subr.mxu0 0.0
    %770 = vmatpush1.msra.mxu0 0.0
    %771 = vmatprep.mubr.f32.mxu0 0.0
    %772 = vmatmul.mubr.f32.gmra.mrb[0].mxu0 %v705
    %v773 = vpop.f32.mrb[0].mxu0
    %v774 = vadd.f32 0.0, %v773
    %v775 = vpop.f32.mrb[0].mxu0
    %776 = vdwg.mxu0
    %v777 = vsel %vm268, %v700, 0
    %779 = vmatprep.subr.mxu0 0.0
    %780 = vmatpush1.msra.mxu0 %v260
    %781 = vmatprep.subr.mxu0 0.0
    %782 = vmatpush1.msra.mxu0 %v261
    %783 = vmatprep.subr.mxu0 0.0
    %784 = vmatpush1.msra.mxu0 %v262
    %785 = vmatprep.subr.mxu0 0.0
    %786 = vmatpush1.msra.mxu0 %v263
    %787 = vmatprep.subr.mxu0 0.0
    %788 = vmatpush1.msra.mxu0 0.0
    %789 = vmatprep.subr.mxu0 0.0
    %790 = vmatpush1.msra.mxu0 0.0
    %791 = vmatprep.subr.mxu0 0.0
    %792 = vmatpush1.msra.mxu0 0.0
    %793 = vmatprep.subr.mxu0 0.0
    %794 = vmatpush1.msra.mxu0 0.0
    %795 = vmatprep.subr.mxu0 0.0
    %796 = vmatpush1.msra.mxu0 0.0
    %797 = vmatprep.subr.mxu0 0.0
    %798 = vmatpush1.msra.mxu0 0.0
    %799 = vmatprep.subr.mxu0 0.0
    %800 = vmatpush1.msra.mxu0 0.0
    %801 = vmatprep.subr.mxu0 0.0
    %802 = vmatpush1.msra.mxu0 0.0
    %803 = vmatprep.subr.mxu0 0.0
    %804 = vmatpush1.msra.mxu0 0.0
    %805 = vmatprep.subr.mxu0 0.0
    %806 = vmatpush1.msra.mxu0 0.0
    %807 = vmatprep.subr.mxu0 0.0
    %808 = vmatpush1.msra.mxu0 0.0
    %809 = vmatprep.subr.mxu0 0.0
    %810 = vmatpush1.msra.mxu0 0.0
    %811 = vmatprep.subr.mxu0 0.0
    %812 = vmatpush1.msra.mxu0 0.0
    %813 = vmatprep.subr.mxu0 0.0
    %814 = vmatpush1.msra.mxu0 0.0
    %815 = vmatprep.subr.mxu0 0.0
    %816 = vmatpush1.msra.mxu0 0.0
    %817 = vmatprep.subr.mxu0 0.0
    %818 = vmatpush1.msra.mxu0 0.0
    %819 = vmatprep.subr.mxu0 0.0
    %820 = vmatpush1.msra.mxu0 0.0
    %821 = vmatprep.subr.mxu0 0.0
    %822 = vmatpush1.msra.mxu0 0.0
    %823 = vmatprep.subr.mxu0 0.0
    %824 = vmatpush1.msra.mxu0 0.0
    %825 = vmatprep.subr.mxu0 0.0
    %826 = vmatpush1.msra.mxu0 0.0
    %827 = vmatprep.subr.mxu0 0.0
    %828 = vmatpush1.msra.mxu0 0.0
    %829 = vmatprep.subr.mxu0 0.0
    %830 = vmatpush1.msra.mxu0 0.0
    %831 = vmatprep.subr.mxu0 0.0
    %832 = vmatpush1.msra.mxu0 0.0
    %833 = vmatprep.subr.mxu0 0.0
    %834 = vmatpush1.msra.mxu0 0.0
    %835 = vmatprep.subr.mxu0 0.0
    %836 = vmatpush1.msra.mxu0 0.0
    %837 = vmatprep.subr.mxu0 0.0
    %838 = vmatpush1.msra.mxu0 0.0
    %839 = vmatprep.subr.mxu0 0.0
    %840 = vmatpush1.msra.mxu0 0.0
    %841 = vmatprep.subr.mxu0 0.0
    %842 = vmatpush1.msra.mxu0 0.0
    %843 = vmatprep.mubr.f32.mxu0 0.0
    %844 = vmatmul.mubr.f32.gmra.mrb[0].mxu0 %v777
    %v845 = vpop.f32.mrb[0].mxu0
    %v846 = vadd.f32 0.0, %v845
    %v847 = vpop.f32.mrb[0].mxu0
    %848 = vdwg.mxu0
    %v849 = vadd.f32 %v703, %v774
    %v850 = vxor.u32 %v849, 2147483648
    %v851 = vmul.f32 %v850, 1.442695
    %v852 = vpow.pop %v851
    %v853 = vadd.f32 %v852, 1.0
    %v854 = vrcp.pop %v853
    %v855 = vmul.f32 1.0, %v854
    %v856 = vadd.f32 %v774, %v425
    %858 = vrot.lane.b32.xlu0 %v856, 64
    %v859 = vpop.permute.xlu0 %858
    %v861 = vmul.f32 %v855, %v859
    %863 = vrot.lane.b32.xlu0 %v861, 64
    %v864 = vpop.permute.xlu0 %863
    %v866 = vadd.f32 %v703, %v864
    %v867 = vtanh.pop %v866
    %v868 = vsub.f32 1.0, %v855
    %870 = vrot.lane.b32.xlu0 %v867, 96
    %v871 = vpop.permute.xlu0 %870
    %v873 = vmul.f32 %v868, %v871
    %v874 = vmul.f32 %v855, %v665
    %v875 = vadd.f32 %v873, %v874
    %v876 = vadd.f32 %v704, %v846
    %v877 = vxor.u32 %v876, 2147483648
    %v878 = vmul.f32 %v877, 1.442695
    %v879 = vpow.pop %v878
    %v880 = vadd.f32 %v879, 1.0
    %v881 = vrcp.pop %v880
    %v882 = vmul.f32 1.0, %v881
    %v883 = vadd.f32 %v846, %v460
    %885 = vrot.lane.b32.xlu0 %v883, 64
    %v886 = vpop.permute.xlu0 %885
    %v888 = vmul.f32 %v882, %v886
    %890 = vrot.lane.b32.xlu0 %v888, 64
    %v891 = vpop.permute.xlu0 %890
    %v893 = vadd.f32 %v704, %v891
    %v894 = vtanh.pop %v893
    %v895 = vsub.f32 1.0, %v882
    %897 = vrot.lane.b32.xlu0 %v894, 96
    %v898 = vpop.permute.xlu0 %897
    %v900 = vmul.f32 %v895, %v898
    %v901 = vmul.f32 %v882, %v692
    %v902 = vadd.f32 %v900, %v901
    %904 = vrot.lane.b32.xlu0 %v875, 96
    %v905 = vpop.permute.xlu0 %904
    %907 = vst.msk [vmem:[#allocation4 + $0x4] sm:$0x3] %vm486, %v905
    %909 = vrot.lane.b32.xlu0 %v902, 96
    %v910 = vpop.permute.xlu0 %909
    %912 = vst.msk [vmem:[#allocation5 + $0xa] sm:$0x3] %vm486, %v910
    %v913 = vld [vmem:[#allocation2 + $0x6] sm:$0x3]
    %v914 = vld [vmem:[#allocation3 + $0x8] sm:$0x3]
    %v915 = vsel %vm268, %v905, 0
    %917 = vmatprep.subr.mxu0 0.0
    %918 = vmatpush1.msra.mxu0 %v256
    %919 = vmatprep.subr.mxu0 0.0
    %920 = vmatpush1.msra.mxu0 %v257
    %921 = vmatprep.subr.mxu0 0.0
    %922 = vmatpush1.msra.mxu0 %v258
    %923 = vmatprep.subr.mxu0 0.0
    %924 = vmatpush1.msra.mxu0 %v259
    %925 = vmatprep.subr.mxu0 0.0
    %926 = vmatpush1.msra.mxu0 0.0
    %927 = vmatprep.subr.mxu0 0.0
    %928 = vmatpush1.msra.mxu0 0.0
    %929 = vmatprep.subr.mxu0 0.0
    %930 = vmatpush1.msra.mxu0 0.0
    %931 = vmatprep.subr.mxu0 0.0
    %932 = vmatpush1.msra.mxu0 0.0
    %933 = vmatprep.subr.mxu0 0.0
    %934 = vmatpush1.msra.mxu0 0.0
    %935 = vmatprep.subr.mxu0 0.0
    %936 = vmatpush1.msra.mxu0 0.0
    %937 = vmatprep.subr.mxu0 0.0
    %938 = vmatpush1.msra.mxu0 0.0
    %939 = vmatprep.subr.mxu0 0.0
    %940 = vmatpush1.msra.mxu0 0.0
    %941 = vmatprep.subr.mxu0 0.0
    %942 = vmatpush1.msra.mxu0 0.0
    %943 = vmatprep.subr.mxu0 0.0
    %944 = vmatpush1.msra.mxu0 0.0
    %945 = vmatprep.subr.mxu0 0.0
    %946 = vmatpush1.msra.mxu0 0.0
    %947 = vmatprep.subr.mxu0 0.0
    %948 = vmatpush1.msra.mxu0 0.0
    %949 = vmatprep.subr.mxu0 0.0
    %950 = vmatpush1.msra.mxu0 0.0
    %951 = vmatprep.subr.mxu0 0.0
    %952 = vmatpush1.msra.mxu0 0.0
    %953 = vmatprep.subr.mxu0 0.0
    %954 = vmatpush1.msra.mxu0 0.0
    %955 = vmatprep.subr.mxu0 0.0
    %956 = vmatpush1.msra.mxu0 0.0
    %957 = vmatprep.subr.mxu0 0.0
    %958 = vmatpush1.msra.mxu0 0.0
    %959 = vmatprep.subr.mxu0 0.0
    %960 = vmatpush1.msra.mxu0 0.0
    %961 = vmatprep.subr.mxu0 0.0
    %962 = vmatpush1.msra.mxu0 0.0
    %963 = vmatprep.subr.mxu0 0.0
    %964 = vmatpush1.msra.mxu0 0.0
    %965 = vmatprep.subr.mxu0 0.0
    %966 = vmatpush1.msra.mxu0 0.0
    %967 = vmatprep.subr.mxu0 0.0
    %968 = vmatpush1.msra.mxu0 0.0
    %969 = vmatprep.subr.mxu0 0.0
    %970 = vmatpush1.msra.mxu0 0.0
    %971 = vmatprep.subr.mxu0 0.0
    %972 = vmatpush1.msra.mxu0 0.0
    %973 = vmatprep.subr.mxu0 0.0
    %974 = vmatpush1.msra.mxu0 0.0
    %975 = vmatprep.subr.mxu0 0.0
    %976 = vmatpush1.msra.mxu0 0.0
    %977 = vmatprep.subr.mxu0 0.0
    %978 = vmatpush1.msra.mxu0 0.0
    %979 = vmatprep.subr.mxu0 0.0
    %980 = vmatpush1.msra.mxu0 0.0
    %981 = vmatprep.mubr.f32.mxu0 0.0
    %982 = vmatmul.mubr.f32.gmra.mrb[0].mxu0 %v915
    %v983 = vpop.f32.mrb[0].mxu0
    %v984 = vadd.f32 0.0, %v983
    %v985 = vpop.f32.mrb[0].mxu0
    %986 = vdwg.mxu0
    %v987 = vsel %vm268, %v910, 0
    %989 = vmatprep.subr.mxu0 0.0
    %990 = vmatpush1.msra.mxu0 %v260
    %991 = vmatprep.subr.mxu0 0.0
    %992 = vmatpush1.msra.mxu0 %v261
    %993 = vmatprep.subr.mxu0 0.0
    %994 = vmatpush1.msra.mxu0 %v262
    %995 = vmatprep.subr.mxu0 0.0
    %996 = vmatpush1.msra.mxu0 %v263
    %997 = vmatprep.subr.mxu0 0.0
    %998 = vmatpush1.msra.mxu0 0.0
    %999 = vmatprep.subr.mxu0 0.0
    %1000 = vmatpush1.msra.mxu0 0.0
    %1001 = vmatprep.subr.mxu0 0.0
    %1002 = vmatpush1.msra.mxu0 0.0
    %1003 = vmatprep.subr.mxu0 0.0
    %1004 = vmatpush1.msra.mxu0 0.0
    %1005 = vmatprep.subr.mxu0 0.0
    %1006 = vmatpush1.msra.mxu0 0.0
    %1007 = vmatprep.subr.mxu0 0.0
    %1008 = vmatpush1.msra.mxu0 0.0
    %1009 = vmatprep.subr.mxu0 0.0
    %1010 = vmatpush1.msra.mxu0 0.0
    %1011 = vmatprep.subr.mxu0 0.0
    %1012 = vmatpush1.msra.mxu0 0.0
    %1013 = vmatprep.subr.mxu0 0.0
    %1014 = vmatpush1.msra.mxu0 0.0
    %1015 = vmatprep.subr.mxu0 0.0
    %1016 = vmatpush1.msra.mxu0 0.0
    %1017 = vmatprep.subr.mxu0 0.0
    %1018 = vmatpush1.msra.mxu0 0.0
    %1019 = vmatprep.subr.mxu0 0.0
    %1020 = vmatpush1.msra.mxu0 0.0
    %1021 = vmatprep.subr.mxu0 0.0
    %1022 = vmatpush1.msra.mxu0 0.0
    %1023 = vmatprep.subr.mxu0 0.0
    %1024 = vmatpush1.msra.mxu0 0.0
    %1025 = vmatprep.subr.mxu0 0.0
    %1026 = vmatpush1.msra.mxu0 0.0
    %1027 = vmatprep.subr.mxu0 0.0
    %1028 = vmatpush1.msra.mxu0 0.0
    %1029 = vmatprep.subr.mxu0 0.0
    %1030 = vmatpush1.msra.mxu0 0.0
    %1031 = vmatprep.subr.mxu0 0.0
    %1032 = vmatpush1.msra.mxu0 0.0
    %1033 = vmatprep.subr.mxu0 0.0
    %1034 = vmatpush1.msra.mxu0 0.0
    %1035 = vmatprep.subr.mxu0 0.0
    %1036 = vmatpush1.msra.mxu0 0.0
    %1037 = vmatprep.subr.mxu0 0.0
    %1038 = vmatpush1.msra.mxu0 0.0
    %1039 = vmatprep.subr.mxu0 0.0
    %1040 = vmatpush1.msra.mxu0 0.0
    %1041 = vmatprep.subr.mxu0 0.0
    %1042 = vmatpush1.msra.mxu0 0.0
    %1043 = vmatprep.subr.mxu0 0.0
    %1044 = vmatpush1.msra.mxu0 0.0
    %1045 = vmatprep.subr.mxu0 0.0
    %1046 = vmatpush1.msra.mxu0 0.0
    %1047 = vmatprep.subr.mxu0 0.0
    %1048 = vmatpush1.msra.mxu0 0.0
    %1049 = vmatprep.subr.mxu0 0.0
    %1050 = vmatpush1.msra.mxu0 0.0
    %1051 = vmatprep.subr.mxu0 0.0
    %1052 = vmatpush1.msra.mxu0 0.0
    %1053 = vmatprep.mubr.f32.mxu0 0.0
    %1054 = vmatmul.mubr.f32.gmra.mrb[0].mxu0 %v987
    %v1055 = vpop.f32.mrb[0].mxu0
    %v1056 = vadd.f32 0.0, %v1055
    %v1057 = vpop.f32.mrb[0].mxu0
    %1058 = vdwg.mxu0
    %v1059 = vadd.f32 %v913, %v984
    %v1060 = vxor.u32 %v1059, 2147483648
    %v1061 = vmul.f32 %v1060, 1.442695
    %v1062 = vpow.pop %v1061
    %v1063 = vadd.f32 %v1062, 1.0
    %v1064 = vrcp.pop %v1063
    %v1065 = vmul.f32 1.0, %v1064
    %v1066 = vadd.f32 %v984, %v425
    %1068 = vrot.lane.b32.xlu0 %v1066, 64
    %v1069 = vpop.permute.xlu0 %1068
    %v1071 = vmul.f32 %v1065, %v1069
    %1073 = vrot.lane.b32.xlu0 %v1071, 64
    %v1074 = vpop.permute.xlu0 %1073
    %v1076 = vadd.f32 %v913, %v1074
    %v1077 = vtanh.pop %v1076
    %v1078 = vsub.f32 1.0, %v1065
    %1080 = vrot.lane.b32.xlu0 %v1077, 96
    %v1081 = vpop.permute.xlu0 %1080
    %v1083 = vmul.f32 %v1078, %v1081
    %v1084 = vmul.f32 %v1065, %v875
    %v1085 = vadd.f32 %v1083, %v1084
    %v1086 = vadd.f32 %v914, %v1056
    %v1087 = vxor.u32 %v1086, 2147483648
    %v1088 = vmul.f32 %v1087, 1.442695
    %v1089 = vpow.pop %v1088
    %v1090 = vadd.f32 %v1089, 1.0
    %v1091 = vrcp.pop %v1090
    %v1092 = vmul.f32 1.0, %v1091
    %v1093 = vadd.f32 %v1056, %v460
    %1095 = vrot.lane.b32.xlu0 %v1093, 64
    %v1096 = vpop.permute.xlu0 %1095
    %v1098 = vmul.f32 %v1092, %v1096
    %1100 = vrot.lane.b32.xlu0 %v1098, 64
    %v1101 = vpop.permute.xlu0 %1100
    %v1103 = vadd.f32 %v914, %v1101
    %v1104 = vtanh.pop %v1103
    %v1105 = vsub.f32 1.0, %v1092
    %1107 = vrot.lane.b32.xlu0 %v1104, 96
    %v1108 = vpop.permute.xlu0 %1107
    %v1110 = vmul.f32 %v1105, %v1108
    %v1111 = vmul.f32 %v1092, %v902
    %v1112 = vadd.f32 %v1110, %v1111
    %1114 = vrot.lane.b32.xlu0 %v1085, 96
    %v1115 = vpop.permute.xlu0 %1114
    %1117 = vst.msk [vmem:[#allocation4 + $0x6] sm:$0x3] %vm486, %v1115
    %1119 = vrot.lane.b32.xlu0 %v1112, 96
    %v1120 = vpop.permute.xlu0 %1119
    %1122 = vst.msk [vmem:[#allocation5 + $0x8] sm:$0x3] %vm486, %v1120
    %v1123 = vld [vmem:[#allocation2 + $0x8] sm:$0x3]
    %v1124 = vld [vmem:[#allocation3 + $0x6] sm:$0x3]
    %v1125 = vsel %vm268, %v1115, 0
    %1127 = vmatprep.subr.mxu0 0.0
    %1128 = vmatpush1.msra.mxu0 %v256
    %1129 = vmatprep.subr.mxu0 0.0
    %1130 = vmatpush1.msra.mxu0 %v257
    %1131 = vmatprep.subr.mxu0 0.0
    %1132 = vmatpush1.msra.mxu0 %v258
    %1133 = vmatprep.subr.mxu0 0.0
    %1134 = vmatpush1.msra.mxu0 %v259
    %1135 = vmatprep.subr.mxu0 0.0
    %1136 = vmatpush1.msra.mxu0 0.0
    %1137 = vmatprep.subr.mxu0 0.0
    %1138 = vmatpush1.msra.mxu0 0.0
    %1139 = vmatprep.subr.mxu0 0.0
    %1140 = vmatpush1.msra.mxu0 0.0
    %1141 = vmatprep.subr.mxu0 0.0
    %1142 = vmatpush1.msra.mxu0 0.0
    %1143 = vmatprep.subr.mxu0 0.0
    %1144 = vmatpush1.msra.mxu0 0.0
    %1145 = vmatprep.subr.mxu0 0.0
    %1146 = vmatpush1.msra.mxu0 0.0
    %1147 = vmatprep.subr.mxu0 0.0
    %1148 = vmatpush1.msra.mxu0 0.0
    %1149 = vmatprep.subr.mxu0 0.0
    %1150 = vmatpush1.msra.mxu0 0.0
    %1151 = vmatprep.subr.mxu0 0.0
    %1152 = vmatpush1.msra.mxu0 0.0
    %1153 = vmatprep.subr.mxu0 0.0
    %1154 = vmatpush1.msra.mxu0 0.0
    %1155 = vmatprep.subr.mxu0 0.0
    %1156 = vmatpush1.msra.mxu0 0.0
    %1157 = vmatprep.subr.mxu0 0.0
    %1158 = vmatpush1.msra.mxu0 0.0
    %1159 = vmatprep.subr.mxu0 0.0
    %1160 = vmatpush1.msra.mxu0 0.0
    %1161 = vmatprep.subr.mxu0 0.0
    %1162 = vmatpush1.msra.mxu0 0.0
    %1163 = vmatprep.subr.mxu0 0.0
    %1164 = vmatpush1.msra.mxu0 0.0
    %1165 = vmatprep.subr.mxu0 0.0
    %1166 = vmatpush1.msra.mxu0 0.0
    %1167 = vmatprep.subr.mxu0 0.0
    %1168 = vmatpush1.msra.mxu0 0.0
    %1169 = vmatprep.subr.mxu0 0.0
    %1170 = vmatpush1.msra.mxu0 0.0
    %1171 = vmatprep.subr.mxu0 0.0
    %1172 = vmatpush1.msra.mxu0 0.0
    %1173 = vmatprep.subr.mxu0 0.0
    %1174 = vmatpush1.msra.mxu0 0.0
    %1175 = vmatprep.subr.mxu0 0.0
    %1176 = vmatpush1.msra.mxu0 0.0
    %1177 = vmatprep.subr.mxu0 0.0
    %1178 = vmatpush1.msra.mxu0 0.0
    %1179 = vmatprep.subr.mxu0 0.0
    %1180 = vmatpush1.msra.mxu0 0.0
    %1181 = vmatprep.subr.mxu0 0.0
    %1182 = vmatpush1.msra.mxu0 0.0
    %1183 = vmatprep.subr.mxu0 0.0
    %1184 = vmatpush1.msra.mxu0 0.0
    %1185 = vmatprep.subr.mxu0 0.0
    %1186 = vmatpush1.msra.mxu0 0.0
    %1187 = vmatprep.subr.mxu0 0.0
    %1188 = vmatpush1.msra.mxu0 0.0
    %1189 = vmatprep.subr.mxu0 0.0
    %1190 = vmatpush1.msra.mxu0 0.0
    %1191 = vmatprep.mubr.f32.mxu0 0.0
    %1192 = vmatmul.mubr.f32.gmra.mrb[0].mxu0 %v1125
    %v1193 = vpop.f32.mrb[0].mxu0
    %v1194 = vadd.f32 0.0, %v1193
    %v1195 = vpop.f32.mrb[0].mxu0
    %1196 = vdwg.mxu0
    %v1197 = vsel %vm268, %v1120, 0
    %1199 = vmatprep.subr.mxu0 0.0
    %1200 = vmatpush1.msra.mxu0 %v260
    %1201 = vmatprep.subr.mxu0 0.0
    %1202 = vmatpush1.msra.mxu0 %v261
    %1203 = vmatprep.subr.mxu0 0.0
    %1204 = vmatpush1.msra.mxu0 %v262
    %1205 = vmatprep.subr.mxu0 0.0
    %1206 = vmatpush1.msra.mxu0 %v263
    %1207 = vmatprep.subr.mxu0 0.0
    %1208 = vmatpush1.msra.mxu0 0.0
    %1209 = vmatprep.subr.mxu0 0.0
    %1210 = vmatpush1.msra.mxu0 0.0
    %1211 = vmatprep.subr.mxu0 0.0
    %1212 = vmatpush1.msra.mxu0 0.0
    %1213 = vmatprep.subr.mxu0 0.0
    %1214 = vmatpush1.msra.mxu0 0.0
    %1215 = vmatprep.subr.mxu0 0.0
    %1216 = vmatpush1.msra.mxu0 0.0
    %1217 = vmatprep.subr.mxu0 0.0
    %1218 = vmatpush1.msra.mxu0 0.0
    %1219 = vmatprep.subr.mxu0 0.0
    %1220 = vmatpush1.msra.mxu0 0.0
    %1221 = vmatprep.subr.mxu0 0.0
    %1222 = vmatpush1.msra.mxu0 0.0
    %1223 = vmatprep.subr.mxu0 0.0
    %1224 = vmatpush1.msra.mxu0 0.0
    %1225 = vmatprep.subr.mxu0 0.0
    %1226 = vmatpush1.msra.mxu0 0.0
    %1227 = vmatprep.subr.mxu0 0.0
    %1228 = vmatpush1.msra.mxu0 0.0
    %1229 = vmatprep.subr.mxu0 0.0
    %1230 = vmatpush1.msra.mxu0 0.0
    %1231 = vmatprep.subr.mxu0 0.0
    %1232 = vmatpush1.msra.mxu0 0.0
    %1233 = vmatprep.subr.mxu0 0.0
    %1234 = vmatpush1.msra.mxu0 0.0
    %1235 = vmatprep.subr.mxu0 0.0
    %1236 = vmatpush1.msra.mxu0 0.0
    %1237 = vmatprep.subr.mxu0 0.0
    %1238 = vmatpush1.msra.mxu0 0.0
    %1239 = vmatprep.subr.mxu0 0.0
    %1240 = vmatpush1.msra.mxu0 0.0
    %1241 = vmatprep.subr.mxu0 0.0
    %1242 = vmatpush1.msra.mxu0 0.0
    %1243 = vmatprep.subr.mxu0 0.0
    %1244 = vmatpush1.msra.mxu0 0.0
    %1245 = vmatprep.subr.mxu0 0.0
    %1246 = vmatpush1.msra.mxu0 0.0
    %1247 = vmatprep.subr.mxu0 0.0
    %1248 = vmatpush1.msra.mxu0 0.0
    %1249 = vmatprep.subr.mxu0 0.0
    %1250 = vmatpush1.msra.mxu0 0.0
    %1251 = vmatprep.subr.mxu0 0.0
    %1252 = vmatpush1.msra.mxu0 0.0
    %1253 = vmatprep.subr.mxu0 0.0
    %1254 = vmatpush1.msra.mxu0 0.0
    %1255 = vmatprep.subr.mxu0 0.0
    %1256 = vmatpush1.msra.mxu0 0.0
    %1257 = vmatprep.subr.mxu0 0.0
    %1258 = vmatpush1.msra.mxu0 0.0
    %1259 = vmatprep.subr.mxu0 0.0
    %1260 = vmatpush1.msra.mxu0 0.0
    %1261 = vmatprep.subr.mxu0 0.0
    %1262 = vmatpush1.msra.mxu0 0.0
    %1263 = vmatprep.mubr.f32.mxu0 0.0
    %1264 = vmatmul.mubr.f32.gmra.mrb[0].mxu0 %v1197
    %v1265 = vpop.f32.mrb[0].mxu0
    %v1266 = vadd.f32 0.0, %v1265
    %v1267 = vpop.f32.mrb[0].mxu0
    %1268 = vdwg.mxu0
    %v1269 = vadd.f32 %v1123, %v1194
    %v1270 = vxor.u32 %v1269, 2147483648
    %v1271 = vmul.f32 %v1270, 1.442695
    %v1272 = vpow.pop %v1271
    %v1273 = vadd.f32 %v1272, 1.0
    %v1274 = vrcp.pop %v1273
    %v1275 = vmul.f32 1.0, %v1274
    %v1276 = vadd.f32 %v1194, %v425
    %1278 = vrot.lane.b32.xlu0 %v1276, 64
    %v1279 = vpop.permute.xlu0 %1278
    %v1281 = vmul.f32 %v1275, %v1279
    %1283 = vrot.lane.b32.xlu0 %v1281, 64
    %v1284 = vpop.permute.xlu0 %1283
    %v1286 = vadd.f32 %v1123, %v1284
    %v1287 = vtanh.pop %v1286
    %v1288 = vsub.f32 1.0, %v1275
    %1290 = vrot.lane.b32.xlu0 %v1287, 96
    %v1291 = vpop.permute.xlu0 %1290
    %v1293 = vmul.f32 %v1288, %v1291
    %v1294 = vmul.f32 %v1275, %v1085
    %v1295 = vadd.f32 %v1293, %v1294
    %v1296 = vadd.f32 %v1124, %v1266
    %v1297 = vxor.u32 %v1296, 2147483648
    %v1298 = vmul.f32 %v1297, 1.442695
    %v1299 = vpow.pop %v1298
    %v1300 = vadd.f32 %v1299, 1.0
    %v1301 = vrcp.pop %v1300
    %v1302 = vmul.f32 1.0, %v1301
    %v1303 = vadd.f32 %v1266, %v460
    %1305 = vrot.lane.b32.xlu0 %v1303, 64
    %v1306 = vpop.permute.xlu0 %1305
    %v1308 = vmul.f32 %v1302, %v1306
    %1310 = vrot.lane.b32.xlu0 %v1308, 64
    %v1311 = vpop.permute.xlu0 %1310
    %v1313 = vadd.f32 %v1124, %v1311
    %v1314 = vtanh.pop %v1313
    %v1315 = vsub.f32 1.0, %v1302
    %1317 = vrot.lane.b32.xlu0 %v1314, 96
    %v1318 = vpop.permute.xlu0 %1317
    %v1320 = vmul.f32 %v1315, %v1318
    %v1321 = vmul.f32 %v1302, %v1112
    %v1322 = vadd.f32 %v1320, %v1321
    %1324 = vrot.lane.b32.xlu0 %v1295, 96
    %v1325 = vpop.permute.xlu0 %1324
    %1327 = vst.msk [vmem:[#allocation4 + $0x8] sm:$0x3] %vm486, %v1325
    %1329 = vrot.lane.b32.xlu0 %v1322, 96
    %v1330 = vpop.permute.xlu0 %1329
    %1332 = vst.msk [vmem:[#allocation5 + $0x6] sm:$0x3] %vm486, %v1330
    %v1333 = vld [vmem:[#allocation2 + $0xa] sm:$0x3]
    %v1334 = vld [vmem:[#allocation3 + $0x4] sm:$0x3]
    %v1335 = vsel %vm268, %v1325, 0
    %1337 = vmatprep.subr.mxu0 0.0
    %1338 = vmatpush1.msra.mxu0 %v256
    %1339 = vmatprep.subr.mxu0 0.0
    %1340 = vmatpush1.msra.mxu0 %v257
    %1341 = vmatprep.subr.mxu0 0.0
    %1342 = vmatpush1.msra.mxu0 %v258
    %1343 = vmatprep.subr.mxu0 0.0
    %1344 = vmatpush1.msra.mxu0 %v259
    %1345 = vmatprep.subr.mxu0 0.0
    %1346 = vmatpush1.msra.mxu0 0.0
    %1347 = vmatprep.subr.mxu0 0.0
    %1348 = vmatpush1.msra.mxu0 0.0
    %1349 = vmatprep.subr.mxu0 0.0
    %1350 = vmatpush1.msra.mxu0 0.0
    %1351 = vmatprep.subr.mxu0 0.0
    %1352 = vmatpush1.msra.mxu0 0.0
    %1353 = vmatprep.subr.mxu0 0.0
    %1354 = vmatpush1.msra.mxu0 0.0
    %1355 = vmatprep.subr.mxu0 0.0
    %1356 = vmatpush1.msra.mxu0 0.0
    %1357 = vmatprep.subr.mxu0 0.0
    %1358 = vmatpush1.msra.mxu0 0.0
    %1359 = vmatprep.subr.mxu0 0.0
    %1360 = vmatpush1.msra.mxu0 0.0
    %1361 = vmatprep.subr.mxu0 0.0
    %1362 = vmatpush1.msra.mxu0 0.0
    %1363 = vmatprep.subr.mxu0 0.0
    %1364 = vmatpush1.msra.mxu0 0.0
    %1365 = vmatprep.subr.mxu0 0.0
    %1366 = vmatpush1.msra.mxu0 0.0
    %1367 = vmatprep.subr.mxu0 0.0
    %1368 = vmatpush1.msra.mxu0 0.0
    %1369 = vmatprep.subr.mxu0 0.0
    %1370 = vmatpush1.msra.mxu0 0.0
    %1371 = vmatprep.subr.mxu0 0.0
    %1372 = vmatpush1.msra.mxu0 0.0
    %1373 = vmatprep.subr.mxu0 0.0
    %1374 = vmatpush1.msra.mxu0 0.0
    %1375 = vmatprep.subr.mxu0 0.0
    %1376 = vmatpush1.msra.mxu0 0.0
    %1377 = vmatprep.subr.mxu0 0.0
    %1378 = vmatpush1.msra.mxu0 0.0
    %1379 = vmatprep.subr.mxu0 0.0
    %1380 = vmatpush1.msra.mxu0 0.0
    %1381 = vmatprep.subr.mxu0 0.0
    %1382 = vmatpush1.msra.mxu0 0.0
    %1383 = vmatprep.subr.mxu0 0.0
    %1384 = vmatpush1.msra.mxu0 0.0
    %1385 = vmatprep.subr.mxu0 0.0
    %1386 = vmatpush1.msra.mxu0 0.0
    %1387 = vmatprep.subr.mxu0 0.0
    %1388 = vmatpush1.msra.mxu0 0.0
    %1389 = vmatprep.subr.mxu0 0.0
    %1390 = vmatpush1.msra.mxu0 0.0
    %1391 = vmatprep.subr.mxu0 0.0
    %1392 = vmatpush1.msra.mxu0 0.0
    %1393 = vmatprep.subr.mxu0 0.0
    %1394 = vmatpush1.msra.mxu0 0.0
    %1395 = vmatprep.subr.mxu0 0.0
    %1396 = vmatpush1.msra.mxu0 0.0
    %1397 = vmatprep.subr.mxu0 0.0
    %1398 = vmatpush1.msra.mxu0 0.0
    %1399 = vmatprep.subr.mxu0 0.0
    %1400 = vmatpush1.msra.mxu0 0.0
    %1401 = vmatprep.mubr.f32.mxu0 0.0
    %1402 = vmatmul.mubr.f32.gmra.mrb[0].mxu0 %v1335
    %v1403 = vpop.f32.mrb[0].mxu0
    %v1404 = vadd.f32 0.0, %v1403
    %v1405 = vpop.f32.mrb[0].mxu0
    %1406 = vdwg.mxu0
    %v1407 = vsel %vm268, %v1330, 0
    %1409 = vmatprep.subr.mxu0 0.0
    %1410 = vmatpush1.msra.mxu0 %v260
    %1411 = vmatprep.subr.mxu0 0.0
    %1412 = vmatpush1.msra.mxu0 %v261
    %1413 = vmatprep.subr.mxu0 0.0
    %1414 = vmatpush1.msra.mxu0 %v262
    %1415 = vmatprep.subr.mxu0 0.0
    %1416 = vmatpush1.msra.mxu0 %v263
    %1417 = vmatprep.subr.mxu0 0.0
    %1418 = vmatpush1.msra.mxu0 0.0
    %1419 = vmatprep.subr.mxu0 0.0
    %1420 = vmatpush1.msra.mxu0 0.0
    %1421 = vmatprep.subr.mxu0 0.0
    %1422 = vmatpush1.msra.mxu0 0.0
    %1423 = vmatprep.subr.mxu0 0.0
    %1424 = vmatpush1.msra.mxu0 0.0
    %1425 = vmatprep.subr.mxu0 0.0
    %1426 = vmatpush1.msra.mxu0 0.0
    %1427 = vmatprep.subr.mxu0 0.0
    %1428 = vmatpush1.msra.mxu0 0.0
    %1429 = vmatprep.subr.mxu0 0.0
    %1430 = vmatpush1.msra.mxu0 0.0
    %1431 = vmatprep.subr.mxu0 0.0
    %1432 = vmatpush1.msra.mxu0 0.0
    %1433 = vmatprep.subr.mxu0 0.0
    %1434 = vmatpush1.msra.mxu0 0.0
    %1435 = vmatprep.subr.mxu0 0.0
    %1436 = vmatpush1.msra.mxu0 0.0
    %1437 = vmatprep.subr.mxu0 0.0
    %1438 = vmatpush1.msra.mxu0 0.0
    %1439 = vmatprep.subr.mxu0 0.0
    %1440 = vmatpush1.msra.mxu0 0.0
    %1441 = vmatprep.subr.mxu0 0.0
    %1442 = vmatpush1.msra.mxu0 0.0
    %1443 = vmatprep.subr.mxu0 0.0
    %1444 = vmatpush1.msra.mxu0 0.0
    %1445 = vmatprep.subr.mxu0 0.0
    %1446 = vmatpush1.msra.mxu0 0.0
    %1447 = vmatprep.subr.mxu0 0.0
    %1448 = vmatpush1.msra.mxu0 0.0
    %1449 = vmatprep.subr.mxu0 0.0
    %1450 = vmatpush1.msra.mxu0 0.0
    %1451 = vmatprep.subr.mxu0 0.0
    %1452 = vmatpush1.msra.mxu0 0.0
    %1453 = vmatprep.subr.mxu0 0.0
    %1454 = vmatpush1.msra.mxu0 0.0
    %1455 = vmatprep.subr.mxu0 0.0
    %1456 = vmatpush1.msra.mxu0 0.0
    %1457 = vmatprep.subr.mxu0 0.0
    %1458 = vmatpush1.msra.mxu0 0.0
    %1459 = vmatprep.subr.mxu0 0.0
    %1460 = vmatpush1.msra.mxu0 0.0
    %1461 = vmatprep.subr.mxu0 0.0
    %1462 = vmatpush1.msra.mxu0 0.0
    %1463 = vmatprep.subr.mxu0 0.0
    %1464 = vmatpush1.msra.mxu0 0.0
    %1465 = vmatprep.subr.mxu0 0.0
    %1466 = vmatpush1.msra.mxu0 0.0
    %1467 = vmatprep.subr.mxu0 0.0
    %1468 = vmatpush1.msra.mxu0 0.0
    %1469 = vmatprep.subr.mxu0 0.0
    %1470 = vmatpush1.msra.mxu0 0.0
    %1471 = vmatprep.subr.mxu0 0.0
    %1472 = vmatpush1.msra.mxu0 0.0
    %1473 = vmatprep.mubr.f32.mxu0 0.0
    %1474 = vmatmul.mubr.f32.gmra.mrb[0].mxu0 %v1407
    %v1475 = vpop.f32.mrb[0].mxu0
    %v1476 = vadd.f32 0.0, %v1475
    %v1477 = vpop.f32.mrb[0].mxu0
    %1478 = vdwg.mxu0
    %v1479 = vadd.f32 %v1333, %v1404
    %v1480 = vxor.u32 %v1479, 2147483648
    %v1481 = vmul.f32 %v1480, 1.442695
    %v1482 = vpow.pop %v1481
    %v1483 = vadd.f32 %v1482, 1.0
    %v1484 = vrcp.pop %v1483
    %v1485 = vmul.f32 1.0, %v1484
    %v1486 = vadd.f32 %v1404, %v425
    %1488 = vrot.lane.b32.xlu0 %v1486, 64
    %v1489 = vpop.permute.xlu0 %1488
    %v1491 = vmul.f32 %v1485, %v1489
    %1493 = vrot.lane.b32.xlu0 %v1491, 64
    %v1494 = vpop.permute.xlu0 %1493
    %v1496 = vadd.f32 %v1333, %v1494
    %v1497 = vtanh.pop %v1496
    %v1498 = vsub.f32 1.0, %v1485
    %1500 = vrot.lane.b32.xlu0 %v1497, 96
    %v1501 = vpop.permute.xlu0 %1500
    %v1503 = vmul.f32 %v1498, %v1501
    %v1504 = vmul.f32 %v1485, %v1295
    %v1505 = vadd.f32 %v1503, %v1504
    %v1506 = vadd.f32 %v1334, %v1476
    %v1507 = vxor.u32 %v1506, 2147483648
    %v1508 = vmul.f32 %v1507, 1.442695
    %v1509 = vpow.pop %v1508
    %v1510 = vadd.f32 %v1509, 1.0
    %v1511 = vrcp.pop %v1510
    %v1512 = vmul.f32 1.0, %v1511
    %v1513 = vadd.f32 %v1476, %v460
    %1515 = vrot.lane.b32.xlu0 %v1513, 64
    %v1516 = vpop.permute.xlu0 %1515
    %v1518 = vmul.f32 %v1512, %v1516
    %1520 = vrot.lane.b32.xlu0 %v1518, 64
    %v1521 = vpop.permute.xlu0 %1520
    %v1523 = vadd.f32 %v1334, %v1521
    %v1524 = vtanh.pop %v1523
    %v1525 = vsub.f32 1.0, %v1512
    %1527 = vrot.lane.b32.xlu0 %v1524, 96
    %v1528 = vpop.permute.xlu0 %1527
    %v1530 = vmul.f32 %v1525, %v1528
    %v1531 = vmul.f32 %v1512, %v1322
    %v1532 = vadd.f32 %v1530, %v1531
    %1534 = vrot.lane.b32.xlu0 %v1505, 96
    %v1535 = vpop.permute.xlu0 %1534
    %1537 = vst.msk [vmem:[#allocation4 + $0xa] sm:$0x3] %vm486, %v1535
    %1539 = vrot.lane.b32.xlu0 %v1532, 96
    %v1540 = vpop.permute.xlu0 %1539
    %1542 = vst.msk [vmem:[#allocation5 + $0x4] sm:$0x3] %vm486, %v1540
    %v1543 = vld [vmem:[#allocation2 + $0xc] sm:$0x3]
    %v1544 = vld [vmem:[#allocation3 + $0x2] sm:$0x3]
    %v1545 = vsel %vm268, %v1535, 0
    %1547 = vmatprep.subr.mxu0 0.0
    %1548 = vmatpush1.msra.mxu0 %v256
    %1549 = vmatprep.subr.mxu0 0.0
    %1550 = vmatpush1.msra.mxu0 %v257
    %1551 = vmatprep.subr.mxu0 0.0
    %1552 = vmatpush1.msra.mxu0 %v258
    %1553 = vmatprep.subr.mxu0 0.0
    %1554 = vmatpush1.msra.mxu0 %v259
    %1555 = vmatprep.subr.mxu0 0.0
    %1556 = vmatpush1.msra.mxu0 0.0
    %1557 = vmatprep.subr.mxu0 0.0
    %1558 = vmatpush1.msra.mxu0 0.0
    %1559 = vmatprep.subr.mxu0 0.0
    %1560 = vmatpush1.msra.mxu0 0.0
    %1561 = vmatprep.subr.mxu0 0.0
    %1562 = vmatpush1.msra.mxu0 0.0
    %1563 = vmatprep.subr.mxu0 0.0
    %1564 = vmatpush1.msra.mxu0 0.0
    %1565 = vmatprep.subr.mxu0 0.0
    %1566 = vmatpush1.msra.mxu0 0.0
    %1567 = vmatprep.subr.mxu0 0.0
    %1568 = vmatpush1.msra.mxu0 0.0
    %1569 = vmatprep.subr.mxu0 0.0
    %1570 = vmatpush1.msra.mxu0 0.0
    %1571 = vmatprep.subr.mxu0 0.0
    %1572 = vmatpush1.msra.mxu0 0.0
    %1573 = vmatprep.subr.mxu0 0.0
    %1574 = vmatpush1.msra.mxu0 0.0
    %1575 = vmatprep.subr.mxu0 0.0
    %1576 = vmatpush1.msra.mxu0 0.0
    %1577 = vmatprep.subr.mxu0 0.0
    %1578 = vmatpush1.msra.mxu0 0.0
    %1579 = vmatprep.subr.mxu0 0.0
    %1580 = vmatpush1.msra.mxu0 0.0
    %1581 = vmatprep.subr.mxu0 0.0
    %1582 = vmatpush1.msra.mxu0 0.0
    %1583 = vmatprep.subr.mxu0 0.0
    %1584 = vmatpush1.msra.mxu0 0.0
    %1585 = vmatprep.subr.mxu0 0.0
    %1586 = vmatpush1.msra.mxu0 0.0
    %1587 = vmatprep.subr.mxu0 0.0
    %1588 = vmatpush1.msra.mxu0 0.0
    %1589 = vmatprep.subr.mxu0 0.0
    %1590 = vmatpush1.msra.mxu0 0.0
    %1591 = vmatprep.subr.mxu0 0.0
    %1592 = vmatpush1.msra.mxu0 0.0
    %1593 = vmatprep.subr.mxu0 0.0
    %1594 = vmatpush1.msra.mxu0 0.0
    %1595 = vmatprep.subr.mxu0 0.0
    %1596 = vmatpush1.msra.mxu0 0.0
    %1597 = vmatprep.subr.mxu0 0.0
    %1598 = vmatpush1.msra.mxu0 0.0
    %1599 = vmatprep.subr.mxu0 0.0
    %1600 = vmatpush1.msra.mxu0 0.0
    %1601 = vmatprep.subr.mxu0 0.0
    %1602 = vmatpush1.msra.mxu0 0.0
    %1603 = vmatprep.subr.mxu0 0.0
    %1604 = vmatpush1.msra.mxu0 0.0
    %1605 = vmatprep.subr.mxu0 0.0
    %1606 = vmatpush1.msra.mxu0 0.0
    %1607 = vmatprep.subr.mxu0 0.0
    %1608 = vmatpush1.msra.mxu0 0.0
    %1609 = vmatprep.subr.mxu0 0.0
    %1610 = vmatpush1.msra.mxu0 0.0
    %1611 = vmatprep.mubr.f32.mxu0 0.0
    %1612 = vmatmul.mubr.f32.gmra.mrb[0].mxu0 %v1545
    %v1613 = vpop.f32.mrb[0].mxu0
    %v1614 = vadd.f32 0.0, %v1613
    %v1615 = vpop.f32.mrb[0].mxu0
    %1616 = vdwg.mxu0
    %v1617 = vsel %vm268, %v1540, 0
    %1619 = vmatprep.subr.mxu0 0.0
    %1620 = vmatpush1.msra.mxu0 %v260
    %1621 = vmatprep.subr.mxu0 0.0
    %1622 = vmatpush1.msra.mxu0 %v261
    %1623 = vmatprep.subr.mxu0 0.0
    %1624 = vmatpush1.msra.mxu0 %v262
    %1625 = vmatprep.subr.mxu0 0.0
    %1626 = vmatpush1.msra.mxu0 %v263
    %1627 = vmatprep.subr.mxu0 0.0
    %1628 = vmatpush1.msra.mxu0 0.0
    %1629 = vmatprep.subr.mxu0 0.0
    %1630 = vmatpush1.msra.mxu0 0.0
    %1631 = vmatprep.subr.mxu0 0.0
    %1632 = vmatpush1.msra.mxu0 0.0
    %1633 = vmatprep.subr.mxu0 0.0
    %1634 = vmatpush1.msra.mxu0 0.0
    %1635 = vmatprep.subr.mxu0 0.0
    %1636 = vmatpush1.msra.mxu0 0.0
    %1637 = vmatprep.subr.mxu0 0.0
    %1638 = vmatpush1.msra.mxu0 0.0
    %1639 = vmatprep.subr.mxu0 0.0
    %1640 = vmatpush1.msra.mxu0 0.0
    %1641 = vmatprep.subr.mxu0 0.0
    %1642 = vmatpush1.msra.mxu0 0.0
    %1643 = vmatprep.subr.mxu0 0.0
    %1644 = vmatpush1.msra.mxu0 0.0
    %1645 = vmatprep.subr.mxu0 0.0
    %1646 = vmatpush1.msra.mxu0 0.0
    %1647 = vmatprep.subr.mxu0 0.0
    %1648 = vmatpush1.msra.mxu0 0.0
    %1649 = vmatprep.subr.mxu0 0.0
    %1650 = vmatpush1.msra.mxu0 0.0
    %1651 = vmatprep.subr.mxu0 0.0
    %1652 = vmatpush1.msra.mxu0 0.0
    %1653 = vmatprep.subr.mxu0 0.0
    %1654 = vmatpush1.msra.mxu0 0.0
    %1655 = vmatprep.subr.mxu0 0.0
    %1656 = vmatpush1.msra.mxu0 0.0
    %1657 = vmatprep.subr.mxu0 0.0
    %1658 = vmatpush1.msra.mxu0 0.0
    %1659 = vmatprep.subr.mxu0 0.0
    %1660 = vmatpush1.msra.mxu0 0.0
    %1661 = vmatprep.subr.mxu0 0.0
    %1662 = vmatpush1.msra.mxu0 0.0
    %1663 = vmatprep.subr.mxu0 0.0
    %1664 = vmatpush1.msra.mxu0 0.0
    %1665 = vmatprep.subr.mxu0 0.0
    %1666 = vmatpush1.msra.mxu0 0.0
    %1667 = vmatprep.subr.mxu0 0.0
    %1668 = vmatpush1.msra.mxu0 0.0
    %1669 = vmatprep.subr.mxu0 0.0
    %1670 = vmatpush1.msra.mxu0 0.0
    %1671 = vmatprep.subr.mxu0 0.0
    %1672 = vmatpush1.msra.mxu0 0.0
    %1673 = vmatprep.subr.mxu0 0.0
    %1674 = vmatpush1.msra.mxu0 0.0
    %1675 = vmatprep.subr.mxu0 0.0
    %1676 = vmatpush1.msra.mxu0 0.0
    %1677 = vmatprep.subr.mxu0 0.0
    %1678 = vmatpush1.msra.mxu0 0.0
    %1679 = vmatprep.subr.mxu0 0.0
    %1680 = vmatpush1.msra.mxu0 0.0
    %1681 = vmatprep.subr.mxu0 0.0
    %1682 = vmatpush1.msra.mxu0 0.0
    %1683 = vmatprep.mubr.f32.mxu0 0.0
    %1684 = vmatmul.mubr.f32.gmra.mrb[0].mxu0 %v1617
    %v1685 = vpop.f32.mrb[0].mxu0
    %v1686 = vadd.f32 0.0, %v1685
    %v1687 = vpop.f32.mrb[0].mxu0
    %1688 = vdwg.mxu0
    %v1689 = vadd.f32 %v1543, %v1614
    %v1690 = vxor.u32 %v1689, 2147483648
    %v1691 = vmul.f32 %v1690, 1.442695
    %v1692 = vpow.pop %v1691
    %v1693 = vadd.f32 %v1692, 1.0
    %v1694 = vrcp.pop %v1693
    %v1695 = vmul.f32 1.0, %v1694
    %v1696 = vadd.f32 %v1614, %v425
    %1698 = vrot.lane.b32.xlu0 %v1696, 64
    %v1699 = vpop.permute.xlu0 %1698
    %v1701 = vmul.f32 %v1695, %v1699
    %1703 = vrot.lane.b32.xlu0 %v1701, 64
    %v1704 = vpop.permute.xlu0 %1703
    %v1706 = vadd.f32 %v1543, %v1704
    %v1707 = vtanh.pop %v1706
    %v1708 = vsub.f32 1.0, %v1695
    %1710 = vrot.lane.b32.xlu0 %v1707, 96
    %v1711 = vpop.permute.xlu0 %1710
    %v1713 = vmul.f32 %v1708, %v1711
    %v1714 = vmul.f32 %v1695, %v1505
    %v1715 = vadd.f32 %v1713, %v1714
    %v1716 = vadd.f32 %v1544, %v1686
    %v1717 = vxor.u32 %v1716, 2147483648
    %v1718 = vmul.f32 %v1717, 1.442695
    %v1719 = vpow.pop %v1718
    %v1720 = vadd.f32 %v1719, 1.0
    %v1721 = vrcp.pop %v1720
    %v1722 = vmul.f32 1.0, %v1721
    %v1723 = vadd.f32 %v1686, %v460
    %1725 = vrot.lane.b32.xlu0 %v1723, 64
    %v1726 = vpop.permute.xlu0 %1725
    %v1728 = vmul.f32 %v1722, %v1726
    %1730 = vrot.lane.b32.xlu0 %v1728, 64
    %v1731 = vpop.permute.xlu0 %1730
    %v1733 = vadd.f32 %v1544, %v1731
    %v1734 = vtanh.pop %v1733
    %v1735 = vsub.f32 1.0, %v1722
    %1737 = vrot.lane.b32.xlu0 %v1734, 96
    %v1738 = vpop.permute.xlu0 %1737
    %v1740 = vmul.f32 %v1735, %v1738
    %v1741 = vmul.f32 %v1722, %v1532
    %v1742 = vadd.f32 %v1740, %v1741
    %1744 = vrot.lane.b32.xlu0 %v1715, 96
    %v1745 = vpop.permute.xlu0 %1744
    %1747 = vst.msk [vmem:[#allocation4 + $0xc] sm:$0x3] %vm486, %v1745
    %1749 = vrot.lane.b32.xlu0 %v1742, 96
    %v1750 = vpop.permute.xlu0 %1749
    %1752 = vst.msk [vmem:[#allocation5 + $0x2] sm:$0x3] %vm486, %v1750
    %v1753 = vld [vmem:[#allocation2 + $0xe] sm:$0x3]
    %v1754 = vld [vmem:[#allocation3] sm:$0x3]
    %v1755 = vsel %vm268, %v1745, 0
    %1757 = vmatprep.subr.mxu0 0.0
    %1758 = vmatpush1.msra.mxu0 %v256
    %1759 = vmatprep.subr.mxu0 0.0
    %1760 = vmatpush1.msra.mxu0 %v257
    %1761 = vmatprep.subr.mxu0 0.0
    %1762 = vmatpush1.msra.mxu0 %v258
    %1763 = vmatprep.subr.mxu0 0.0
    %1764 = vmatpush1.msra.mxu0 %v259
    %1765 = vmatprep.subr.mxu0 0.0
    %1766 = vmatpush1.msra.mxu0 0.0
    %1767 = vmatprep.subr.mxu0 0.0
    %1768 = vmatpush1.msra.mxu0 0.0
    %1769 = vmatprep.subr.mxu0 0.0
    %1770 = vmatpush1.msra.mxu0 0.0
    %1771 = vmatprep.subr.mxu0 0.0
    %1772 = vmatpush1.msra.mxu0 0.0
    %1773 = vmatprep.subr.mxu0 0.0
    %1774 = vmatpush1.msra.mxu0 0.0
    %1775 = vmatprep.subr.mxu0 0.0
    %1776 = vmatpush1.msra.mxu0 0.0
    %1777 = vmatprep.subr.mxu0 0.0
    %1778 = vmatpush1.msra.mxu0 0.0
    %1779 = vmatprep.subr.mxu0 0.0
    %1780 = vmatpush1.msra.mxu0 0.0
    %1781 = vmatprep.subr.mxu0 0.0
    %1782 = vmatpush1.msra.mxu0 0.0
    %1783 = vmatprep.subr.mxu0 0.0
    %1784 = vmatpush1.msra.mxu0 0.0
    %1785 = vmatprep.subr.mxu0 0.0
    %1786 = vmatpush1.msra.mxu0 0.0
    %1787 = vmatprep.subr.mxu0 0.0
    %1788 = vmatpush1.msra.mxu0 0.0
    %1789 = vmatprep.subr.mxu0 0.0
    %1790 = vmatpush1.msra.mxu0 0.0
    %1791 = vmatprep.subr.mxu0 0.0
    %1792 = vmatpush1.msra.mxu0 0.0
    %1793 = vmatprep.subr.mxu0 0.0
    %1794 = vmatpush1.msra.mxu0 0.0
    %1795 = vmatprep.subr.mxu0 0.0
    %1796 = vmatpush1.msra.mxu0 0.0
    %1797 = vmatprep.subr.mxu0 0.0
    %1798 = vmatpush1.msra.mxu0 0.0
    %1799 = vmatprep.subr.mxu0 0.0
    %1800 = vmatpush1.msra.mxu0 0.0
    %1801 = vmatprep.subr.mxu0 0.0
    %1802 = vmatpush1.msra.mxu0 0.0
    %1803 = vmatprep.subr.mxu0 0.0
    %1804 = vmatpush1.msra.mxu0 0.0
    %1805 = vmatprep.subr.mxu0 0.0
    %1806 = vmatpush1.msra.mxu0 0.0
    %1807 = vmatprep.subr.mxu0 0.0
    %1808 = vmatpush1.msra.mxu0 0.0
    %1809 = vmatprep.subr.mxu0 0.0
    %1810 = vmatpush1.msra.mxu0 0.0
    %1811 = vmatprep.subr.mxu0 0.0
    %1812 = vmatpush1.msra.mxu0 0.0
    %1813 = vmatprep.subr.mxu0 0.0
    %1814 = vmatpush1.msra.mxu0 0.0
    %1815 = vmatprep.subr.mxu0 0.0
    %1816 = vmatpush1.msra.mxu0 0.0
    %1817 = vmatprep.subr.mxu0 0.0
    %1818 = vmatpush1.msra.mxu0 0.0
    %1819 = vmatprep.subr.mxu0 0.0
    %1820 = vmatpush1.msra.mxu0 0.0
    %1821 = vmatprep.mubr.f32.mxu0 0.0
    %1822 = vmatmul.mubr.f32.gmra.mrb[0].mxu0 %v1755
    %v1823 = vpop.f32.mrb[0].mxu0
    %v1824 = vadd.f32 0.0, %v1823
    %v1825 = vpop.f32.mrb[0].mxu0
    %1826 = vdwg.mxu0
    %v1827 = vsel %vm268, %v1750, 0
    %1829 = vmatprep.subr.mxu0 0.0
    %1830 = vmatpush1.msra.mxu0 %v260
    %1831 = vmatprep.subr.mxu0 0.0
    %1832 = vmatpush1.msra.mxu0 %v261
    %1833 = vmatprep.subr.mxu0 0.0
    %1834 = vmatpush1.msra.mxu0 %v262
    %1835 = vmatprep.subr.mxu0 0.0
    %1836 = vmatpush1.msra.mxu0 %v263
    %1837 = vmatprep.subr.mxu0 0.0
    %1838 = vmatpush1.msra.mxu0 0.0
    %1839 = vmatprep.subr.mxu0 0.0
    %1840 = vmatpush1.msra.mxu0 0.0
    %1841 = vmatprep.subr.mxu0 0.0
    %1842 = vmatpush1.msra.mxu0 0.0
    %1843 = vmatprep.subr.mxu0 0.0
    %1844 = vmatpush1.msra.mxu0 0.0
    %1845 = vmatprep.subr.mxu0 0.0
    %1846 = vmatpush1.msra.mxu0 0.0
    %1847 = vmatprep.subr.mxu0 0.0
    %1848 = vmatpush1.msra.mxu0 0.0
    %1849 = vmatprep.subr.mxu0 0.0
    %1850 = vmatpush1.msra.mxu0 0.0
    %1851 = vmatprep.subr.mxu0 0.0
    %1852 = vmatpush1.msra.mxu0 0.0
    %1853 = vmatprep.subr.mxu0 0.0
    %1854 = vmatpush1.msra.mxu0 0.0
    %1855 = vmatprep.subr.mxu0 0.0
    %1856 = vmatpush1.msra.mxu0 0.0
    %1857 = vmatprep.subr.mxu0 0.0
    %1858 = vmatpush1.msra.mxu0 0.0
    %1859 = vmatprep.subr.mxu0 0.0
    %1860 = vmatpush1.msra.mxu0 0.0
    %1861 = vmatprep.subr.mxu0 0.0
    %1862 = vmatpush1.msra.mxu0 0.0
    %1863 = vmatprep.subr.mxu0 0.0
    %1864 = vmatpush1.msra.mxu0 0.0
    %1865 = vmatprep.subr.mxu0 0.0
    %1866 = vmatpush1.msra.mxu0 0.0
    %1867 = vmatprep.subr.mxu0 0.0
    %1868 = vmatpush1.msra.mxu0 0.0
    %1869 = vmatprep.subr.mxu0 0.0
    %1870 = vmatpush1.msra.mxu0 0.0
    %1871 = vmatprep.subr.mxu0 0.0
    %1872 = vmatpush1.msra.mxu0 0.0
    %1873 = vmatprep.subr.mxu0 0.0
    %1874 = vmatpush1.msra.mxu0 0.0
    %1875 = vmatprep.subr.mxu0 0.0
    %1876 = vmatpush1.msra.mxu0 0.0
    %1877 = vmatprep.subr.mxu0 0.0
    %1878 = vmatpush1.msra.mxu0 0.0
    %1879 = vmatprep.subr.mxu0 0.0
    %1880 = vmatpush1.msra.mxu0 0.0
    %1881 = vmatprep.subr.mxu0 0.0
    %1882 = vmatpush1.msra.mxu0 0.0
    %1883 = vmatprep.subr.mxu0 0.0
    %1884 = vmatpush1.msra.mxu0 0.0
    %1885 = vmatprep.subr.mxu0 0.0
    %1886 = vmatpush1.msra.mxu0 0.0
    %1887 = vmatprep.subr.mxu0 0.0
    %1888 = vmatpush1.msra.mxu0 0.0
    %1889 = vmatprep.subr.mxu0 0.0
    %1890 = vmatpush1.msra.mxu0 0.0
    %1891 = vmatprep.subr.mxu0 0.0
    %1892 = vmatpush1.msra.mxu0 0.0
    %1893 = vmatprep.mubr.f32.mxu0 0.0
    %1894 = vmatmul.mubr.f32.gmra.mrb[0].mxu0 %v1827
    %v1895 = vpop.f32.mrb[0].mxu0
    %v1896 = vadd.f32 0.0, %v1895
    %v1897 = vpop.f32.mrb[0].mxu0
    %1898 = vdwg.mxu0
    %v1899 = vadd.f32 %v1753, %v1824
    %v1900 = vxor.u32 %v1899, 2147483648
    %v1901 = vmul.f32 %v1900, 1.442695
    %v1902 = vpow.pop %v1901
    %v1903 = vadd.f32 %v1902, 1.0
    %v1904 = vrcp.pop %v1903
    %v1905 = vmul.f32 1.0, %v1904
    %v1906 = vadd.f32 %v1824, %v425
    %1908 = vrot.lane.b32.xlu0 %v1906, 64
    %v1909 = vpop.permute.xlu0 %1908
    %v1911 = vmul.f32 %v1905, %v1909
    %1913 = vrot.lane.b32.xlu0 %v1911, 64
    %v1914 = vpop.permute.xlu0 %1913
    %v1916 = vadd.f32 %v1753, %v1914
    %v1917 = vtanh.pop %v1916
    %v1918 = vsub.f32 1.0, %v1905
    %1920 = vrot.lane.b32.xlu0 %v1917, 96
    %v1921 = vpop.permute.xlu0 %1920
    %v1923 = vmul.f32 %v1918, %v1921
    %v1924 = vmul.f32 %v1905, %v1715
    %v1925 = vadd.f32 %v1923, %v1924
    %v1926 = vadd.f32 %v1754, %v1896
    %v1927 = vxor.u32 %v1926, 2147483648
    %v1928 = vmul.f32 %v1927, 1.442695
    %v1929 = vpow.pop %v1928
    %v1930 = vadd.f32 %v1929, 1.0
    %v1931 = vrcp.pop %v1930
    %v1932 = vmul.f32 1.0, %v1931
    %v1933 = vadd.f32 %v1896, %v460
    %1935 = vrot.lane.b32.xlu0 %v1933, 64
    %v1936 = vpop.permute.xlu0 %1935
    %v1938 = vmul.f32 %v1932, %v1936
    %1940 = vrot.lane.b32.xlu0 %v1938, 64
    %v1941 = vpop.permute.xlu0 %1940
    %v1943 = vadd.f32 %v1754, %v1941
    %v1944 = vtanh.pop %v1943
    %v1945 = vsub.f32 1.0, %v1932
    %1947 = vrot.lane.b32.xlu0 %v1944, 96
    %v1948 = vpop.permute.xlu0 %1947
    %v1950 = vmul.f32 %v1945, %v1948
    %v1951 = vmul.f32 %v1932, %v1742
    %v1952 = vadd.f32 %v1950, %v1951
    %1954 = vrot.lane.b32.xlu0 %v1925, 96
    %v1955 = vpop.permute.xlu0 %1954
    %1957 = vst.msk [vmem:[#allocation4 + $0xe] sm:$0x3] %vm486, %v1955
    %1959 = vrot.lane.b32.xlu0 %v1952, 96
    %v1960 = vpop.permute.xlu0 %1959
    %1962 = vst.msk [vmem:[#allocation5] sm:$0x3] %vm486, %v1960
    %v1963 = vld [vmem:[#allocation4] sm:$0xff]
    %v1964 = vld [vmem:[#allocation4 + $0x8] sm:$0xff]
    %v1965 = vld [vmem:[#allocation5] sm:$0xff]
    %v1966 = vld [vmem:[#allocation5 + $0x8] sm:$0xff]
    %1969 = vrot.lane.b32.xlu0 %v1965, 32
    %v1970 = vpop.permute.xlu0 %1969
    %1971 = vrot.lane.b32.xlu0 %v1966, 32
    %v1972 = vpop.permute.xlu0 %1971
    %v1975 = vsel %vm268, %v1963, %v1970
    %v1976 = vsel %vm268, %v1964, %v1972
    %vm1977 = vcmask 523264
    %1978 = vst.msk [vmem:[#allocation12] sm:$0xff] %vm1977, %v1975
    %1979 = vst.msk [vmem:[#allocation12 + $0x8] sm:$0xff] %vm1977, %v1976
    %v1980 = vld [vmem:[%s9] sm:$0xff]
    %v1981 = vld [vmem:[%s9 + $0x8] sm:$0xff]
    %v1982 = vld [vmem:[%s9 + $0x10] sm:$0xff]
    %v1983 = vld [vmem:[%s9 + $0x18] sm:$0xff]
    %v1984 = vld [vmem:[%s10] sm:$0xff]
    %v1985 = vld [vmem:[%s10 + $0x8] sm:$0xff]
    %v1986 = vld [vmem:[%s10 + $0x10] sm:$0xff]
    %v1987 = vld [vmem:[%s10 + $0x18] sm:$0xff]
    %v1988 = vsel %vm268, %v1965, 0
    %v1990 = vsel %vm268, %v1966, 0
    %1992 = vmatprep.subr.mxu0 0.0
    %1993 = vmatpush1.msra.mxu0 %v1984
    %1994 = vmatprep.subr.mxu0 0.0
    %1995 = vmatpush1.msra.mxu0 %v1985
    %1996 = vmatprep.subr.mxu0 0.0
    %1997 = vmatpush1.msra.mxu0 %v1986
    %1998 = vmatprep.subr.mxu0 0.0
    %1999 = vmatpush1.msra.mxu0 %v1987
    %2000 = vmatprep.subr.mxu0 0.0
    %2001 = vmatpush1.msra.mxu0 0.0
    %2002 = vmatprep.subr.mxu0 0.0
    %2003 = vmatpush1.msra.mxu0 0.0
    %2004 = vmatprep.subr.mxu0 0.0
    %2005 = vmatpush1.msra.mxu0 0.0
    %2006 = vmatprep.subr.mxu0 0.0
    %2007 = vmatpush1.msra.mxu0 0.0
    %2008 = vmatprep.subr.mxu0 0.0
    %2009 = vmatpush1.msra.mxu0 0.0
    %2010 = vmatprep.subr.mxu0 0.0
    %2011 = vmatpush1.msra.mxu0 0.0
    %2012 = vmatprep.subr.mxu0 0.0
    %2013 = vmatpush1.msra.mxu0 0.0
    %2014 = vmatprep.subr.mxu0 0.0
    %2015 = vmatpush1.msra.mxu0 0.0
    %2016 = vmatprep.subr.mxu0 0.0
    %2017 = vmatpush1.msra.mxu0 0.0
    %2018 = vmatprep.subr.mxu0 0.0
    %2019 = vmatpush1.msra.mxu0 0.0
    %2020 = vmatprep.subr.mxu0 0.0
    %2021 = vmatpush1.msra.mxu0 0.0
    %2022 = vmatprep.subr.mxu0 0.0
    %2023 = vmatpush1.msra.mxu0 0.0
    %2024 = vmatprep.subr.mxu0 0.0
    %2025 = vmatpush1.msra.mxu0 0.0
    %2026 = vmatprep.subr.mxu0 0.0
    %2027 = vmatpush1.msra.mxu0 0.0
    %2028 = vmatprep.subr.mxu0 0.0
    %2029 = vmatpush1.msra.mxu0 0.0
    %2030 = vmatprep.subr.mxu0 0.0
    %2031 = vmatpush1.msra.mxu0 0.0
    %2032 = vmatprep.subr.mxu0 0.0
    %2033 = vmatpush1.msra.mxu0 0.0
    %2034 = vmatprep.subr.mxu0 0.0
    %2035 = vmatpush1.msra.mxu0 0.0
    %2036 = vmatprep.subr.mxu0 0.0
    %2037 = vmatpush1.msra.mxu0 0.0
    %2038 = vmatprep.subr.mxu0 0.0
    %2039 = vmatpush1.msra.mxu0 0.0
    %2040 = vmatprep.subr.mxu0 0.0
    %2041 = vmatpush1.msra.mxu0 0.0
    %2042 = vmatprep.subr.mxu0 0.0
    %2043 = vmatpush1.msra.mxu0 0.0
    %2044 = vmatprep.subr.mxu0 0.0
    %2045 = vmatpush1.msra.mxu0 0.0
    %2046 = vmatprep.subr.mxu0 0.0
    %2047 = vmatpush1.msra.mxu0 0.0
    %2048 = vmatprep.subr.mxu0 0.0
    %2049 = vmatpush1.msra.mxu0 0.0
    %2050 = vmatprep.subr.mxu0 0.0
    %2051 = vmatpush1.msra.mxu0 0.0
    %2052 = vmatprep.subr.mxu0 0.0
    %2053 = vmatpush1.msra.mxu0 0.0
    %2054 = vmatprep.subr.mxu0 0.0
    %2055 = vmatpush1.msra.mxu0 0.0
    %2056 = vmatprep.mubr.f32.mxu0 0.0
    %2057 = vmatmul.mubr.f32.gmra.mrb[0].mxu0 %v1988
    %v2058 = vpop.f32.mrb[0].mxu0
    %v2059 = vadd.f32 0.0, %v2058
    %v2060 = vpop.f32.mrb[0].mxu0
    %2061 = vmatprep.mubr.f32.mxu0 0.0
    %2062 = vmatmul.mubr.f32.gmra.mrb[0].mxu0 %v1990
    %v2063 = vpop.f32.mrb[0].mxu0
    %v2064 = vadd.f32 0.0, %v2063
    %v2065 = vpop.f32.mrb[0].mxu0
    %2066 = vdwg.mxu0
    %v2068 = vsel %vm268, %v1963, 0
    %v2071 = vsel %vm268, %v1964, 0
    %2073 = vmatprep.subr.mxu0 0.0
    %2074 = vmatpush1.msra.mxu0 %v1980
    %2075 = vmatprep.subr.mxu0 0.0
    %2076 = vmatpush1.msra.mxu0 %v1981
    %2077 = vmatprep.subr.mxu0 0.0
    %2078 = vmatpush1.msra.mxu0 %v1982
    %2079 = vmatprep.subr.mxu0 0.0
    %2080 = vmatpush1.msra.mxu0 %v1983
    %2081 = vmatprep.subr.mxu0 0.0
    %2082 = vmatpush1.msra.mxu0 0.0
    %2083 = vmatprep.subr.mxu0 0.0
    %2084 = vmatpush1.msra.mxu0 0.0
    %2085 = vmatprep.subr.mxu0 0.0
    %2086 = vmatpush1.msra.mxu0 0.0
    %2087 = vmatprep.subr.mxu0 0.0
    %2088 = vmatpush1.msra.mxu0 0.0
    %2089 = vmatprep.subr.mxu0 0.0
    %2090 = vmatpush1.msra.mxu0 0.0
    %2091 = vmatprep.subr.mxu0 0.0
    %2092 = vmatpush1.msra.mxu0 0.0
    %2093 = vmatprep.subr.mxu0 0.0
    %2094 = vmatpush1.msra.mxu0 0.0
    %2095 = vmatprep.subr.mxu0 0.0
    %2096 = vmatpush1.msra.mxu0 0.0
    %2097 = vmatprep.subr.mxu0 0.0
    %2098 = vmatpush1.msra.mxu0 0.0
    %2099 = vmatprep.subr.mxu0 0.0
    %2100 = vmatpush1.msra.mxu0 0.0
    %2101 = vmatprep.subr.mxu0 0.0
    %2102 = vmatpush1.msra.mxu0 0.0
    %2103 = vmatprep.subr.mxu0 0.0
    %2104 = vmatpush1.msra.mxu0 0.0
    %2105 = vmatprep.subr.mxu0 0.0
    %2106 = vmatpush1.msra.mxu0 0.0
    %2107 = vmatprep.subr.mxu0 0.0
    %2108 = vmatpush1.msra.mxu0 0.0
    %2109 = vmatprep.subr.mxu0 0.0
    %2110 = vmatpush1.msra.mxu0 0.0
    %2111 = vmatprep.subr.mxu0 0.0
    %2112 = vmatpush1.msra.mxu0 0.0
    %2113 = vmatprep.subr.mxu0 0.0
    %2114 = vmatpush1.msra.mxu0 0.0
    %2115 = vmatprep.subr.mxu0 0.0
    %2116 = vmatpush1.msra.mxu0 0.0
    %2117 = vmatprep.subr.mxu0 0.0
    %2118 = vmatpush1.msra.mxu0 0.0
    %2119 = vmatprep.subr.mxu0 0.0
    %2120 = vmatpush1.msra.mxu0 0.0
    %2121 = vmatprep.subr.mxu0 0.0
    %2122 = vmatpush1.msra.mxu0 0.0
    %2123 = vmatprep.subr.mxu0 0.0
    %2124 = vmatpush1.msra.mxu0 0.0
    %2125 = vmatprep.subr.mxu0 0.0
    %2126 = vmatpush1.msra.mxu0 0.0
    %2127 = vmatprep.subr.mxu0 0.0
    %2128 = vmatpush1.msra.mxu0 0.0
    %2129 = vmatprep.subr.mxu0 0.0
    %2130 = vmatpush1.msra.mxu0 0.0
    %2131 = vmatprep.subr.mxu0 0.0
    %2132 = vmatpush1.msra.mxu0 0.0
    %2133 = vmatprep.subr.mxu0 0.0
    %2134 = vmatpush1.msra.mxu0 0.0
    %2135 = vmatprep.subr.mxu0 0.0
    %2136 = vmatpush1.msra.mxu0 0.0
    %2137 = vmatprep.mubr.f32.mxu0 0.0
    %2138 = vmatmul.mubr.f32.gmra.mrb[0].mxu0 %v2068
    %v2139 = vpop.f32.mrb[0].mxu0
    %v2140 = vadd.f32 %v2059, %v2139
    %v2141 = vpop.f32.mrb[0].mxu0
    %2142 = vmatprep.mubr.f32.mxu0 0.0
    %2143 = vmatmul.mubr.f32.gmra.mrb[0].mxu0 %v2071
    %v2144 = vpop.f32.mrb[0].mxu0
    %v2145 = vadd.f32 %v2064, %v2144
    %v2146 = vpop.f32.mrb[0].mxu0
    %2147 = vdwg.mxu0
    %v2148 = vld [vmem:[#allocation6] sm:$0x1]
    %v2150 = vlaneseq
    %v2151 = vshrl.u32 %v2150, 7
    %v2152 = vsub.s32 0, %v2151
    %v2153 = vrot.slane %v2148, %v2152
    %v2155 = vadd.f32 %v2140, %v2153
    %v2156 = vadd.f32 %v2145, %v2153
    %v2157 = vxor.u32 %v2155, 2147483648
    %v2158 = vxor.u32 %v2156, 2147483648
    %v2159 = vmul.f32 %v2157, 1.442695
    %v2160 = vpow.pop %v2159
    %v2161 = vmul.f32 %v2158, 1.442695
    %v2162 = vpow.pop %v2161
    %v2163 = vadd.f32 %v2160, 1.0
    %v2164 = vadd.f32 %v2162, 1.0
    %v2165 = vrcp.pop %v2163
    %v2166 = vmul.f32 1.0, %v2165
    %v2167 = vrcp.pop %v2164
    %v2168 = vmul.f32 1.0, %v2167
    %vm2169 = vcmask 7168
    %2170 = vst.msk [vmem:[%s12] sm:$0xff] %vm2169, %v2166
    %2171 = vst.msk [vmem:[%s12 + $0x8] sm:$0xff] %vm2169, %v2168
    // Predicated region
    $region58: #{tpu_custom_call.1} parent=1 // pred_check
      _
    $region59: #{tpu_custom_call.1} parent=1 // pred_check_branch
      %2173 = sbr.rel (0) target = $region61
    $region60: #{tpu_custom_call.1} parent=1 // pred_region
      _
    $region61: #{tpu_custom_call.1} parent=1 // pred_fallthru
      _
    // Predicated region
    $region62: #{tpu_custom_call.1} parent=1 // pred_check
      _
    $region63: #{tpu_custom_call.1} parent=1 // pred_check_branch
      %2175 = sbr.rel (0) target = $region65
    $region64: #{tpu_custom_call.1} parent=1 // pred_region
      %s2177 = ssub.s32 256, 256
      %2178 = vsyncadd [#allocation9], %s2177
      %s2179 = sshll.u32 [#allocation12], 4
      %s2180 = int_to_ptr.vmem [resolvable:$true] %s2179
      %2185 = dma.vmem_to_hbm [thread:$0]  %s2180, 256, %s13, [#allocation9], 128, 128, 8
    $region65: #{tpu_custom_call.1} parent=1 // pred_fallthru
      _
    // Predicated region
    $region66: #{tpu_custom_call.1} parent=1 // pred_check
      _
    $region67: #{tpu_custom_call.1} parent=1 // pred_check_branch
      %2187 = sbr.rel (0) target = $region69
    $region68: #{tpu_custom_call.1} parent=1 // pred_region
      _
    $region69: #{tpu_custom_call.1} parent=1 // pred_fallthru
      _
    // Predicated region
    $region70: #{tpu_custom_call.1} parent=1 // pred_check
      _
    $region71: #{tpu_custom_call.1} parent=1 // pred_check_branch
      %2189 = sbr.rel (0) target = $region73
    $region72: #{tpu_custom_call.1} parent=1 // pred_region
      %2190 = dma.done [#allocation9], 256
    $region73: #{tpu_custom_call.1} parent=1 // pred_fallthru
      _
    %2191 = vsyncpa [#allocation8], 1
    %2192 = vsyncpa [#allocation11], 1
    %2193 = vsyncpa [#allocation9], 1

</llo_original>
